<compile_context>
chip_gen: v7x
topology: tpu7x:2x2x1
jax: 0.10.0
libtpu: 0.0.40
codegen_flags: <defaults>
</compile_context>

<pallas_src>
import jax
import jax.numpy as jnp
import numpy as np
from jax.experimental import pallas as pl
from jax.experimental.pallas import tpu as pltpu

BN_EPS = 1e-5


def _round_up(x, m):
    return (x + m - 1) // m * m


def _full_spec(shape):
    nd = len(shape)
    return pl.BlockSpec(shape, lambda *_: (0,) * nd)


# ------------------------------ the fused kernel -------------------------------
def _make_kernel(W2, p_pad, inv_p2):
    """Builds the kernel closure over static geometry (W2, padded P, 1/P)."""

    def kernel(x16_ref, masks_ref,
               dw_ref, db_ref,
               hw_ref, hb_ref, hg_ref, hbt_ref,
               b2w_ref, b2b_ref, b2g_ref, b2bt_ref,
               b3w_ref, b3b_ref, b3g_ref, b3bt_ref,
               tw_ref, tb_ref, o_ref):
        # 9 boundary masks, one per (dh, dw) in {-1,0,1}^2 -- built once on the
        # host and shared by every layer.  masks[4] (dh=dw=0) doubles as the
        # valid-pixel mask (zero on lane padding) for the BatchNorm statistics.
        masks = [masks_ref[i] for i in range(9)]
        valid = masks[4]

        def shifted(v, dh, dw):
            # v[:, p] -> v[:, p + dh*W2 + dw], zeroed where the source pixel
            # falls outside the (H2, W2) image (padding=1 semantics).
            d = dh * W2 + dw
            if d != 0:
                v = pltpu.roll(v, shift=(-d) % p_pad, axis=1)
            return v * masks[(dh + 1) * 3 + (dw + 1)]

        def conv_small(get_src, w9_ref, b):
            # 3x3 conv with tiny Cin (=3): 9 per-tap (Cout,Cin)x(Cin,P) matmuls.
            acc = None
            for kh in range(3):
                for kw in range(3):
                    src, dh, dw = get_src(kh, kw)
                    v = shifted(src, dh, dw).astype(jnp.bfloat16)
                    term = jnp.dot(w9_ref[kh * 3 + kw], v,
                                   preferred_element_type=jnp.float32)
                    acc = term if acc is None else acc + term
            return acc + b

        def conv_wide(x, w2d, b):
            # 3x3 conv, Cin=32: stack the 9 shifted taps into one (288, P)
            # bf16 patch and do a single wide-K MXU matmul (f32 accumulation).
            parts = [shifted(x, kh - 1, kw - 1).astype(jnp.bfloat16)
                     for kh in range(3) for kw in range(3)]
            patch = jnp.concatenate(parts, axis=0)                # (288, P)
            return jnp.dot(w2d, patch, preferred_element_type=jnp.float32) + b

        def bn_lrelu(y, g, bt):
            # Train-mode BatchNorm (biased batch stats over real pixels only)
            # + LeakyReLU(0.2); all f32.
            mean = jnp.sum(y * valid, axis=1, keepdims=True) * inv_p2
            d = (y - mean) * valid
            var = jnp.sum(d * d, axis=1, keepdims=True) * inv_p2
            yn = (y - mean) * jax.lax.rsqrt(var + BN_EPS) * g + bt
            return jnp.where(yn > 0, yn, 0.2 * yn)

        # ---- down stage (both stride-2 convs, at final resolution) ----------
        x16 = x16_ref[...]                      # (48, P): 16 phases x 3 channels
        db = db_ref[...]

        def x_phase(a, b_):
            i = (a * 4 + b_) * 3
            return x16[i:i + 3]                 # (3, P)

        # down #1: produce y1 directly in its own 4-phase (stride-2) layout.
        y1_ph = []
        for r in range(2):
            for s in range(2):
                def get_src1(kh, kw, r=r, s=s):
                    mh, mw = 2 * r + kh - 1, 2 * s + kw - 1
                    return x_phase(mh % 4, mw % 4), mh // 4, mw // 4
                y1_ph.append(conv_small(get_src1, dw_ref, db))    # (3, P) each

        # down #2: polyphase stride-2 conv over the y1 phases (shared weights).
        def get_src2(kh, kw):
            mh, mw = kh - 1, kw - 1
            return y1_ph[(mh % 2) * 2 + (mw % 2)], mh // 2, mw // 2
        y2 = conv_small(get_src2, dw_ref, db)                     # (3, P)

        # ---- head: ConvBlock(3, 32) -----------------------------------------
        y = conv_small(lambda kh, kw: (y2, kh - 1, kw - 1), hw_ref, hb_ref[...])
        y = bn_lrelu(y, hg_ref[...], hbt_ref[...])                # (32, P)

        # ---- body: two ConvBlock(32, 32) --------------------------------------
        y = bn_lrelu(conv_wide(y, b2w_ref[...], b2b_ref[...]),
                     b2g_ref[...], b2bt_ref[...])
        y = bn_lrelu(conv_wide(y, b3w_ref[...], b3b_ref[...]),
                     b3g_ref[...], b3bt_ref[...])

        # ---- tail: Conv2d(32, 3) + Tanh ---------------------------------------
        o_ref[...] = jnp.tanh(conv_wide(y, tw_ref[...], tb_ref[...]))

    return kernel


# ------------------------ host-side static preprocessing -----------------------
def _phase_decompose4(x):
    """(N, C, H, W) -> (16*C, N*(H//4)*(W//4)) pixel-unshuffle by 4.

    Row (a*4 + b)*C + c holds x[:, c, a::4, b::4]; pixel (lane) index is
    n*H2*W2 + h2*W2 + w2."""
    N, C, H, W = x.shape
    H2, W2 = H // 4, W // 4
    x6 = x.reshape(N, C, H2, 4, W2, 4)
    return jnp.transpose(x6, (3, 5, 1, 0, 2, 4)).reshape(16 * C, N * H2 * W2)


def _boundary_masks(N, H2, W2, p_pad):
    """(9, 1, p_pad) f32: mask[(dh+1)*3+dw+1, 0, p] = 1 iff pixel p is real and
    its (dh, dw)-shifted source lies inside the (H2, W2) image."""
    P2 = N * H2 * W2
    h = np.tile(np.repeat(np.arange(H2), W2), N)
    w = np.tile(np.arange(W2), N * H2)
    m = np.zeros((9, 1, p_pad), np.float32)
    for dh in (-1, 0, 1):
        for dw in (-1, 0, 1):
            ok = ((h + dh >= 0) & (h + dh < H2) & (w + dw >= 0) & (w + dw < W2))
            m[(dh + 1) * 3 + (dw + 1), 0, :P2] = ok.astype(np.float32)
    return jnp.asarray(m)


# ------------------------------ parameter packing ------------------------------
def pack_params(p):
    """One-time repack of PyTorch-layout params into the kernel layout."""
    def taps9(w):   # (Cout, Cin, 3, 3) -> (9, Cout, Cin) bf16, t = kh*3 + kw
        co, ci = w.shape[:2]
        return jnp.transpose(w, (2, 3, 0, 1)).reshape(9, co, ci).astype(jnp.bfloat16)

    def wide(w):    # (Cout, Cin, 3, 3) -> (Cout, 9*Cin) bf16, col = t*Cin + ci
        co, ci = w.shape[:2]
        return jnp.transpose(w, (0, 2, 3, 1)).reshape(co, 9 * ci).astype(jnp.bfloat16)

    def col(v):     # (C,) -> (C, 1) f32
        return v.reshape(-1, 1).astype(jnp.float32)

    packed = {"down_w": taps9(p["down_w"]), "down_b": col(p["down_b"]),
              "head_w": taps9(p["head_w"]), "head_b": col(p["head_b"]),
              "head_g": col(p["head_g"]), "head_bt": col(p["head_bt"]),
              "tail_w": wide(p["tail_w"]), "tail_b": col(p["tail_b"])}
    for i in (2, 3):
        packed[f"b{i}_w"] = wide(p[f"b{i}_w"])
        packed[f"b{i}_b"] = col(p[f"b{i}_b"])
        packed[f"b{i}_g"] = col(p[f"b{i}_g"])
        packed[f"b{i}_bt"] = col(p[f"b{i}_bt"])
    return packed


# -------------------------------- fused forward --------------------------------
@jax.jit
def down_generator_forward(x_nchw, packed):
    N, C, H, W = x_nchw.shape
    if H % 4 or W % 4:
        raise ValueError("H and W must be divisible by 4")
    H2, W2 = H // 4, W // 4
    P2 = N * H2 * W2
    p_pad = _round_up(P2, 128)                           # lane-dense pixel axis

    x16 = _phase_decompose4(x_nchw.astype(jnp.float32))             # (48, P2)
    x16 = jnp.pad(x16, ((0, 0), (0, p_pad - P2)))                   # (48, p_pad)
    masks = _boundary_masks(N, H2, W2, p_pad)                       # (9,1,p_pad)

    args = [x16, masks,
            packed["down_w"], packed["down_b"],
            packed["head_w"], packed["head_b"], packed["head_g"], packed["head_bt"],
            packed["b2_w"], packed["b2_b"], packed["b2_g"], packed["b2_bt"],
            packed["b3_w"], packed["b3_b"], packed["b3_g"], packed["b3_bt"],
            packed["tail_w"], packed["tail_b"]]

    # Everything (weights + all activations) is VMEM-resident for this size;
    # compute a generous scoped-VMEM budget (capped below v7x physical VMEM).
    resident = sum(int(np.prod(a.shape)) * a.dtype.itemsize for a in args)
    resident += p_pad * (3 * 4 + 12 * 4 + 2 * 32 * 4 + 2 * 288 * 2)   # out/y1/acts/patch
    vmem_limit = int(min(48 * 2**20, max(16 * 2**20, 6 * resident)))

    out2d = pl.pallas_call(
        _make_kernel(W2, p_pad, 1.0 / P2),
        out_shape=jax.ShapeDtypeStruct((3, p_pad), jnp.float32),
        in_specs=[_full_spec(a.shape) for a in args],
        out_specs=_full_spec((3, p_pad)),
        compiler_params=pltpu.CompilerParams(vmem_limit_bytes=vmem_limit),
    )(*args)

    return jnp.transpose(out2d[:, :P2].reshape(3, N, H2, W2), (1, 0, 2, 3))


# --------------------------- params & pure-JAX reference -----------------------
def init_params(key):
    def init_conv(k, cout, cin, ksz):
        k1, k2 = jax.random.split(k)
        bound = 1.0 / float(np.sqrt(cin * ksz * ksz))
        w = jax.random.uniform(k1, (cout, cin, ksz, ksz), jnp.float32, -bound, bound)
        b = jax.random.uniform(k2, (cout,), jnp.float32, -bound, bound)
        return w, b

    keys = jax.random.split(key, 5)
    p = {}
    p["down_w"], p["down_b"] = init_conv(keys[0], 3, 3, 3)
    p["head_w"], p["head_b"] = init_conv(keys[1], 32, 3, 3)
    p["head_g"], p["head_bt"] = jnp.ones((32,), jnp.float32), jnp.zeros((32,), jnp.float32)
    for i, kk in zip((2, 3), keys[2:4]):
        p[f"b{i}_w"], p[f"b{i}_b"] = init_conv(kk, 32, 32, 3)
        p[f"b{i}_g"], p[f"b{i}_bt"] = jnp.ones((32,), jnp.float32), jnp.zeros((32,), jnp.float32)
    p["tail_w"], p["tail_b"] = init_conv(keys[4], 3, 32, 3)
    return p


def ref_forward(x, p):
    def conv(x, w, b, s, pad):
        y = jax.lax.conv_general_dilated(
            x, w, (s, s), [(pad, pad), (pad, pad)],
            dimension_numbers=("NCHW", "OIHW", "NCHW"),
            precision=jax.lax.Precision.HIGHEST)
        return y + b[None, :, None, None]

    def bn_lrelu(y, g, bt):
        mean = jnp.mean(y, axis=(0, 2, 3), keepdims=True)
        var = jnp.mean((y - mean) ** 2, axis=(0, 2, 3), keepdims=True)
        y = (y - mean) * jax.lax.rsqrt(var + BN_EPS)
        y = y * g[None, :, None, None] + bt[None, :, None, None]
        return jnp.where(y > 0, y, 0.2 * y)

    x = conv(x, p["down_w"], p["down_b"], 2, 1)
    x = conv(x, p["down_w"], p["down_b"], 2, 1)
    x = bn_lrelu(conv(x, p["head_w"], p["head_b"], 1, 1), p["head_g"], p["head_bt"])
    for i in (2, 3):
        x = bn_lrelu(conv(x, p[f"b{i}_w"], p[f"b{i}_b"], 1, 1), p[f"b{i}_g"], p[f"b{i}_bt"])
    return jnp.tanh(conv(x, p["tail_w"], p["tail_b"], 1, 1))


if __name__ == "__main__":
    key = jax.random.PRNGKey(0)
    kx, kp = jax.random.split(key)
    x = jax.random.normal(kx, (2, 3, 16, 16), dtype=jnp.float32)   # NCHW, like PyTorch
    params = init_params(kp)
    packed = pack_params(params)          # hoisted one-time weight repack

    out = jax.block_until_ready(down_generator_forward(x, packed))
    assert out.shape == (2, 3, 4, 4), out.shape

    ref = jax.block_until_ready(ref_forward(x, params))
    err = np.abs(np.asarray(out) - np.asarray(ref))
    # bf16 MXU operands with f32 accumulation vs. an f32-HIGHEST reference.
    assert float(err.mean()) < 1e-2, float(err.mean())
    np.testing.assert_allclose(np.asarray(out), np.asarray(ref), rtol=2e-2, atol=3e-2)

    print("KERNEL_OK")
</pallas_src>

<mosaic_0001>
module attributes {stable_mosaic.version = 11 : i64} {
  func.func @kernel(%arg0: memref<48x128xf32, #tpu.memory_space<vmem>>, %arg1: memref<9x1x128xf32, #tpu.memory_space<vmem>>, %arg2: memref<9x3x3xbf16, #tpu.memory_space<vmem>>, %arg3: memref<3x1xf32, #tpu.memory_space<vmem>>, %arg4: memref<9x32x3xbf16, #tpu.memory_space<vmem>>, %arg5: memref<32x1xf32, #tpu.memory_space<vmem>>, %arg6: memref<32x1xf32, #tpu.memory_space<vmem>>, %arg7: memref<32x1xf32, #tpu.memory_space<vmem>>, %arg8: memref<32x288xbf16, #tpu.memory_space<vmem>>, %arg9: memref<32x1xf32, #tpu.memory_space<vmem>>, %arg10: memref<32x1xf32, #tpu.memory_space<vmem>>, %arg11: memref<32x1xf32, #tpu.memory_space<vmem>>, %arg12: memref<32x288xbf16, #tpu.memory_space<vmem>>, %arg13: memref<32x1xf32, #tpu.memory_space<vmem>>, %arg14: memref<32x1xf32, #tpu.memory_space<vmem>>, %arg15: memref<32x1xf32, #tpu.memory_space<vmem>>, %arg16: memref<3x288xbf16, #tpu.memory_space<vmem>>, %arg17: memref<3x1xf32, #tpu.memory_space<vmem>>, %arg18: memref<3x128xf32, #tpu.memory_space<vmem>>) attributes {dimension_semantics = [], scalar_prefetch = 0 : i64, scratch_operands = 0 : i64, tpu.core_type = #tpu.core_type<tc>} {
    %c0 = arith.constant 0 : index
    %c0_0 = arith.constant 0 : index
    %c0_1 = arith.constant 0 : index
    %0 = vector.load %arg1[%c0, %c0_0, %c0_1] : memref<9x1x128xf32, #tpu.memory_space<vmem>>, vector<1x1x128xf32>
    %1 = vector.shape_cast %0 : vector<1x1x128xf32> to vector<1x128xf32>
    %c1 = arith.constant 1 : index
    %c0_2 = arith.constant 0 : index
    %c0_3 = arith.constant 0 : index
    %2 = vector.load %arg1[%c1, %c0_2, %c0_3] : memref<9x1x128xf32, #tpu.memory_space<vmem>>, vector<1x1x128xf32>
    %3 = vector.shape_cast %2 : vector<1x1x128xf32> to vector<1x128xf32>
    %c2 = arith.constant 2 : index
    %c0_4 = arith.constant 0 : index
    %c0_5 = arith.constant 0 : index
    %4 = vector.load %arg1[%c2, %c0_4, %c0_5] : memref<9x1x128xf32, #tpu.memory_space<vmem>>, vector<1x1x128xf32>
    %5 = vector.shape_cast %4 : vector<1x1x128xf32> to vector<1x128xf32>
    %c3 = arith.constant 3 : index
    %c0_6 = arith.constant 0 : index
    %c0_7 = arith.constant 0 : index
    %6 = vector.load %arg1[%c3, %c0_6, %c0_7] : memref<9x1x128xf32, #tpu.memory_space<vmem>>, vector<1x1x128xf32>
    %7 = vector.shape_cast %6 : vector<1x1x128xf32> to vector<1x128xf32>
    %c4 = arith.constant 4 : index
    %c0_8 = arith.constant 0 : index
    %c0_9 = arith.constant 0 : index
    %8 = vector.load %arg1[%c4, %c0_8, %c0_9] : memref<9x1x128xf32, #tpu.memory_space<vmem>>, vector<1x1x128xf32>
    %9 = vector.shape_cast %8 : vector<1x1x128xf32> to vector<1x128xf32>
    %c5 = arith.constant 5 : index
    %c0_10 = arith.constant 0 : index
    %c0_11 = arith.constant 0 : index
    %10 = vector.load %arg1[%c5, %c0_10, %c0_11] : memref<9x1x128xf32, #tpu.memory_space<vmem>>, vector<1x1x128xf32>
    %11 = vector.shape_cast %10 : vector<1x1x128xf32> to vector<1x128xf32>
    %c6 = arith.constant 6 : index
    %c0_12 = arith.constant 0 : index
    %c0_13 = arith.constant 0 : index
    %12 = vector.load %arg1[%c6, %c0_12, %c0_13] : memref<9x1x128xf32, #tpu.memory_space<vmem>>, vector<1x1x128xf32>
    %13 = vector.shape_cast %12 : vector<1x1x128xf32> to vector<1x128xf32>
    %c7 = arith.constant 7 : index
    %c0_14 = arith.constant 0 : index
    %c0_15 = arith.constant 0 : index
    %14 = vector.load %arg1[%c7, %c0_14, %c0_15] : memref<9x1x128xf32, #tpu.memory_space<vmem>>, vector<1x1x128xf32>
    %15 = vector.shape_cast %14 : vector<1x1x128xf32> to vector<1x128xf32>
    %c8 = arith.constant 8 : index
    %c0_16 = arith.constant 0 : index
    %c0_17 = arith.constant 0 : index
    %16 = vector.load %arg1[%c8, %c0_16, %c0_17] : memref<9x1x128xf32, #tpu.memory_space<vmem>>, vector<1x1x128xf32>
    %17 = vector.shape_cast %16 : vector<1x1x128xf32> to vector<1x128xf32>
    %c0_18 = arith.constant 0 : index
    %c0_19 = arith.constant 0 : index
    %18 = vector.load %arg0[%c0_18, %c0_19] : memref<48x128xf32, #tpu.memory_space<vmem>>, vector<48x128xf32>
    %c0_20 = arith.constant 0 : index
    %c0_21 = arith.constant 0 : index
    %19 = vector.load %arg3[%c0_20, %c0_21] : memref<3x1xf32, #tpu.memory_space<vmem>>, vector<3x1xf32>
    %20 = vector.extract_strided_slice %18 {offsets = [45, 0], sizes = [3, 128], strides = [1, 1]} : vector<48x128xf32> to vector<3x128xf32>
    %c5_i32 = arith.constant 5 : i32
    %21 = tpu.dynamic_rotate %20 by %c5_i32 dim 1 : vector<3x128xf32>, i32 -> vector<3x128xf32>
    %22 = vector.broadcast %1 : vector<1x128xf32> to vector<3x128xf32>
    %23 = arith.mulf %21, %22 : vector<3x128xf32>
    %24 = arith.truncf %23 : vector<3x128xf32> to vector<3x128xbf16>
    %c0_22 = arith.constant 0 : index
    %c0_23 = arith.constant 0 : index
    %c0_24 = arith.constant 0 : index
    %25 = vector.load %arg2[%c0_22, %c0_23, %c0_24] : memref<9x3x3xbf16, #tpu.memory_space<vmem>>, vector<1x3x3xbf16>
    %26 = vector.shape_cast %25 : vector<1x3x3xbf16> to vector<3x3xbf16>
    %cst = arith.constant dense<0.000000e+00> : vector<3x128xf32>
    %27 = tpu.matmul %26, %24, %cst {dimension_numbers = #tpu.dot_dimension_numbers<[1], [0], [0], [1], [0, 0, 1, 1], [], []>} : vector<3x3xbf16>, vector<3x128xbf16>, vector<3x128xf32> -> vector<3x128xf32>
    %28 = vector.extract_strided_slice %18 {offsets = [36, 0], sizes = [3, 128], strides = [1, 1]} : vector<48x128xf32> to vector<3x128xf32>
    %c4_i32 = arith.constant 4 : i32
    %29 = tpu.dynamic_rotate %28 by %c4_i32 dim 1 : vector<3x128xf32>, i32 -> vector<3x128xf32>
    %30 = vector.broadcast %3 : vector<1x128xf32> to vector<3x128xf32>
    %31 = arith.mulf %29, %30 : vector<3x128xf32>
    %32 = arith.truncf %31 : vector<3x128xf32> to vector<3x128xbf16>
    %c1_25 = arith.constant 1 : index
    %c0_26 = arith.constant 0 : index
    %c0_27 = arith.constant 0 : index
    %33 = vector.load %arg2[%c1_25, %c0_26, %c0_27] : memref<9x3x3xbf16, #tpu.memory_space<vmem>>, vector<1x3x3xbf16>
    %34 = vector.shape_cast %33 : vector<1x3x3xbf16> to vector<3x3xbf16>
    %cst_28 = arith.constant dense<0.000000e+00> : vector<3x128xf32>
    %35 = tpu.matmul %34, %32, %cst_28 {dimension_numbers = #tpu.dot_dimension_numbers<[1], [0], [0], [1], [0, 0, 1, 1], [], []>} : vector<3x3xbf16>, vector<3x128xbf16>, vector<3x128xf32> -> vector<3x128xf32>
    %36 = arith.addf %27, %35 : vector<3x128xf32>
    %37 = vector.extract_strided_slice %18 {offsets = [39, 0], sizes = [3, 128], strides = [1, 1]} : vector<48x128xf32> to vector<3x128xf32>
    %c4_i32_29 = arith.constant 4 : i32
    %38 = tpu.dynamic_rotate %37 by %c4_i32_29 dim 1 : vector<3x128xf32>, i32 -> vector<3x128xf32>
    %39 = vector.broadcast %3 : vector<1x128xf32> to vector<3x128xf32>
    %40 = arith.mulf %38, %39 : vector<3x128xf32>
    %41 = arith.truncf %40 : vector<3x128xf32> to vector<3x128xbf16>
    %c2_30 = arith.constant 2 : index
    %c0_31 = arith.constant 0 : index
    %c0_32 = arith.constant 0 : index
    %42 = vector.load %arg2[%c2_30, %c0_31, %c0_32] : memref<9x3x3xbf16, #tpu.memory_space<vmem>>, vector<1x3x3xbf16>
    %43 = vector.shape_cast %42 : vector<1x3x3xbf16> to vector<3x3xbf16>
    %cst_33 = arith.constant dense<0.000000e+00> : vector<3x128xf32>
    %44 = tpu.matmul %43, %41, %cst_33 {dimension_numbers = #tpu.dot_dimension_numbers<[1], [0], [0], [1], [0, 0, 1, 1], [], []>} : vector<3x3xbf16>, vector<3x128xbf16>, vector<3x128xf32> -> vector<3x128xf32>
    %45 = arith.addf %36, %44 : vector<3x128xf32>
    %46 = vector.extract_strided_slice %18 {offsets = [9, 0], sizes = [3, 128], strides = [1, 1]} : vector<48x128xf32> to vector<3x128xf32>
    %c1_i32 = arith.constant 1 : i32
    %47 = tpu.dynamic_rotate %46 by %c1_i32 dim 1 : vector<3x128xf32>, i32 -> vector<3x128xf32>
    %48 = vector.broadcast %7 : vector<1x128xf32> to vector<3x128xf32>
    %49 = arith.mulf %47, %48 : vector<3x128xf32>
    %50 = arith.truncf %49 : vector<3x128xf32> to vector<3x128xbf16>
    %c3_34 = arith.constant 3 : index
    %c0_35 = arith.constant 0 : index
    %c0_36 = arith.constant 0 : index
    %51 = vector.load %arg2[%c3_34, %c0_35, %c0_36] : memref<9x3x3xbf16, #tpu.memory_space<vmem>>, vector<1x3x3xbf16>
    %52 = vector.shape_cast %51 : vector<1x3x3xbf16> to vector<3x3xbf16>
    %cst_37 = arith.constant dense<0.000000e+00> : vector<3x128xf32>
    %53 = tpu.matmul %52, %50, %cst_37 {dimension_numbers = #tpu.dot_dimension_numbers<[1], [0], [0], [1], [0, 0, 1, 1], [], []>} : vector<3x3xbf16>, vector<3x128xbf16>, vector<3x128xf32> -> vector<3x128xf32>
    %54 = arith.addf %45, %53 : vector<3x128xf32>
    %55 = vector.extract_strided_slice %18 {offsets = [0, 0], sizes = [3, 128], strides = [1, 1]} : vector<48x128xf32> to vector<3x128xf32>
    %56 = vector.broadcast %9 : vector<1x128xf32> to vector<3x128xf32>
    %57 = arith.mulf %55, %56 : vector<3x128xf32>
    %58 = arith.truncf %57 : vector<3x128xf32> to vector<3x128xbf16>
    %c4_38 = arith.constant 4 : index
    %c0_39 = arith.constant 0 : index
    %c0_40 = arith.constant 0 : index
    %59 = vector.load %arg2[%c4_38, %c0_39, %c0_40] : memref<9x3x3xbf16, #tpu.memory_space<vmem>>, vector<1x3x3xbf16>
    %60 = vector.shape_cast %59 : vector<1x3x3xbf16> to vector<3x3xbf16>
    %cst_41 = arith.constant dense<0.000000e+00> : vector<3x128xf32>
    %61 = tpu.matmul %60, %58, %cst_41 {dimension_numbers = #tpu.dot_dimension_numbers<[1], [0], [0], [1], [0, 0, 1, 1], [], []>} : vector<3x3xbf16>, vector<3x128xbf16>, vector<3x128xf32> -> vector<3x128xf32>
    %62 = arith.addf %54, %61 : vector<3x128xf32>
    %63 = vector.extract_strided_slice %18 {offsets = [3, 0], sizes = [3, 128], strides = [1, 1]} : vector<48x128xf32> to vector<3x128xf32>
    %64 = vector.broadcast %9 : vector<1x128xf32> to vector<3x128xf32>
    %65 = arith.mulf %63, %64 : vector<3x128xf32>
    %66 = arith.truncf %65 : vector<3x128xf32> to vector<3x128xbf16>
    %c5_42 = arith.constant 5 : index
    %c0_43 = arith.constant 0 : index
    %c0_44 = arith.constant 0 : index
    %67 = vector.load %arg2[%c5_42, %c0_43, %c0_44] : memref<9x3x3xbf16, #tpu.memory_space<vmem>>, vector<1x3x3xbf16>
    %68 = vector.shape_cast %67 : vector<1x3x3xbf16> to vector<3x3xbf16>
    %cst_45 = arith.constant dense<0.000000e+00> : vector<3x128xf32>
    %69 = tpu.matmul %68, %66, %cst_45 {dimension_numbers = #tpu.dot_dimension_numbers<[1], [0], [0], [1], [0, 0, 1, 1], [], []>} : vector<3x3xbf16>, vector<3x128xbf16>, vector<3x128xf32> -> vector<3x128xf32>
    %70 = arith.addf %62, %69 : vector<3x128xf32>
    %71 = vector.extract_strided_slice %18 {offsets = [21, 0], sizes = [3, 128], strides = [1, 1]} : vector<48x128xf32> to vector<3x128xf32>
    %c1_i32_46 = arith.constant 1 : i32
    %72 = tpu.dynamic_rotate %71 by %c1_i32_46 dim 1 : vector<3x128xf32>, i32 -> vector<3x128xf32>
    %73 = vector.broadcast %7 : vector<1x128xf32> to vector<3x128xf32>
    %74 = arith.mulf %72, %73 : vector<3x128xf32>
    %75 = arith.truncf %74 : vector<3x128xf32> to vector<3x128xbf16>
    %c6_47 = arith.constant 6 : index
    %c0_48 = arith.constant 0 : index
    %c0_49 = arith.constant 0 : index
    %76 = vector.load %arg2[%c6_47, %c0_48, %c0_49] : memref<9x3x3xbf16, #tpu.memory_space<vmem>>, vector<1x3x3xbf16>
    %77 = vector.shape_cast %76 : vector<1x3x3xbf16> to vector<3x3xbf16>
    %cst_50 = arith.constant dense<0.000000e+00> : vector<3x128xf32>
    %78 = tpu.matmul %77, %75, %cst_50 {dimension_numbers = #tpu.dot_dimension_numbers<[1], [0], [0], [1], [0, 0, 1, 1], [], []>} : vector<3x3xbf16>, vector<3x128xbf16>, vector<3x128xf32> -> vector<3x128xf32>
    %79 = arith.addf %70, %78 : vector<3x128xf32>
    %80 = vector.extract_strided_slice %18 {offsets = [12, 0], sizes = [3, 128], strides = [1, 1]} : vector<48x128xf32> to vector<3x128xf32>
    %81 = vector.broadcast %9 : vector<1x128xf32> to vector<3x128xf32>
    %82 = arith.mulf %80, %81 : vector<3x128xf32>
    %83 = arith.truncf %82 : vector<3x128xf32> to vector<3x128xbf16>
    %c7_51 = arith.constant 7 : index
    %c0_52 = arith.constant 0 : index
    %c0_53 = arith.constant 0 : index
    %84 = vector.load %arg2[%c7_51, %c0_52, %c0_53] : memref<9x3x3xbf16, #tpu.memory_space<vmem>>, vector<1x3x3xbf16>
    %85 = vector.shape_cast %84 : vector<1x3x3xbf16> to vector<3x3xbf16>
    %cst_54 = arith.constant dense<0.000000e+00> : vector<3x128xf32>
    %86 = tpu.matmul %85, %83, %cst_54 {dimension_numbers = #tpu.dot_dimension_numbers<[1], [0], [0], [1], [0, 0, 1, 1], [], []>} : vector<3x3xbf16>, vector<3x128xbf16>, vector<3x128xf32> -> vector<3x128xf32>
    %87 = arith.addf %79, %86 : vector<3x128xf32>
    %88 = vector.extract_strided_slice %18 {offsets = [15, 0], sizes = [3, 128], strides = [1, 1]} : vector<48x128xf32> to vector<3x128xf32>
    %89 = vector.broadcast %9 : vector<1x128xf32> to vector<3x128xf32>
    %90 = arith.mulf %88, %89 : vector<3x128xf32>
    %91 = arith.truncf %90 : vector<3x128xf32> to vector<3x128xbf16>
    %c8_55 = arith.constant 8 : index
    %c0_56 = arith.constant 0 : index
    %c0_57 = arith.constant 0 : index
    %92 = vector.load %arg2[%c8_55, %c0_56, %c0_57] : memref<9x3x3xbf16, #tpu.memory_space<vmem>>, vector<1x3x3xbf16>
    %93 = vector.shape_cast %92 : vector<1x3x3xbf16> to vector<3x3xbf16>
    %cst_58 = arith.constant dense<0.000000e+00> : vector<3x128xf32>
    %94 = tpu.matmul %93, %91, %cst_58 {dimension_numbers = #tpu.dot_dimension_numbers<[1], [0], [0], [1], [0, 0, 1, 1], [], []>} : vector<3x3xbf16>, vector<3x128xbf16>, vector<3x128xf32> -> vector<3x128xf32>
    %95 = arith.addf %87, %94 : vector<3x128xf32>
    %96 = vector.broadcast %19 : vector<3x1xf32> to vector<3x128xf32>
    %97 = arith.addf %95, %96 : vector<3x128xf32>
    %98 = vector.extract_strided_slice %18 {offsets = [39, 0], sizes = [3, 128], strides = [1, 1]} : vector<48x128xf32> to vector<3x128xf32>
    %c4_i32_59 = arith.constant 4 : i32
    %99 = tpu.dynamic_rotate %98 by %c4_i32_59 dim 1 : vector<3x128xf32>, i32 -> vector<3x128xf32>
    %100 = vector.broadcast %3 : vector<1x128xf32> to vector<3x128xf32>
    %101 = arith.mulf %99, %100 : vector<3x128xf32>
    %102 = arith.truncf %101 : vector<3x128xf32> to vector<3x128xbf16>
    %c0_60 = arith.constant 0 : index
    %c0_61 = arith.constant 0 : index
    %c0_62 = arith.constant 0 : index
    %103 = vector.load %arg2[%c0_60, %c0_61, %c0_62] : memref<9x3x3xbf16, #tpu.memory_space<vmem>>, vector<1x3x3xbf16>
    %104 = vector.shape_cast %103 : vector<1x3x3xbf16> to vector<3x3xbf16>
    %cst_63 = arith.constant dense<0.000000e+00> : vector<3x128xf32>
    %105 = tpu.matmul %104, %102, %cst_63 {dimension_numbers = #tpu.dot_dimension_numbers<[1], [0], [0], [1], [0, 0, 1, 1], [], []>} : vector<3x3xbf16>, vector<3x128xbf16>, vector<3x128xf32> -> vector<3x128xf32>
    %106 = vector.extract_strided_slice %18 {offsets = [42, 0], sizes = [3, 128], strides = [1, 1]} : vector<48x128xf32> to vector<3x128xf32>
    %c4_i32_64 = arith.constant 4 : i32
    %107 = tpu.dynamic_rotate %106 by %c4_i32_64 dim 1 : vector<3x128xf32>, i32 -> vector<3x128xf32>
    %108 = vector.broadcast %3 : vector<1x128xf32> to vector<3x128xf32>
    %109 = arith.mulf %107, %108 : vector<3x128xf32>
    %110 = arith.truncf %109 : vector<3x128xf32> to vector<3x128xbf16>
    %c1_65 = arith.constant 1 : index
    %c0_66 = arith.constant 0 : index
    %c0_67 = arith.constant 0 : index
    %111 = vector.load %arg2[%c1_65, %c0_66, %c0_67] : memref<9x3x3xbf16, #tpu.memory_space<vmem>>, vector<1x3x3xbf16>
    %112 = vector.shape_cast %111 : vector<1x3x3xbf16> to vector<3x3xbf16>
    %cst_68 = arith.constant dense<0.000000e+00> : vector<3x128xf32>
    %113 = tpu.matmul %112, %110, %cst_68 {dimension_numbers = #tpu.dot_dimension_numbers<[1], [0], [0], [1], [0, 0, 1, 1], [], []>} : vector<3x3xbf16>, vector<3x128xbf16>, vector<3x128xf32> -> vector<3x128xf32>
    %114 = arith.addf %105, %113 : vector<3x128xf32>
    %115 = vector.extract_strided_slice %18 {offsets = [45, 0], sizes = [3, 128], strides = [1, 1]} : vector<48x128xf32> to vector<3x128xf32>
    %c4_i32_69 = arith.constant 4 : i32
    %116 = tpu.dynamic_rotate %115 by %c4_i32_69 dim 1 : vector<3x128xf32>, i32 -> vector<3x128xf32>
    %117 = vector.broadcast %3 : vector<1x128xf32> to vector<3x128xf32>
    %118 = arith.mulf %116, %117 : vector<3x128xf32>
    %119 = arith.truncf %118 : vector<3x128xf32> to vector<3x128xbf16>
    %c2_70 = arith.constant 2 : index
    %c0_71 = arith.constant 0 : index
    %c0_72 = arith.constant 0 : index
    %120 = vector.load %arg2[%c2_70, %c0_71, %c0_72] : memref<9x3x3xbf16, #tpu.memory_space<vmem>>, vector<1x3x3xbf16>
    %121 = vector.shape_cast %120 : vector<1x3x3xbf16> to vector<3x3xbf16>
    %cst_73 = arith.constant dense<0.000000e+00> : vector<3x128xf32>
    %122 = tpu.matmul %121, %119, %cst_73 {dimension_numbers = #tpu.dot_dimension_numbers<[1], [0], [0], [1], [0, 0, 1, 1], [], []>} : vector<3x3xbf16>, vector<3x128xbf16>, vector<3x128xf32> -> vector<3x128xf32>
    %123 = arith.addf %114, %122 : vector<3x128xf32>
    %124 = vector.extract_strided_slice %18 {offsets = [3, 0], sizes = [3, 128], strides = [1, 1]} : vector<48x128xf32> to vector<3x128xf32>
    %125 = vector.broadcast %9 : vector<1x128xf32> to vector<3x128xf32>
    %126 = arith.mulf %124, %125 : vector<3x128xf32>
    %127 = arith.truncf %126 : vector<3x128xf32> to vector<3x128xbf16>
    %c3_74 = arith.constant 3 : index
    %c0_75 = arith.constant 0 : index
    %c0_76 = arith.constant 0 : index
    %128 = vector.load %arg2[%c3_74, %c0_75, %c0_76] : memref<9x3x3xbf16, #tpu.memory_space<vmem>>, vector<1x3x3xbf16>
    %129 = vector.shape_cast %128 : vector<1x3x3xbf16> to vector<3x3xbf16>
    %cst_77 = arith.constant dense<0.000000e+00> : vector<3x128xf32>
    %130 = tpu.matmul %129, %127, %cst_77 {dimension_numbers = #tpu.dot_dimension_numbers<[1], [0], [0], [1], [0, 0, 1, 1], [], []>} : vector<3x3xbf16>, vector<3x128xbf16>, vector<3x128xf32> -> vector<3x128xf32>
    %131 = arith.addf %123, %130 : vector<3x128xf32>
    %132 = vector.extract_strided_slice %18 {offsets = [6, 0], sizes = [3, 128], strides = [1, 1]} : vector<48x128xf32> to vector<3x128xf32>
    %133 = vector.broadcast %9 : vector<1x128xf32> to vector<3x128xf32>
    %134 = arith.mulf %132, %133 : vector<3x128xf32>
    %135 = arith.truncf %134 : vector<3x128xf32> to vector<3x128xbf16>
    %c4_78 = arith.constant 4 : index
    %c0_79 = arith.constant 0 : index
    %c0_80 = arith.constant 0 : index
    %136 = vector.load %arg2[%c4_78, %c0_79, %c0_80] : memref<9x3x3xbf16, #tpu.memory_space<vmem>>, vector<1x3x3xbf16>
    %137 = vector.shape_cast %136 : vector<1x3x3xbf16> to vector<3x3xbf16>
    %cst_81 = arith.constant dense<0.000000e+00> : vector<3x128xf32>
    %138 = tpu.matmul %137, %135, %cst_81 {dimension_numbers = #tpu.dot_dimension_numbers<[1], [0], [0], [1], [0, 0, 1, 1], [], []>} : vector<3x3xbf16>, vector<3x128xbf16>, vector<3x128xf32> -> vector<3x128xf32>
    %139 = arith.addf %131, %138 : vector<3x128xf32>
    %140 = vector.extract_strided_slice %18 {offsets = [9, 0], sizes = [3, 128], strides = [1, 1]} : vector<48x128xf32> to vector<3x128xf32>
    %141 = vector.broadcast %9 : vector<1x128xf32> to vector<3x128xf32>
    %142 = arith.mulf %140, %141 : vector<3x128xf32>
    %143 = arith.truncf %142 : vector<3x128xf32> to vector<3x128xbf16>
    %c5_82 = arith.constant 5 : index
    %c0_83 = arith.constant 0 : index
    %c0_84 = arith.constant 0 : index
    %144 = vector.load %arg2[%c5_82, %c0_83, %c0_84] : memref<9x3x3xbf16, #tpu.memory_space<vmem>>, vector<1x3x3xbf16>
    %145 = vector.shape_cast %144 : vector<1x3x3xbf16> to vector<3x3xbf16>
    %cst_85 = arith.constant dense<0.000000e+00> : vector<3x128xf32>
    %146 = tpu.matmul %145, %143, %cst_85 {dimension_numbers = #tpu.dot_dimension_numbers<[1], [0], [0], [1], [0, 0, 1, 1], [], []>} : vector<3x3xbf16>, vector<3x128xbf16>, vector<3x128xf32> -> vector<3x128xf32>
    %147 = arith.addf %139, %146 : vector<3x128xf32>
    %148 = vector.extract_strided_slice %18 {offsets = [15, 0], sizes = [3, 128], strides = [1, 1]} : vector<48x128xf32> to vector<3x128xf32>
    %149 = vector.broadcast %9 : vector<1x128xf32> to vector<3x128xf32>
    %150 = arith.mulf %148, %149 : vector<3x128xf32>
    %151 = arith.truncf %150 : vector<3x128xf32> to vector<3x128xbf16>
    %c6_86 = arith.constant 6 : index
    %c0_87 = arith.constant 0 : index
    %c0_88 = arith.constant 0 : index
    %152 = vector.load %arg2[%c6_86, %c0_87, %c0_88] : memref<9x3x3xbf16, #tpu.memory_space<vmem>>, vector<1x3x3xbf16>
    %153 = vector.shape_cast %152 : vector<1x3x3xbf16> to vector<3x3xbf16>
    %cst_89 = arith.constant dense<0.000000e+00> : vector<3x128xf32>
    %154 = tpu.matmul %153, %151, %cst_89 {dimension_numbers = #tpu.dot_dimension_numbers<[1], [0], [0], [1], [0, 0, 1, 1], [], []>} : vector<3x3xbf16>, vector<3x128xbf16>, vector<3x128xf32> -> vector<3x128xf32>
    %155 = arith.addf %147, %154 : vector<3x128xf32>
    %156 = vector.extract_strided_slice %18 {offsets = [18, 0], sizes = [3, 128], strides = [1, 1]} : vector<48x128xf32> to vector<3x128xf32>
    %157 = vector.broadcast %9 : vector<1x128xf32> to vector<3x128xf32>
    %158 = arith.mulf %156, %157 : vector<3x128xf32>
    %159 = arith.truncf %158 : vector<3x128xf32> to vector<3x128xbf16>
    %c7_90 = arith.constant 7 : index
    %c0_91 = arith.constant 0 : index
    %c0_92 = arith.constant 0 : index
    %160 = vector.load %arg2[%c7_90, %c0_91, %c0_92] : memref<9x3x3xbf16, #tpu.memory_space<vmem>>, vector<1x3x3xbf16>
    %161 = vector.shape_cast %160 : vector<1x3x3xbf16> to vector<3x3xbf16>
    %cst_93 = arith.constant dense<0.000000e+00> : vector<3x128xf32>
    %162 = tpu.matmul %161, %159, %cst_93 {dimension_numbers = #tpu.dot_dimension_numbers<[1], [0], [0], [1], [0, 0, 1, 1], [], []>} : vector<3x3xbf16>, vector<3x128xbf16>, vector<3x128xf32> -> vector<3x128xf32>
    %163 = arith.addf %155, %162 : vector<3x128xf32>
    %164 = vector.extract_strided_slice %18 {offsets = [21, 0], sizes = [3, 128], strides = [1, 1]} : vector<48x128xf32> to vector<3x128xf32>
    %165 = vector.broadcast %9 : vector<1x128xf32> to vector<3x128xf32>
    %166 = arith.mulf %164, %165 : vector<3x128xf32>
    %167 = arith.truncf %166 : vector<3x128xf32> to vector<3x128xbf16>
    %c8_94 = arith.constant 8 : index
    %c0_95 = arith.constant 0 : index
    %c0_96 = arith.constant 0 : index
    %168 = vector.load %arg2[%c8_94, %c0_95, %c0_96] : memref<9x3x3xbf16, #tpu.memory_space<vmem>>, vector<1x3x3xbf16>
    %169 = vector.shape_cast %168 : vector<1x3x3xbf16> to vector<3x3xbf16>
    %cst_97 = arith.constant dense<0.000000e+00> : vector<3x128xf32>
    %170 = tpu.matmul %169, %167, %cst_97 {dimension_numbers = #tpu.dot_dimension_numbers<[1], [0], [0], [1], [0, 0, 1, 1], [], []>} : vector<3x3xbf16>, vector<3x128xbf16>, vector<3x128xf32> -> vector<3x128xf32>
    %171 = arith.addf %163, %170 : vector<3x128xf32>
    %172 = vector.broadcast %19 : vector<3x1xf32> to vector<3x128xf32>
    %173 = arith.addf %171, %172 : vector<3x128xf32>
    %174 = vector.extract_strided_slice %18 {offsets = [21, 0], sizes = [3, 128], strides = [1, 1]} : vector<48x128xf32> to vector<3x128xf32>
    %c1_i32_98 = arith.constant 1 : i32
    %175 = tpu.dynamic_rotate %174 by %c1_i32_98 dim 1 : vector<3x128xf32>, i32 -> vector<3x128xf32>
    %176 = vector.broadcast %7 : vector<1x128xf32> to vector<3x128xf32>
    %177 = arith.mulf %175, %176 : vector<3x128xf32>
    %178 = arith.truncf %177 : vector<3x128xf32> to vector<3x128xbf16>
    %c0_99 = arith.constant 0 : index
    %c0_100 = arith.constant 0 : index
    %c0_101 = arith.constant 0 : index
    %179 = vector.load %arg2[%c0_99, %c0_100, %c0_101] : memref<9x3x3xbf16, #tpu.memory_space<vmem>>, vector<1x3x3xbf16>
    %180 = vector.shape_cast %179 : vector<1x3x3xbf16> to vector<3x3xbf16>
    %cst_102 = arith.constant dense<0.000000e+00> : vector<3x128xf32>
    %181 = tpu.matmul %180, %178, %cst_102 {dimension_numbers = #tpu.dot_dimension_numbers<[1], [0], [0], [1], [0, 0, 1, 1], [], []>} : vector<3x3xbf16>, vector<3x128xbf16>, vector<3x128xf32> -> vector<3x128xf32>
    %182 = vector.extract_strided_slice %18 {offsets = [12, 0], sizes = [3, 128], strides = [1, 1]} : vector<48x128xf32> to vector<3x128xf32>
    %183 = vector.broadcast %9 : vector<1x128xf32> to vector<3x128xf32>
    %184 = arith.mulf %182, %183 : vector<3x128xf32>
    %185 = arith.truncf %184 : vector<3x128xf32> to vector<3x128xbf16>
    %c1_103 = arith.constant 1 : index
    %c0_104 = arith.constant 0 : index
    %c0_105 = arith.constant 0 : index
    %186 = vector.load %arg2[%c1_103, %c0_104, %c0_105] : memref<9x3x3xbf16, #tpu.memory_space<vmem>>, vector<1x3x3xbf16>
    %187 = vector.shape_cast %186 : vector<1x3x3xbf16> to vector<3x3xbf16>
    %cst_106 = arith.constant dense<0.000000e+00> : vector<3x128xf32>
    %188 = tpu.matmul %187, %185, %cst_106 {dimension_numbers = #tpu.dot_dimension_numbers<[1], [0], [0], [1], [0, 0, 1, 1], [], []>} : vector<3x3xbf16>, vector<3x128xbf16>, vector<3x128xf32> -> vector<3x128xf32>
    %189 = arith.addf %181, %188 : vector<3x128xf32>
    %190 = vector.extract_strided_slice %18 {offsets = [15, 0], sizes = [3, 128], strides = [1, 1]} : vector<48x128xf32> to vector<3x128xf32>
    %191 = vector.broadcast %9 : vector<1x128xf32> to vector<3x128xf32>
    %192 = arith.mulf %190, %191 : vector<3x128xf32>
    %193 = arith.truncf %192 : vector<3x128xf32> to vector<3x128xbf16>
    %c2_107 = arith.constant 2 : index
    %c0_108 = arith.constant 0 : index
    %c0_109 = arith.constant 0 : index
    %194 = vector.load %arg2[%c2_107, %c0_108, %c0_109] : memref<9x3x3xbf16, #tpu.memory_space<vmem>>, vector<1x3x3xbf16>
    %195 = vector.shape_cast %194 : vector<1x3x3xbf16> to vector<3x3xbf16>
    %cst_110 = arith.constant dense<0.000000e+00> : vector<3x128xf32>
    %196 = tpu.matmul %195, %193, %cst_110 {dimension_numbers = #tpu.dot_dimension_numbers<[1], [0], [0], [1], [0, 0, 1, 1], [], []>} : vector<3x3xbf16>, vector<3x128xbf16>, vector<3x128xf32> -> vector<3x128xf32>
    %197 = arith.addf %189, %196 : vector<3x128xf32>
    %198 = vector.extract_strided_slice %18 {offsets = [33, 0], sizes = [3, 128], strides = [1, 1]} : vector<48x128xf32> to vector<3x128xf32>
    %c1_i32_111 = arith.constant 1 : i32
    %199 = tpu.dynamic_rotate %198 by %c1_i32_111 dim 1 : vector<3x128xf32>, i32 -> vector<3x128xf32>
    %200 = vector.broadcast %7 : vector<1x128xf32> to vector<3x128xf32>
    %201 = arith.mulf %199, %200 : vector<3x128xf32>
    %202 = arith.truncf %201 : vector<3x128xf32> to vector<3x128xbf16>
    %c3_112 = arith.constant 3 : index
    %c0_113 = arith.constant 0 : index
    %c0_114 = arith.constant 0 : index
    %203 = vector.load %arg2[%c3_112, %c0_113, %c0_114] : memref<9x3x3xbf16, #tpu.memory_space<vmem>>, vector<1x3x3xbf16>
    %204 = vector.shape_cast %203 : vector<1x3x3xbf16> to vector<3x3xbf16>
    %cst_115 = arith.constant dense<0.000000e+00> : vector<3x128xf32>
    %205 = tpu.matmul %204, %202, %cst_115 {dimension_numbers = #tpu.dot_dimension_numbers<[1], [0], [0], [1], [0, 0, 1, 1], [], []>} : vector<3x3xbf16>, vector<3x128xbf16>, vector<3x128xf32> -> vector<3x128xf32>
    %206 = arith.addf %197, %205 : vector<3x128xf32>
    %207 = vector.extract_strided_slice %18 {offsets = [24, 0], sizes = [3, 128], strides = [1, 1]} : vector<48x128xf32> to vector<3x128xf32>
    %208 = vector.broadcast %9 : vector<1x128xf32> to vector<3x128xf32>
    %209 = arith.mulf %207, %208 : vector<3x128xf32>
    %210 = arith.truncf %209 : vector<3x128xf32> to vector<3x128xbf16>
    %c4_116 = arith.constant 4 : index
    %c0_117 = arith.constant 0 : index
    %c0_118 = arith.constant 0 : index
    %211 = vector.load %arg2[%c4_116, %c0_117, %c0_118] : memref<9x3x3xbf16, #tpu.memory_space<vmem>>, vector<1x3x3xbf16>
    %212 = vector.shape_cast %211 : vector<1x3x3xbf16> to vector<3x3xbf16>
    %cst_119 = arith.constant dense<0.000000e+00> : vector<3x128xf32>
    %213 = tpu.matmul %212, %210, %cst_119 {dimension_numbers = #tpu.dot_dimension_numbers<[1], [0], [0], [1], [0, 0, 1, 1], [], []>} : vector<3x3xbf16>, vector<3x128xbf16>, vector<3x128xf32> -> vector<3x128xf32>
    %214 = arith.addf %206, %213 : vector<3x128xf32>
    %215 = vector.extract_strided_slice %18 {offsets = [27, 0], sizes = [3, 128], strides = [1, 1]} : vector<48x128xf32> to vector<3x128xf32>
    %216 = vector.broadcast %9 : vector<1x128xf32> to vector<3x128xf32>
    %217 = arith.mulf %215, %216 : vector<3x128xf32>
    %218 = arith.truncf %217 : vector<3x128xf32> to vector<3x128xbf16>
    %c5_120 = arith.constant 5 : index
    %c0_121 = arith.constant 0 : index
    %c0_122 = arith.constant 0 : index
    %219 = vector.load %arg2[%c5_120, %c0_121, %c0_122] : memref<9x3x3xbf16, #tpu.memory_space<vmem>>, vector<1x3x3xbf16>
    %220 = vector.shape_cast %219 : vector<1x3x3xbf16> to vector<3x3xbf16>
    %cst_123 = arith.constant dense<0.000000e+00> : vector<3x128xf32>
    %221 = tpu.matmul %220, %218, %cst_123 {dimension_numbers = #tpu.dot_dimension_numbers<[1], [0], [0], [1], [0, 0, 1, 1], [], []>} : vector<3x3xbf16>, vector<3x128xbf16>, vector<3x128xf32> -> vector<3x128xf32>
    %222 = arith.addf %214, %221 : vector<3x128xf32>
    %223 = vector.extract_strided_slice %18 {offsets = [45, 0], sizes = [3, 128], strides = [1, 1]} : vector<48x128xf32> to vector<3x128xf32>
    %c1_i32_124 = arith.constant 1 : i32
    %224 = tpu.dynamic_rotate %223 by %c1_i32_124 dim 1 : vector<3x128xf32>, i32 -> vector<3x128xf32>
    %225 = vector.broadcast %7 : vector<1x128xf32> to vector<3x128xf32>
    %226 = arith.mulf %224, %225 : vector<3x128xf32>
    %227 = arith.truncf %226 : vector<3x128xf32> to vector<3x128xbf16>
    %c6_125 = arith.constant 6 : index
    %c0_126 = arith.constant 0 : index
    %c0_127 = arith.constant 0 : index
    %228 = vector.load %arg2[%c6_125, %c0_126, %c0_127] : memref<9x3x3xbf16, #tpu.memory_space<vmem>>, vector<1x3x3xbf16>
    %229 = vector.shape_cast %228 : vector<1x3x3xbf16> to vector<3x3xbf16>
    %cst_128 = arith.constant dense<0.000000e+00> : vector<3x128xf32>
    %230 = tpu.matmul %229, %227, %cst_128 {dimension_numbers = #tpu.dot_dimension_numbers<[1], [0], [0], [1], [0, 0, 1, 1], [], []>} : vector<3x3xbf16>, vector<3x128xbf16>, vector<3x128xf32> -> vector<3x128xf32>
    %231 = arith.addf %222, %230 : vector<3x128xf32>
    %232 = vector.extract_strided_slice %18 {offsets = [36, 0], sizes = [3, 128], strides = [1, 1]} : vector<48x128xf32> to vector<3x128xf32>
    %233 = vector.broadcast %9 : vector<1x128xf32> to vector<3x128xf32>
    %234 = arith.mulf %232, %233 : vector<3x128xf32>
    %235 = arith.truncf %234 : vector<3x128xf32> to vector<3x128xbf16>
    %c7_129 = arith.constant 7 : index
    %c0_130 = arith.constant 0 : index
    %c0_131 = arith.constant 0 : index
    %236 = vector.load %arg2[%c7_129, %c0_130, %c0_131] : memref<9x3x3xbf16, #tpu.memory_space<vmem>>, vector<1x3x3xbf16>
    %237 = vector.shape_cast %236 : vector<1x3x3xbf16> to vector<3x3xbf16>
    %cst_132 = arith.constant dense<0.000000e+00> : vector<3x128xf32>
    %238 = tpu.matmul %237, %235, %cst_132 {dimension_numbers = #tpu.dot_dimension_numbers<[1], [0], [0], [1], [0, 0, 1, 1], [], []>} : vector<3x3xbf16>, vector<3x128xbf16>, vector<3x128xf32> -> vector<3x128xf32>
    %239 = arith.addf %231, %238 : vector<3x128xf32>
    %240 = vector.extract_strided_slice %18 {offsets = [39, 0], sizes = [3, 128], strides = [1, 1]} : vector<48x128xf32> to vector<3x128xf32>
    %241 = vector.broadcast %9 : vector<1x128xf32> to vector<3x128xf32>
    %242 = arith.mulf %240, %241 : vector<3x128xf32>
    %243 = arith.truncf %242 : vector<3x128xf32> to vector<3x128xbf16>
    %c8_133 = arith.constant 8 : index
    %c0_134 = arith.constant 0 : index
    %c0_135 = arith.constant 0 : index
    %244 = vector.load %arg2[%c8_133, %c0_134, %c0_135] : memref<9x3x3xbf16, #tpu.memory_space<vmem>>, vector<1x3x3xbf16>
    %245 = vector.shape_cast %244 : vector<1x3x3xbf16> to vector<3x3xbf16>
    %cst_136 = arith.constant dense<0.000000e+00> : vector<3x128xf32>
    %246 = tpu.matmul %245, %243, %cst_136 {dimension_numbers = #tpu.dot_dimension_numbers<[1], [0], [0], [1], [0, 0, 1, 1], [], []>} : vector<3x3xbf16>, vector<3x128xbf16>, vector<3x128xf32> -> vector<3x128xf32>
    %247 = arith.addf %239, %246 : vector<3x128xf32>
    %248 = vector.broadcast %19 : vector<3x1xf32> to vector<3x128xf32>
    %249 = arith.addf %247, %248 : vector<3x128xf32>
    %250 = vector.extract_strided_slice %18 {offsets = [15, 0], sizes = [3, 128], strides = [1, 1]} : vector<48x128xf32> to vector<3x128xf32>
    %251 = vector.broadcast %9 : vector<1x128xf32> to vector<3x128xf32>
    %252 = arith.mulf %250, %251 : vector<3x128xf32>
    %253 = arith.truncf %252 : vector<3x128xf32> to vector<3x128xbf16>
    %c0_137 = arith.constant 0 : index
    %c0_138 = arith.constant 0 : index
    %c0_139 = arith.constant 0 : index
    %254 = vector.load %arg2[%c0_137, %c0_138, %c0_139] : memref<9x3x3xbf16, #tpu.memory_space<vmem>>, vector<1x3x3xbf16>
    %255 = vector.shape_cast %254 : vector<1x3x3xbf16> to vector<3x3xbf16>
    %cst_140 = arith.constant dense<0.000000e+00> : vector<3x128xf32>
    %256 = tpu.matmul %255, %253, %cst_140 {dimension_numbers = #tpu.dot_dimension_numbers<[1], [0], [0], [1], [0, 0, 1, 1], [], []>} : vector<3x3xbf16>, vector<3x128xbf16>, vector<3x128xf32> -> vector<3x128xf32>
    %257 = vector.extract_strided_slice %18 {offsets = [18, 0], sizes = [3, 128], strides = [1, 1]} : vector<48x128xf32> to vector<3x128xf32>
    %258 = vector.broadcast %9 : vector<1x128xf32> to vector<3x128xf32>
    %259 = arith.mulf %257, %258 : vector<3x128xf32>
    %260 = arith.truncf %259 : vector<3x128xf32> to vector<3x128xbf16>
    %c1_141 = arith.constant 1 : index
    %c0_142 = arith.constant 0 : index
    %c0_143 = arith.constant 0 : index
    %261 = vector.load %arg2[%c1_141, %c0_142, %c0_143] : memref<9x3x3xbf16, #tpu.memory_space<vmem>>, vector<1x3x3xbf16>
    %262 = vector.shape_cast %261 : vector<1x3x3xbf16> to vector<3x3xbf16>
    %cst_144 = arith.constant dense<0.000000e+00> : vector<3x128xf32>
    %263 = tpu.matmul %262, %260, %cst_144 {dimension_numbers = #tpu.dot_dimension_numbers<[1], [0], [0], [1], [0, 0, 1, 1], [], []>} : vector<3x3xbf16>, vector<3x128xbf16>, vector<3x128xf32> -> vector<3x128xf32>
    %264 = arith.addf %256, %263 : vector<3x128xf32>
    %265 = vector.extract_strided_slice %18 {offsets = [21, 0], sizes = [3, 128], strides = [1, 1]} : vector<48x128xf32> to vector<3x128xf32>
    %266 = vector.broadcast %9 : vector<1x128xf32> to vector<3x128xf32>
    %267 = arith.mulf %265, %266 : vector<3x128xf32>
    %268 = arith.truncf %267 : vector<3x128xf32> to vector<3x128xbf16>
    %c2_145 = arith.constant 2 : index
    %c0_146 = arith.constant 0 : index
    %c0_147 = arith.constant 0 : index
    %269 = vector.load %arg2[%c2_145, %c0_146, %c0_147] : memref<9x3x3xbf16, #tpu.memory_space<vmem>>, vector<1x3x3xbf16>
    %270 = vector.shape_cast %269 : vector<1x3x3xbf16> to vector<3x3xbf16>
    %cst_148 = arith.constant dense<0.000000e+00> : vector<3x128xf32>
    %271 = tpu.matmul %270, %268, %cst_148 {dimension_numbers = #tpu.dot_dimension_numbers<[1], [0], [0], [1], [0, 0, 1, 1], [], []>} : vector<3x3xbf16>, vector<3x128xbf16>, vector<3x128xf32> -> vector<3x128xf32>
    %272 = arith.addf %264, %271 : vector<3x128xf32>
    %273 = vector.extract_strided_slice %18 {offsets = [27, 0], sizes = [3, 128], strides = [1, 1]} : vector<48x128xf32> to vector<3x128xf32>
    %274 = vector.broadcast %9 : vector<1x128xf32> to vector<3x128xf32>
    %275 = arith.mulf %273, %274 : vector<3x128xf32>
    %276 = arith.truncf %275 : vector<3x128xf32> to vector<3x128xbf16>
    %c3_149 = arith.constant 3 : index
    %c0_150 = arith.constant 0 : index
    %c0_151 = arith.constant 0 : index
    %277 = vector.load %arg2[%c3_149, %c0_150, %c0_151] : memref<9x3x3xbf16, #tpu.memory_space<vmem>>, vector<1x3x3xbf16>
    %278 = vector.shape_cast %277 : vector<1x3x3xbf16> to vector<3x3xbf16>
    %cst_152 = arith.constant dense<0.000000e+00> : vector<3x128xf32>
    %279 = tpu.matmul %278, %276, %cst_152 {dimension_numbers = #tpu.dot_dimension_numbers<[1], [0], [0], [1], [0, 0, 1, 1], [], []>} : vector<3x3xbf16>, vector<3x128xbf16>, vector<3x128xf32> -> vector<3x128xf32>
    %280 = arith.addf %272, %279 : vector<3x128xf32>
    %281 = vector.extract_strided_slice %18 {offsets = [30, 0], sizes = [3, 128], strides = [1, 1]} : vector<48x128xf32> to vector<3x128xf32>
    %282 = vector.broadcast %9 : vector<1x128xf32> to vector<3x128xf32>
    %283 = arith.mulf %281, %282 : vector<3x128xf32>
    %284 = arith.truncf %283 : vector<3x128xf32> to vector<3x128xbf16>
    %c4_153 = arith.constant 4 : index
    %c0_154 = arith.constant 0 : index
    %c0_155 = arith.constant 0 : index
    %285 = vector.load %arg2[%c4_153, %c0_154, %c0_155] : memref<9x3x3xbf16, #tpu.memory_space<vmem>>, vector<1x3x3xbf16>
    %286 = vector.shape_cast %285 : vector<1x3x3xbf16> to vector<3x3xbf16>
    %cst_156 = arith.constant dense<0.000000e+00> : vector<3x128xf32>
    %287 = tpu.matmul %286, %284, %cst_156 {dimension_numbers = #tpu.dot_dimension_numbers<[1], [0], [0], [1], [0, 0, 1, 1], [], []>} : vector<3x3xbf16>, vector<3x128xbf16>, vector<3x128xf32> -> vector<3x128xf32>
    %288 = arith.addf %280, %287 : vector<3x128xf32>
    %289 = vector.extract_strided_slice %18 {offsets = [33, 0], sizes = [3, 128], strides = [1, 1]} : vector<48x128xf32> to vector<3x128xf32>
    %290 = vector.broadcast %9 : vector<1x128xf32> to vector<3x128xf32>
    %291 = arith.mulf %289, %290 : vector<3x128xf32>
    %292 = arith.truncf %291 : vector<3x128xf32> to vector<3x128xbf16>
    %c5_157 = arith.constant 5 : index
    %c0_158 = arith.constant 0 : index
    %c0_159 = arith.constant 0 : index
    %293 = vector.load %arg2[%c5_157, %c0_158, %c0_159] : memref<9x3x3xbf16, #tpu.memory_space<vmem>>, vector<1x3x3xbf16>
    %294 = vector.shape_cast %293 : vector<1x3x3xbf16> to vector<3x3xbf16>
    %cst_160 = arith.constant dense<0.000000e+00> : vector<3x128xf32>
    %295 = tpu.matmul %294, %292, %cst_160 {dimension_numbers = #tpu.dot_dimension_numbers<[1], [0], [0], [1], [0, 0, 1, 1], [], []>} : vector<3x3xbf16>, vector<3x128xbf16>, vector<3x128xf32> -> vector<3x128xf32>
    %296 = arith.addf %288, %295 : vector<3x128xf32>
    %297 = vector.extract_strided_slice %18 {offsets = [39, 0], sizes = [3, 128], strides = [1, 1]} : vector<48x128xf32> to vector<3x128xf32>
    %298 = vector.broadcast %9 : vector<1x128xf32> to vector<3x128xf32>
    %299 = arith.mulf %297, %298 : vector<3x128xf32>
    %300 = arith.truncf %299 : vector<3x128xf32> to vector<3x128xbf16>
    %c6_161 = arith.constant 6 : index
    %c0_162 = arith.constant 0 : index
    %c0_163 = arith.constant 0 : index
    %301 = vector.load %arg2[%c6_161, %c0_162, %c0_163] : memref<9x3x3xbf16, #tpu.memory_space<vmem>>, vector<1x3x3xbf16>
    %302 = vector.shape_cast %301 : vector<1x3x3xbf16> to vector<3x3xbf16>
    %cst_164 = arith.constant dense<0.000000e+00> : vector<3x128xf32>
    %303 = tpu.matmul %302, %300, %cst_164 {dimension_numbers = #tpu.dot_dimension_numbers<[1], [0], [0], [1], [0, 0, 1, 1], [], []>} : vector<3x3xbf16>, vector<3x128xbf16>, vector<3x128xf32> -> vector<3x128xf32>
    %304 = arith.addf %296, %303 : vector<3x128xf32>
    %305 = vector.extract_strided_slice %18 {offsets = [42, 0], sizes = [3, 128], strides = [1, 1]} : vector<48x128xf32> to vector<3x128xf32>
    %306 = vector.broadcast %9 : vector<1x128xf32> to vector<3x128xf32>
    %307 = arith.mulf %305, %306 : vector<3x128xf32>
    %308 = arith.truncf %307 : vector<3x128xf32> to vector<3x128xbf16>
    %c7_165 = arith.constant 7 : index
    %c0_166 = arith.constant 0 : index
    %c0_167 = arith.constant 0 : index
    %309 = vector.load %arg2[%c7_165, %c0_166, %c0_167] : memref<9x3x3xbf16, #tpu.memory_space<vmem>>, vector<1x3x3xbf16>
    %310 = vector.shape_cast %309 : vector<1x3x3xbf16> to vector<3x3xbf16>
    %cst_168 = arith.constant dense<0.000000e+00> : vector<3x128xf32>
    %311 = tpu.matmul %310, %308, %cst_168 {dimension_numbers = #tpu.dot_dimension_numbers<[1], [0], [0], [1], [0, 0, 1, 1], [], []>} : vector<3x3xbf16>, vector<3x128xbf16>, vector<3x128xf32> -> vector<3x128xf32>
    %312 = arith.addf %304, %311 : vector<3x128xf32>
    %313 = vector.extract_strided_slice %18 {offsets = [45, 0], sizes = [3, 128], strides = [1, 1]} : vector<48x128xf32> to vector<3x128xf32>
    %314 = vector.broadcast %9 : vector<1x128xf32> to vector<3x128xf32>
    %315 = arith.mulf %313, %314 : vector<3x128xf32>
    %316 = arith.truncf %315 : vector<3x128xf32> to vector<3x128xbf16>
    %c8_169 = arith.constant 8 : index
    %c0_170 = arith.constant 0 : index
    %c0_171 = arith.constant 0 : index
    %317 = vector.load %arg2[%c8_169, %c0_170, %c0_171] : memref<9x3x3xbf16, #tpu.memory_space<vmem>>, vector<1x3x3xbf16>
    %318 = vector.shape_cast %317 : vector<1x3x3xbf16> to vector<3x3xbf16>
    %cst_172 = arith.constant dense<0.000000e+00> : vector<3x128xf32>
    %319 = tpu.matmul %318, %316, %cst_172 {dimension_numbers = #tpu.dot_dimension_numbers<[1], [0], [0], [1], [0, 0, 1, 1], [], []>} : vector<3x3xbf16>, vector<3x128xbf16>, vector<3x128xf32> -> vector<3x128xf32>
    %320 = arith.addf %312, %319 : vector<3x128xf32>
    %321 = vector.broadcast %19 : vector<3x1xf32> to vector<3x128xf32>
    %322 = arith.addf %320, %321 : vector<3x128xf32>
    %c5_i32_173 = arith.constant 5 : i32
    %323 = tpu.dynamic_rotate %322 by %c5_i32_173 dim 1 : vector<3x128xf32>, i32 -> vector<3x128xf32>
    %324 = vector.broadcast %1 : vector<1x128xf32> to vector<3x128xf32>
    %325 = arith.mulf %323, %324 : vector<3x128xf32>
    %326 = arith.truncf %325 : vector<3x128xf32> to vector<3x128xbf16>
    %c0_174 = arith.constant 0 : index
    %c0_175 = arith.constant 0 : index
    %c0_176 = arith.constant 0 : index
    %327 = vector.load %arg2[%c0_174, %c0_175, %c0_176] : memref<9x3x3xbf16, #tpu.memory_space<vmem>>, vector<1x3x3xbf16>
    %328 = vector.shape_cast %327 : vector<1x3x3xbf16> to vector<3x3xbf16>
    %cst_177 = arith.constant dense<0.000000e+00> : vector<3x128xf32>
    %329 = tpu.matmul %328, %326, %cst_177 {dimension_numbers = #tpu.dot_dimension_numbers<[1], [0], [0], [1], [0, 0, 1, 1], [], []>} : vector<3x3xbf16>, vector<3x128xbf16>, vector<3x128xf32> -> vector<3x128xf32>
    %c4_i32_178 = arith.constant 4 : i32
    %330 = tpu.dynamic_rotate %249 by %c4_i32_178 dim 1 : vector<3x128xf32>, i32 -> vector<3x128xf32>
    %331 = vector.broadcast %3 : vector<1x128xf32> to vector<3x128xf32>
    %332 = arith.mulf %330, %331 : vector<3x128xf32>
    %333 = arith.truncf %332 : vector<3x128xf32> to vector<3x128xbf16>
    %c1_179 = arith.constant 1 : index
    %c0_180 = arith.constant 0 : index
    %c0_181 = arith.constant 0 : index
    %334 = vector.load %arg2[%c1_179, %c0_180, %c0_181] : memref<9x3x3xbf16, #tpu.memory_space<vmem>>, vector<1x3x3xbf16>
    %335 = vector.shape_cast %334 : vector<1x3x3xbf16> to vector<3x3xbf16>
    %cst_182 = arith.constant dense<0.000000e+00> : vector<3x128xf32>
    %336 = tpu.matmul %335, %333, %cst_182 {dimension_numbers = #tpu.dot_dimension_numbers<[1], [0], [0], [1], [0, 0, 1, 1], [], []>} : vector<3x3xbf16>, vector<3x128xbf16>, vector<3x128xf32> -> vector<3x128xf32>
    %337 = arith.addf %329, %336 : vector<3x128xf32>
    %c4_i32_183 = arith.constant 4 : i32
    %338 = tpu.dynamic_rotate %322 by %c4_i32_183 dim 1 : vector<3x128xf32>, i32 -> vector<3x128xf32>
    %339 = vector.broadcast %3 : vector<1x128xf32> to vector<3x128xf32>
    %340 = arith.mulf %338, %339 : vector<3x128xf32>
    %341 = arith.truncf %340 : vector<3x128xf32> to vector<3x128xbf16>
    %c2_184 = arith.constant 2 : index
    %c0_185 = arith.constant 0 : index
    %c0_186 = arith.constant 0 : index
    %342 = vector.load %arg2[%c2_184, %c0_185, %c0_186] : memref<9x3x3xbf16, #tpu.memory_space<vmem>>, vector<1x3x3xbf16>
    %343 = vector.shape_cast %342 : vector<1x3x3xbf16> to vector<3x3xbf16>
    %cst_187 = arith.constant dense<0.000000e+00> : vector<3x128xf32>
    %344 = tpu.matmul %343, %341, %cst_187 {dimension_numbers = #tpu.dot_dimension_numbers<[1], [0], [0], [1], [0, 0, 1, 1], [], []>} : vector<3x3xbf16>, vector<3x128xbf16>, vector<3x128xf32> -> vector<3x128xf32>
    %345 = arith.addf %337, %344 : vector<3x128xf32>
    %c1_i32_188 = arith.constant 1 : i32
    %346 = tpu.dynamic_rotate %173 by %c1_i32_188 dim 1 : vector<3x128xf32>, i32 -> vector<3x128xf32>
    %347 = vector.broadcast %7 : vector<1x128xf32> to vector<3x128xf32>
    %348 = arith.mulf %346, %347 : vector<3x128xf32>
    %349 = arith.truncf %348 : vector<3x128xf32> to vector<3x128xbf16>
    %c3_189 = arith.constant 3 : index
    %c0_190 = arith.constant 0 : index
    %c0_191 = arith.constant 0 : index
    %350 = vector.load %arg2[%c3_189, %c0_190, %c0_191] : memref<9x3x3xbf16, #tpu.memory_space<vmem>>, vector<1x3x3xbf16>
    %351 = vector.shape_cast %350 : vector<1x3x3xbf16> to vector<3x3xbf16>
    %cst_192 = arith.constant dense<0.000000e+00> : vector<3x128xf32>
    %352 = tpu.matmul %351, %349, %cst_192 {dimension_numbers = #tpu.dot_dimension_numbers<[1], [0], [0], [1], [0, 0, 1, 1], [], []>} : vector<3x3xbf16>, vector<3x128xbf16>, vector<3x128xf32> -> vector<3x128xf32>
    %353 = arith.addf %345, %352 : vector<3x128xf32>
    %354 = vector.broadcast %9 : vector<1x128xf32> to vector<3x128xf32>
    %355 = arith.mulf %97, %354 : vector<3x128xf32>
    %356 = arith.truncf %355 : vector<3x128xf32> to vector<3x128xbf16>
    %c4_193 = arith.constant 4 : index
    %c0_194 = arith.constant 0 : index
    %c0_195 = arith.constant 0 : index
    %357 = vector.load %arg2[%c4_193, %c0_194, %c0_195] : memref<9x3x3xbf16, #tpu.memory_space<vmem>>, vector<1x3x3xbf16>
    %358 = vector.shape_cast %357 : vector<1x3x3xbf16> to vector<3x3xbf16>
    %cst_196 = arith.constant dense<0.000000e+00> : vector<3x128xf32>
    %359 = tpu.matmul %358, %356, %cst_196 {dimension_numbers = #tpu.dot_dimension_numbers<[1], [0], [0], [1], [0, 0, 1, 1], [], []>} : vector<3x3xbf16>, vector<3x128xbf16>, vector<3x128xf32> -> vector<3x128xf32>
    %360 = arith.addf %353, %359 : vector<3x128xf32>
    %361 = vector.broadcast %9 : vector<1x128xf32> to vector<3x128xf32>
    %362 = arith.mulf %173, %361 : vector<3x128xf32>
    %363 = arith.truncf %362 : vector<3x128xf32> to vector<3x128xbf16>
    %c5_197 = arith.constant 5 : index
    %c0_198 = arith.constant 0 : index
    %c0_199 = arith.constant 0 : index
    %364 = vector.load %arg2[%c5_197, %c0_198, %c0_199] : memref<9x3x3xbf16, #tpu.memory_space<vmem>>, vector<1x3x3xbf16>
    %365 = vector.shape_cast %364 : vector<1x3x3xbf16> to vector<3x3xbf16>
    %cst_200 = arith.constant dense<0.000000e+00> : vector<3x128xf32>
    %366 = tpu.matmul %365, %363, %cst_200 {dimension_numbers = #tpu.dot_dimension_numbers<[1], [0], [0], [1], [0, 0, 1, 1], [], []>} : vector<3x3xbf16>, vector<3x128xbf16>, vector<3x128xf32> -> vector<3x128xf32>
    %367 = arith.addf %360, %366 : vector<3x128xf32>
    %c1_i32_201 = arith.constant 1 : i32
    %368 = tpu.dynamic_rotate %322 by %c1_i32_201 dim 1 : vector<3x128xf32>, i32 -> vector<3x128xf32>
    %369 = vector.broadcast %7 : vector<1x128xf32> to vector<3x128xf32>
    %370 = arith.mulf %368, %369 : vector<3x128xf32>
    %371 = arith.truncf %370 : vector<3x128xf32> to vector<3x128xbf16>
    %c6_202 = arith.constant 6 : index
    %c0_203 = arith.constant 0 : index
    %c0_204 = arith.constant 0 : index
    %372 = vector.load %arg2[%c6_202, %c0_203, %c0_204] : memref<9x3x3xbf16, #tpu.memory_space<vmem>>, vector<1x3x3xbf16>
    %373 = vector.shape_cast %372 : vector<1x3x3xbf16> to vector<3x3xbf16>
    %cst_205 = arith.constant dense<0.000000e+00> : vector<3x128xf32>
    %374 = tpu.matmul %373, %371, %cst_205 {dimension_numbers = #tpu.dot_dimension_numbers<[1], [0], [0], [1], [0, 0, 1, 1], [], []>} : vector<3x3xbf16>, vector<3x128xbf16>, vector<3x128xf32> -> vector<3x128xf32>
    %375 = arith.addf %367, %374 : vector<3x128xf32>
    %376 = vector.broadcast %9 : vector<1x128xf32> to vector<3x128xf32>
    %377 = arith.mulf %249, %376 : vector<3x128xf32>
    %378 = arith.truncf %377 : vector<3x128xf32> to vector<3x128xbf16>
    %c7_206 = arith.constant 7 : index
    %c0_207 = arith.constant 0 : index
    %c0_208 = arith.constant 0 : index
    %379 = vector.load %arg2[%c7_206, %c0_207, %c0_208] : memref<9x3x3xbf16, #tpu.memory_space<vmem>>, vector<1x3x3xbf16>
    %380 = vector.shape_cast %379 : vector<1x3x3xbf16> to vector<3x3xbf16>
    %cst_209 = arith.constant dense<0.000000e+00> : vector<3x128xf32>
    %381 = tpu.matmul %380, %378, %cst_209 {dimension_numbers = #tpu.dot_dimension_numbers<[1], [0], [0], [1], [0, 0, 1, 1], [], []>} : vector<3x3xbf16>, vector<3x128xbf16>, vector<3x128xf32> -> vector<3x128xf32>
    %382 = arith.addf %375, %381 : vector<3x128xf32>
    %383 = vector.broadcast %9 : vector<1x128xf32> to vector<3x128xf32>
    %384 = arith.mulf %322, %383 : vector<3x128xf32>
    %385 = arith.truncf %384 : vector<3x128xf32> to vector<3x128xbf16>
    %c8_210 = arith.constant 8 : index
    %c0_211 = arith.constant 0 : index
    %c0_212 = arith.constant 0 : index
    %386 = vector.load %arg2[%c8_210, %c0_211, %c0_212] : memref<9x3x3xbf16, #tpu.memory_space<vmem>>, vector<1x3x3xbf16>
    %387 = vector.shape_cast %386 : vector<1x3x3xbf16> to vector<3x3xbf16>
    %cst_213 = arith.constant dense<0.000000e+00> : vector<3x128xf32>
    %388 = tpu.matmul %387, %385, %cst_213 {dimension_numbers = #tpu.dot_dimension_numbers<[1], [0], [0], [1], [0, 0, 1, 1], [], []>} : vector<3x3xbf16>, vector<3x128xbf16>, vector<3x128xf32> -> vector<3x128xf32>
    %389 = arith.addf %382, %388 : vector<3x128xf32>
    %390 = vector.broadcast %19 : vector<3x1xf32> to vector<3x128xf32>
    %391 = arith.addf %389, %390 : vector<3x128xf32>
    %c0_214 = arith.constant 0 : index
    %c0_215 = arith.constant 0 : index
    %392 = vector.load %arg5[%c0_214, %c0_215] : memref<32x1xf32, #tpu.memory_space<vmem>>, vector<32x1xf32>
    %c5_i32_216 = arith.constant 5 : i32
    %393 = tpu.dynamic_rotate %391 by %c5_i32_216 dim 1 : vector<3x128xf32>, i32 -> vector<3x128xf32>
    %394 = vector.broadcast %1 : vector<1x128xf32> to vector<3x128xf32>
    %395 = arith.mulf %393, %394 : vector<3x128xf32>
    %396 = arith.truncf %395 : vector<3x128xf32> to vector<3x128xbf16>
    %c0_217 = arith.constant 0 : index
    %c0_218 = arith.constant 0 : index
    %c0_219 = arith.constant 0 : index
    %397 = vector.load %arg4[%c0_217, %c0_218, %c0_219] : memref<9x32x3xbf16, #tpu.memory_space<vmem>>, vector<1x32x3xbf16>
    %398 = vector.shape_cast %397 : vector<1x32x3xbf16> to vector<32x3xbf16>
    %cst_220 = arith.constant dense<0.000000e+00> : vector<32x128xf32>
    %399 = tpu.matmul %398, %396, %cst_220 {dimension_numbers = #tpu.dot_dimension_numbers<[1], [0], [0], [1], [0, 0, 1, 1], [], []>} : vector<32x3xbf16>, vector<3x128xbf16>, vector<32x128xf32> -> vector<32x128xf32>
    %c4_i32_221 = arith.constant 4 : i32
    %400 = tpu.dynamic_rotate %391 by %c4_i32_221 dim 1 : vector<3x128xf32>, i32 -> vector<3x128xf32>
    %401 = vector.broadcast %3 : vector<1x128xf32> to vector<3x128xf32>
    %402 = arith.mulf %400, %401 : vector<3x128xf32>
    %403 = arith.truncf %402 : vector<3x128xf32> to vector<3x128xbf16>
    %c1_222 = arith.constant 1 : index
    %c0_223 = arith.constant 0 : index
    %c0_224 = arith.constant 0 : index
    %404 = vector.load %arg4[%c1_222, %c0_223, %c0_224] : memref<9x32x3xbf16, #tpu.memory_space<vmem>>, vector<1x32x3xbf16>
    %405 = vector.shape_cast %404 : vector<1x32x3xbf16> to vector<32x3xbf16>
    %cst_225 = arith.constant dense<0.000000e+00> : vector<32x128xf32>
    %406 = tpu.matmul %405, %403, %cst_225 {dimension_numbers = #tpu.dot_dimension_numbers<[1], [0], [0], [1], [0, 0, 1, 1], [], []>} : vector<32x3xbf16>, vector<3x128xbf16>, vector<32x128xf32> -> vector<32x128xf32>
    %407 = arith.addf %399, %406 : vector<32x128xf32>
    %c3_i32 = arith.constant 3 : i32
    %408 = tpu.dynamic_rotate %391 by %c3_i32 dim 1 : vector<3x128xf32>, i32 -> vector<3x128xf32>
    %409 = vector.broadcast %5 : vector<1x128xf32> to vector<3x128xf32>
    %410 = arith.mulf %408, %409 : vector<3x128xf32>
    %411 = arith.truncf %410 : vector<3x128xf32> to vector<3x128xbf16>
    %c2_226 = arith.constant 2 : index
    %c0_227 = arith.constant 0 : index
    %c0_228 = arith.constant 0 : index
    %412 = vector.load %arg4[%c2_226, %c0_227, %c0_228] : memref<9x32x3xbf16, #tpu.memory_space<vmem>>, vector<1x32x3xbf16>
    %413 = vector.shape_cast %412 : vector<1x32x3xbf16> to vector<32x3xbf16>
    %cst_229 = arith.constant dense<0.000000e+00> : vector<32x128xf32>
    %414 = tpu.matmul %413, %411, %cst_229 {dimension_numbers = #tpu.dot_dimension_numbers<[1], [0], [0], [1], [0, 0, 1, 1], [], []>} : vector<32x3xbf16>, vector<3x128xbf16>, vector<32x128xf32> -> vector<32x128xf32>
    %415 = arith.addf %407, %414 : vector<32x128xf32>
    %c1_i32_230 = arith.constant 1 : i32
    %416 = tpu.dynamic_rotate %391 by %c1_i32_230 dim 1 : vector<3x128xf32>, i32 -> vector<3x128xf32>
    %417 = vector.broadcast %7 : vector<1x128xf32> to vector<3x128xf32>
    %418 = arith.mulf %416, %417 : vector<3x128xf32>
    %419 = arith.truncf %418 : vector<3x128xf32> to vector<3x128xbf16>
    %c3_231 = arith.constant 3 : index
    %c0_232 = arith.constant 0 : index
    %c0_233 = arith.constant 0 : index
    %420 = vector.load %arg4[%c3_231, %c0_232, %c0_233] : memref<9x32x3xbf16, #tpu.memory_space<vmem>>, vector<1x32x3xbf16>
    %421 = vector.shape_cast %420 : vector<1x32x3xbf16> to vector<32x3xbf16>
    %cst_234 = arith.constant dense<0.000000e+00> : vector<32x128xf32>
    %422 = tpu.matmul %421, %419, %cst_234 {dimension_numbers = #tpu.dot_dimension_numbers<[1], [0], [0], [1], [0, 0, 1, 1], [], []>} : vector<32x3xbf16>, vector<3x128xbf16>, vector<32x128xf32> -> vector<32x128xf32>
    %423 = arith.addf %415, %422 : vector<32x128xf32>
    %424 = vector.broadcast %9 : vector<1x128xf32> to vector<3x128xf32>
    %425 = arith.mulf %391, %424 : vector<3x128xf32>
    %426 = arith.truncf %425 : vector<3x128xf32> to vector<3x128xbf16>
    %c4_235 = arith.constant 4 : index
    %c0_236 = arith.constant 0 : index
    %c0_237 = arith.constant 0 : index
    %427 = vector.load %arg4[%c4_235, %c0_236, %c0_237] : memref<9x32x3xbf16, #tpu.memory_space<vmem>>, vector<1x32x3xbf16>
    %428 = vector.shape_cast %427 : vector<1x32x3xbf16> to vector<32x3xbf16>
    %cst_238 = arith.constant dense<0.000000e+00> : vector<32x128xf32>
    %429 = tpu.matmul %428, %426, %cst_238 {dimension_numbers = #tpu.dot_dimension_numbers<[1], [0], [0], [1], [0, 0, 1, 1], [], []>} : vector<32x3xbf16>, vector<3x128xbf16>, vector<32x128xf32> -> vector<32x128xf32>
    %430 = arith.addf %423, %429 : vector<32x128xf32>
    %c127_i32 = arith.constant 127 : i32
    %431 = tpu.dynamic_rotate %391 by %c127_i32 dim 1 : vector<3x128xf32>, i32 -> vector<3x128xf32>
    %432 = vector.broadcast %11 : vector<1x128xf32> to vector<3x128xf32>
    %433 = arith.mulf %431, %432 : vector<3x128xf32>
    %434 = arith.truncf %433 : vector<3x128xf32> to vector<3x128xbf16>
    %c5_239 = arith.constant 5 : index
    %c0_240 = arith.constant 0 : index
    %c0_241 = arith.constant 0 : index
    %435 = vector.load %arg4[%c5_239, %c0_240, %c0_241] : memref<9x32x3xbf16, #tpu.memory_space<vmem>>, vector<1x32x3xbf16>
    %436 = vector.shape_cast %435 : vector<1x32x3xbf16> to vector<32x3xbf16>
    %cst_242 = arith.constant dense<0.000000e+00> : vector<32x128xf32>
    %437 = tpu.matmul %436, %434, %cst_242 {dimension_numbers = #tpu.dot_dimension_numbers<[1], [0], [0], [1], [0, 0, 1, 1], [], []>} : vector<32x3xbf16>, vector<3x128xbf16>, vector<32x128xf32> -> vector<32x128xf32>
    %438 = arith.addf %430, %437 : vector<32x128xf32>
    %c125_i32 = arith.constant 125 : i32
    %439 = tpu.dynamic_rotate %391 by %c125_i32 dim 1 : vector<3x128xf32>, i32 -> vector<3x128xf32>
    %440 = vector.broadcast %13 : vector<1x128xf32> to vector<3x128xf32>
    %441 = arith.mulf %439, %440 : vector<3x128xf32>
    %442 = arith.truncf %441 : vector<3x128xf32> to vector<3x128xbf16>
    %c6_243 = arith.constant 6 : index
    %c0_244 = arith.constant 0 : index
    %c0_245 = arith.constant 0 : index
    %443 = vector.load %arg4[%c6_243, %c0_244, %c0_245] : memref<9x32x3xbf16, #tpu.memory_space<vmem>>, vector<1x32x3xbf16>
    %444 = vector.shape_cast %443 : vector<1x32x3xbf16> to vector<32x3xbf16>
    %cst_246 = arith.constant dense<0.000000e+00> : vector<32x128xf32>
    %445 = tpu.matmul %444, %442, %cst_246 {dimension_numbers = #tpu.dot_dimension_numbers<[1], [0], [0], [1], [0, 0, 1, 1], [], []>} : vector<32x3xbf16>, vector<3x128xbf16>, vector<32x128xf32> -> vector<32x128xf32>
    %446 = arith.addf %438, %445 : vector<32x128xf32>
    %c124_i32 = arith.constant 124 : i32
    %447 = tpu.dynamic_rotate %391 by %c124_i32 dim 1 : vector<3x128xf32>, i32 -> vector<3x128xf32>
    %448 = vector.broadcast %15 : vector<1x128xf32> to vector<3x128xf32>
    %449 = arith.mulf %447, %448 : vector<3x128xf32>
    %450 = arith.truncf %449 : vector<3x128xf32> to vector<3x128xbf16>
    %c7_247 = arith.constant 7 : index
    %c0_248 = arith.constant 0 : index
    %c0_249 = arith.constant 0 : index
    %451 = vector.load %arg4[%c7_247, %c0_248, %c0_249] : memref<9x32x3xbf16, #tpu.memory_space<vmem>>, vector<1x32x3xbf16>
    %452 = vector.shape_cast %451 : vector<1x32x3xbf16> to vector<32x3xbf16>
    %cst_250 = arith.constant dense<0.000000e+00> : vector<32x128xf32>
    %453 = tpu.matmul %452, %450, %cst_250 {dimension_numbers = #tpu.dot_dimension_numbers<[1], [0], [0], [1], [0, 0, 1, 1], [], []>} : vector<32x3xbf16>, vector<3x128xbf16>, vector<32x128xf32> -> vector<32x128xf32>
    %454 = arith.addf %446, %453 : vector<32x128xf32>
    %c123_i32 = arith.constant 123 : i32
    %455 = tpu.dynamic_rotate %391 by %c123_i32 dim 1 : vector<3x128xf32>, i32 -> vector<3x128xf32>
    %456 = vector.broadcast %17 : vector<1x128xf32> to vector<3x128xf32>
    %457 = arith.mulf %455, %456 : vector<3x128xf32>
    %458 = arith.truncf %457 : vector<3x128xf32> to vector<3x128xbf16>
    %c8_251 = arith.constant 8 : index
    %c0_252 = arith.constant 0 : index
    %c0_253 = arith.constant 0 : index
    %459 = vector.load %arg4[%c8_251, %c0_252, %c0_253] : memref<9x32x3xbf16, #tpu.memory_space<vmem>>, vector<1x32x3xbf16>
    %460 = vector.shape_cast %459 : vector<1x32x3xbf16> to vector<32x3xbf16>
    %cst_254 = arith.constant dense<0.000000e+00> : vector<32x128xf32>
    %461 = tpu.matmul %460, %458, %cst_254 {dimension_numbers = #tpu.dot_dimension_numbers<[1], [0], [0], [1], [0, 0, 1, 1], [], []>} : vector<32x3xbf16>, vector<3x128xbf16>, vector<32x128xf32> -> vector<32x128xf32>
    %462 = arith.addf %454, %461 : vector<32x128xf32>
    %463 = vector.broadcast %392 : vector<32x1xf32> to vector<32x128xf32>
    %464 = arith.addf %462, %463 : vector<32x128xf32>
    %c0_255 = arith.constant 0 : index
    %c0_256 = arith.constant 0 : index
    %465 = vector.load %arg6[%c0_255, %c0_256] : memref<32x1xf32, #tpu.memory_space<vmem>>, vector<32x1xf32>
    %c0_257 = arith.constant 0 : index
    %c0_258 = arith.constant 0 : index
    %466 = vector.load %arg7[%c0_257, %c0_258] : memref<32x1xf32, #tpu.memory_space<vmem>>, vector<32x1xf32>
    %467 = vector.broadcast %9 : vector<1x128xf32> to vector<32x128xf32>
    %468 = arith.mulf %464, %467 : vector<32x128xf32>
    %cst_259 = arith.constant dense<0.000000e+00> : vector<32xf32>
    %469 = vector.multi_reduction <add>, %468, %cst_259 [1] : vector<32x128xf32> to vector<32xf32>
    %470 = vector.shape_cast %469 : vector<32xf32> to vector<32x1xf32>
    %cst_260 = arith.constant 3.125000e-02 : f32
    %471 = vector.broadcast %cst_260 : f32 to vector<32x1xf32>
    %472 = arith.mulf %470, %471 : vector<32x1xf32>
    %473 = vector.broadcast %472 : vector<32x1xf32> to vector<32x128xf32>
    %474 = arith.subf %464, %473 : vector<32x128xf32>
    %475 = vector.broadcast %9 : vector<1x128xf32> to vector<32x128xf32>
    %476 = arith.mulf %474, %475 : vector<32x128xf32>
    %477 = arith.mulf %476, %476 : vector<32x128xf32>
    %cst_261 = arith.constant dense<0.000000e+00> : vector<32xf32>
    %478 = vector.multi_reduction <add>, %477, %cst_261 [1] : vector<32x128xf32> to vector<32xf32>
    %479 = vector.shape_cast %478 : vector<32xf32> to vector<32x1xf32>
    %cst_262 = arith.constant 3.125000e-02 : f32
    %480 = vector.broadcast %cst_262 : f32 to vector<32x1xf32>
    %481 = arith.mulf %479, %480 : vector<32x1xf32>
    %482 = vector.broadcast %472 : vector<32x1xf32> to vector<32x128xf32>
    %483 = arith.subf %464, %482 : vector<32x128xf32>
    %cst_263 = arith.constant 9.99999974E-6 : f32
    %484 = vector.broadcast %cst_263 : f32 to vector<32x1xf32>
    %485 = arith.addf %481, %484 : vector<32x1xf32>
    %486 = math.rsqrt %485 : vector<32x1xf32>
    %487 = vector.broadcast %486 : vector<32x1xf32> to vector<32x128xf32>
    %488 = arith.mulf %483, %487 : vector<32x128xf32>
    %489 = vector.broadcast %465 : vector<32x1xf32> to vector<32x128xf32>
    %490 = arith.mulf %488, %489 : vector<32x128xf32>
    %491 = vector.broadcast %466 : vector<32x1xf32> to vector<32x128xf32>
    %492 = arith.addf %490, %491 : vector<32x128xf32>
    %cst_264 = arith.constant 0.000000e+00 : f32
    %493 = vector.broadcast %cst_264 : f32 to vector<32x128xf32>
    %494 = arith.cmpf ogt, %492, %493 : vector<32x128xf32>
    %cst_265 = arith.constant 2.000000e-01 : f32
    %495 = vector.broadcast %cst_265 : f32 to vector<32x128xf32>
    %496 = arith.mulf %495, %492 : vector<32x128xf32>
    %497 = arith.select %494, %492, %496 : vector<32x128xi1>, vector<32x128xf32>
    %c0_266 = arith.constant 0 : index
    %c0_267 = arith.constant 0 : index
    %498 = vector.load %arg8[%c0_266, %c0_267] : memref<32x288xbf16, #tpu.memory_space<vmem>>, vector<32x288xbf16>
    %c0_268 = arith.constant 0 : index
    %c0_269 = arith.constant 0 : index
    %499 = vector.load %arg9[%c0_268, %c0_269] : memref<32x1xf32, #tpu.memory_space<vmem>>, vector<32x1xf32>
    %c5_i32_270 = arith.constant 5 : i32
    %500 = tpu.dynamic_rotate %497 by %c5_i32_270 dim 1 : vector<32x128xf32>, i32 -> vector<32x128xf32>
    %501 = vector.broadcast %1 : vector<1x128xf32> to vector<32x128xf32>
    %502 = arith.mulf %500, %501 : vector<32x128xf32>
    %503 = arith.truncf %502 : vector<32x128xf32> to vector<32x128xbf16>
    %c4_i32_271 = arith.constant 4 : i32
    %504 = tpu.dynamic_rotate %497 by %c4_i32_271 dim 1 : vector<32x128xf32>, i32 -> vector<32x128xf32>
    %505 = vector.broadcast %3 : vector<1x128xf32> to vector<32x128xf32>
    %506 = arith.mulf %504, %505 : vector<32x128xf32>
    %507 = arith.truncf %506 : vector<32x128xf32> to vector<32x128xbf16>
    %c3_i32_272 = arith.constant 3 : i32
    %508 = tpu.dynamic_rotate %497 by %c3_i32_272 dim 1 : vector<32x128xf32>, i32 -> vector<32x128xf32>
    %509 = vector.broadcast %5 : vector<1x128xf32> to vector<32x128xf32>
    %510 = arith.mulf %508, %509 : vector<32x128xf32>
    %511 = arith.truncf %510 : vector<32x128xf32> to vector<32x128xbf16>
    %c1_i32_273 = arith.constant 1 : i32
    %512 = tpu.dynamic_rotate %497 by %c1_i32_273 dim 1 : vector<32x128xf32>, i32 -> vector<32x128xf32>
    %513 = vector.broadcast %7 : vector<1x128xf32> to vector<32x128xf32>
    %514 = arith.mulf %512, %513 : vector<32x128xf32>
    %515 = arith.truncf %514 : vector<32x128xf32> to vector<32x128xbf16>
    %516 = vector.broadcast %9 : vector<1x128xf32> to vector<32x128xf32>
    %517 = arith.mulf %497, %516 : vector<32x128xf32>
    %518 = arith.truncf %517 : vector<32x128xf32> to vector<32x128xbf16>
    %c127_i32_274 = arith.constant 127 : i32
    %519 = tpu.dynamic_rotate %497 by %c127_i32_274 dim 1 : vector<32x128xf32>, i32 -> vector<32x128xf32>
    %520 = vector.broadcast %11 : vector<1x128xf32> to vector<32x128xf32>
    %521 = arith.mulf %519, %520 : vector<32x128xf32>
    %522 = arith.truncf %521 : vector<32x128xf32> to vector<32x128xbf16>
    %c125_i32_275 = arith.constant 125 : i32
    %523 = tpu.dynamic_rotate %497 by %c125_i32_275 dim 1 : vector<32x128xf32>, i32 -> vector<32x128xf32>
    %524 = vector.broadcast %13 : vector<1x128xf32> to vector<32x128xf32>
    %525 = arith.mulf %523, %524 : vector<32x128xf32>
    %526 = arith.truncf %525 : vector<32x128xf32> to vector<32x128xbf16>
    %c124_i32_276 = arith.constant 124 : i32
    %527 = tpu.dynamic_rotate %497 by %c124_i32_276 dim 1 : vector<32x128xf32>, i32 -> vector<32x128xf32>
    %528 = vector.broadcast %15 : vector<1x128xf32> to vector<32x128xf32>
    %529 = arith.mulf %527, %528 : vector<32x128xf32>
    %530 = arith.truncf %529 : vector<32x128xf32> to vector<32x128xbf16>
    %c123_i32_277 = arith.constant 123 : i32
    %531 = tpu.dynamic_rotate %497 by %c123_i32_277 dim 1 : vector<32x128xf32>, i32 -> vector<32x128xf32>
    %532 = vector.broadcast %17 : vector<1x128xf32> to vector<32x128xf32>
    %533 = arith.mulf %531, %532 : vector<32x128xf32>
    %534 = arith.truncf %533 : vector<32x128xf32> to vector<32x128xbf16>
    %535 = tpu.concatenate %503, %507, %511, %515, %518, %522, %526, %530, %534 in 0 : vector<32x128xbf16>, vector<32x128xbf16>, vector<32x128xbf16>, vector<32x128xbf16>, vector<32x128xbf16>, vector<32x128xbf16>, vector<32x128xbf16>, vector<32x128xbf16>, vector<32x128xbf16> -> vector<288x128xbf16>
    %cst_278 = arith.constant dense<0.000000e+00> : vector<32x128xf32>
    %536 = tpu.matmul %498, %535, %cst_278 {dimension_numbers = #tpu.dot_dimension_numbers<[1], [0], [0], [1], [0, 0, 1, 1], [], []>} : vector<32x288xbf16>, vector<288x128xbf16>, vector<32x128xf32> -> vector<32x128xf32>
    %537 = vector.broadcast %499 : vector<32x1xf32> to vector<32x128xf32>
    %538 = arith.addf %536, %537 : vector<32x128xf32>
    %c0_279 = arith.constant 0 : index
    %c0_280 = arith.constant 0 : index
    %539 = vector.load %arg10[%c0_279, %c0_280] : memref<32x1xf32, #tpu.memory_space<vmem>>, vector<32x1xf32>
    %c0_281 = arith.constant 0 : index
    %c0_282 = arith.constant 0 : index
    %540 = vector.load %arg11[%c0_281, %c0_282] : memref<32x1xf32, #tpu.memory_space<vmem>>, vector<32x1xf32>
    %541 = vector.broadcast %9 : vector<1x128xf32> to vector<32x128xf32>
    %542 = arith.mulf %538, %541 : vector<32x128xf32>
    %cst_283 = arith.constant dense<0.000000e+00> : vector<32xf32>
    %543 = vector.multi_reduction <add>, %542, %cst_283 [1] : vector<32x128xf32> to vector<32xf32>
    %544 = vector.shape_cast %543 : vector<32xf32> to vector<32x1xf32>
    %cst_284 = arith.constant 3.125000e-02 : f32
    %545 = vector.broadcast %cst_284 : f32 to vector<32x1xf32>
    %546 = arith.mulf %544, %545 : vector<32x1xf32>
    %547 = vector.broadcast %546 : vector<32x1xf32> to vector<32x128xf32>
    %548 = arith.subf %538, %547 : vector<32x128xf32>
    %549 = vector.broadcast %9 : vector<1x128xf32> to vector<32x128xf32>
    %550 = arith.mulf %548, %549 : vector<32x128xf32>
    %551 = arith.mulf %550, %550 : vector<32x128xf32>
    %cst_285 = arith.constant dense<0.000000e+00> : vector<32xf32>
    %552 = vector.multi_reduction <add>, %551, %cst_285 [1] : vector<32x128xf32> to vector<32xf32>
    %553 = vector.shape_cast %552 : vector<32xf32> to vector<32x1xf32>
    %cst_286 = arith.constant 3.125000e-02 : f32
    %554 = vector.broadcast %cst_286 : f32 to vector<32x1xf32>
    %555 = arith.mulf %553, %554 : vector<32x1xf32>
    %556 = vector.broadcast %546 : vector<32x1xf32> to vector<32x128xf32>
    %557 = arith.subf %538, %556 : vector<32x128xf32>
    %cst_287 = arith.constant 9.99999974E-6 : f32
    %558 = vector.broadcast %cst_287 : f32 to vector<32x1xf32>
    %559 = arith.addf %555, %558 : vector<32x1xf32>
    %560 = math.rsqrt %559 : vector<32x1xf32>
    %561 = vector.broadcast %560 : vector<32x1xf32> to vector<32x128xf32>
    %562 = arith.mulf %557, %561 : vector<32x128xf32>
    %563 = vector.broadcast %539 : vector<32x1xf32> to vector<32x128xf32>
    %564 = arith.mulf %562, %563 : vector<32x128xf32>
    %565 = vector.broadcast %540 : vector<32x1xf32> to vector<32x128xf32>
    %566 = arith.addf %564, %565 : vector<32x128xf32>
    %cst_288 = arith.constant 0.000000e+00 : f32
    %567 = vector.broadcast %cst_288 : f32 to vector<32x128xf32>
    %568 = arith.cmpf ogt, %566, %567 : vector<32x128xf32>
    %cst_289 = arith.constant 2.000000e-01 : f32
    %569 = vector.broadcast %cst_289 : f32 to vector<32x128xf32>
    %570 = arith.mulf %569, %566 : vector<32x128xf32>
    %571 = arith.select %568, %566, %570 : vector<32x128xi1>, vector<32x128xf32>
    %c0_290 = arith.constant 0 : index
    %c0_291 = arith.constant 0 : index
    %572 = vector.load %arg12[%c0_290, %c0_291] : memref<32x288xbf16, #tpu.memory_space<vmem>>, vector<32x288xbf16>
    %c0_292 = arith.constant 0 : index
    %c0_293 = arith.constant 0 : index
    %573 = vector.load %arg13[%c0_292, %c0_293] : memref<32x1xf32, #tpu.memory_space<vmem>>, vector<32x1xf32>
    %c5_i32_294 = arith.constant 5 : i32
    %574 = tpu.dynamic_rotate %571 by %c5_i32_294 dim 1 : vector<32x128xf32>, i32 -> vector<32x128xf32>
    %575 = vector.broadcast %1 : vector<1x128xf32> to vector<32x128xf32>
    %576 = arith.mulf %574, %575 : vector<32x128xf32>
    %577 = arith.truncf %576 : vector<32x128xf32> to vector<32x128xbf16>
    %c4_i32_295 = arith.constant 4 : i32
    %578 = tpu.dynamic_rotate %571 by %c4_i32_295 dim 1 : vector<32x128xf32>, i32 -> vector<32x128xf32>
    %579 = vector.broadcast %3 : vector<1x128xf32> to vector<32x128xf32>
    %580 = arith.mulf %578, %579 : vector<32x128xf32>
    %581 = arith.truncf %580 : vector<32x128xf32> to vector<32x128xbf16>
    %c3_i32_296 = arith.constant 3 : i32
    %582 = tpu.dynamic_rotate %571 by %c3_i32_296 dim 1 : vector<32x128xf32>, i32 -> vector<32x128xf32>
    %583 = vector.broadcast %5 : vector<1x128xf32> to vector<32x128xf32>
    %584 = arith.mulf %582, %583 : vector<32x128xf32>
    %585 = arith.truncf %584 : vector<32x128xf32> to vector<32x128xbf16>
    %c1_i32_297 = arith.constant 1 : i32
    %586 = tpu.dynamic_rotate %571 by %c1_i32_297 dim 1 : vector<32x128xf32>, i32 -> vector<32x128xf32>
    %587 = vector.broadcast %7 : vector<1x128xf32> to vector<32x128xf32>
    %588 = arith.mulf %586, %587 : vector<32x128xf32>
    %589 = arith.truncf %588 : vector<32x128xf32> to vector<32x128xbf16>
    %590 = vector.broadcast %9 : vector<1x128xf32> to vector<32x128xf32>
    %591 = arith.mulf %571, %590 : vector<32x128xf32>
    %592 = arith.truncf %591 : vector<32x128xf32> to vector<32x128xbf16>
    %c127_i32_298 = arith.constant 127 : i32
    %593 = tpu.dynamic_rotate %571 by %c127_i32_298 dim 1 : vector<32x128xf32>, i32 -> vector<32x128xf32>
    %594 = vector.broadcast %11 : vector<1x128xf32> to vector<32x128xf32>
    %595 = arith.mulf %593, %594 : vector<32x128xf32>
    %596 = arith.truncf %595 : vector<32x128xf32> to vector<32x128xbf16>
    %c125_i32_299 = arith.constant 125 : i32
    %597 = tpu.dynamic_rotate %571 by %c125_i32_299 dim 1 : vector<32x128xf32>, i32 -> vector<32x128xf32>
    %598 = vector.broadcast %13 : vector<1x128xf32> to vector<32x128xf32>
    %599 = arith.mulf %597, %598 : vector<32x128xf32>
    %600 = arith.truncf %599 : vector<32x128xf32> to vector<32x128xbf16>
    %c124_i32_300 = arith.constant 124 : i32
    %601 = tpu.dynamic_rotate %571 by %c124_i32_300 dim 1 : vector<32x128xf32>, i32 -> vector<32x128xf32>
    %602 = vector.broadcast %15 : vector<1x128xf32> to vector<32x128xf32>
    %603 = arith.mulf %601, %602 : vector<32x128xf32>
    %604 = arith.truncf %603 : vector<32x128xf32> to vector<32x128xbf16>
    %c123_i32_301 = arith.constant 123 : i32
    %605 = tpu.dynamic_rotate %571 by %c123_i32_301 dim 1 : vector<32x128xf32>, i32 -> vector<32x128xf32>
    %606 = vector.broadcast %17 : vector<1x128xf32> to vector<32x128xf32>
    %607 = arith.mulf %605, %606 : vector<32x128xf32>
    %608 = arith.truncf %607 : vector<32x128xf32> to vector<32x128xbf16>
    %609 = tpu.concatenate %577, %581, %585, %589, %592, %596, %600, %604, %608 in 0 : vector<32x128xbf16>, vector<32x128xbf16>, vector<32x128xbf16>, vector<32x128xbf16>, vector<32x128xbf16>, vector<32x128xbf16>, vector<32x128xbf16>, vector<32x128xbf16>, vector<32x128xbf16> -> vector<288x128xbf16>
    %cst_302 = arith.constant dense<0.000000e+00> : vector<32x128xf32>
    %610 = tpu.matmul %572, %609, %cst_302 {dimension_numbers = #tpu.dot_dimension_numbers<[1], [0], [0], [1], [0, 0, 1, 1], [], []>} : vector<32x288xbf16>, vector<288x128xbf16>, vector<32x128xf32> -> vector<32x128xf32>
    %611 = vector.broadcast %573 : vector<32x1xf32> to vector<32x128xf32>
    %612 = arith.addf %610, %611 : vector<32x128xf32>
    %c0_303 = arith.constant 0 : index
    %c0_304 = arith.constant 0 : index
    %613 = vector.load %arg14[%c0_303, %c0_304] : memref<32x1xf32, #tpu.memory_space<vmem>>, vector<32x1xf32>
    %c0_305 = arith.constant 0 : index
    %c0_306 = arith.constant 0 : index
    %614 = vector.load %arg15[%c0_305, %c0_306] : memref<32x1xf32, #tpu.memory_space<vmem>>, vector<32x1xf32>
    %615 = vector.broadcast %9 : vector<1x128xf32> to vector<32x128xf32>
    %616 = arith.mulf %612, %615 : vector<32x128xf32>
    %cst_307 = arith.constant dense<0.000000e+00> : vector<32xf32>
    %617 = vector.multi_reduction <add>, %616, %cst_307 [1] : vector<32x128xf32> to vector<32xf32>
    %618 = vector.shape_cast %617 : vector<32xf32> to vector<32x1xf32>
    %cst_308 = arith.constant 3.125000e-02 : f32
    %619 = vector.broadcast %cst_308 : f32 to vector<32x1xf32>
    %620 = arith.mulf %618, %619 : vector<32x1xf32>
    %621 = vector.broadcast %620 : vector<32x1xf32> to vector<32x128xf32>
    %622 = arith.subf %612, %621 : vector<32x128xf32>
    %623 = vector.broadcast %9 : vector<1x128xf32> to vector<32x128xf32>
    %624 = arith.mulf %622, %623 : vector<32x128xf32>
    %625 = arith.mulf %624, %624 : vector<32x128xf32>
    %cst_309 = arith.constant dense<0.000000e+00> : vector<32xf32>
    %626 = vector.multi_reduction <add>, %625, %cst_309 [1] : vector<32x128xf32> to vector<32xf32>
    %627 = vector.shape_cast %626 : vector<32xf32> to vector<32x1xf32>
    %cst_310 = arith.constant 3.125000e-02 : f32
    %628 = vector.broadcast %cst_310 : f32 to vector<32x1xf32>
    %629 = arith.mulf %627, %628 : vector<32x1xf32>
    %630 = vector.broadcast %620 : vector<32x1xf32> to vector<32x128xf32>
    %631 = arith.subf %612, %630 : vector<32x128xf32>
    %cst_311 = arith.constant 9.99999974E-6 : f32
    %632 = vector.broadcast %cst_311 : f32 to vector<32x1xf32>
    %633 = arith.addf %629, %632 : vector<32x1xf32>
    %634 = math.rsqrt %633 : vector<32x1xf32>
    %635 = vector.broadcast %634 : vector<32x1xf32> to vector<32x128xf32>
    %636 = arith.mulf %631, %635 : vector<32x128xf32>
    %637 = vector.broadcast %613 : vector<32x1xf32> to vector<32x128xf32>
    %638 = arith.mulf %636, %637 : vector<32x128xf32>
    %639 = vector.broadcast %614 : vector<32x1xf32> to vector<32x128xf32>
    %640 = arith.addf %638, %639 : vector<32x128xf32>
    %cst_312 = arith.constant 0.000000e+00 : f32
    %641 = vector.broadcast %cst_312 : f32 to vector<32x128xf32>
    %642 = arith.cmpf ogt, %640, %641 : vector<32x128xf32>
    %cst_313 = arith.constant 2.000000e-01 : f32
    %643 = vector.broadcast %cst_313 : f32 to vector<32x128xf32>
    %644 = arith.mulf %643, %640 : vector<32x128xf32>
    %645 = arith.select %642, %640, %644 : vector<32x128xi1>, vector<32x128xf32>
    %c0_314 = arith.constant 0 : index
    %c0_315 = arith.constant 0 : index
    %646 = vector.load %arg16[%c0_314, %c0_315] : memref<3x288xbf16, #tpu.memory_space<vmem>>, vector<3x288xbf16>
    %c0_316 = arith.constant 0 : index
    %c0_317 = arith.constant 0 : index
    %647 = vector.load %arg17[%c0_316, %c0_317] : memref<3x1xf32, #tpu.memory_space<vmem>>, vector<3x1xf32>
    %c5_i32_318 = arith.constant 5 : i32
    %648 = tpu.dynamic_rotate %645 by %c5_i32_318 dim 1 : vector<32x128xf32>, i32 -> vector<32x128xf32>
    %649 = vector.broadcast %1 : vector<1x128xf32> to vector<32x128xf32>
    %650 = arith.mulf %648, %649 : vector<32x128xf32>
    %651 = arith.truncf %650 : vector<32x128xf32> to vector<32x128xbf16>
    %c4_i32_319 = arith.constant 4 : i32
    %652 = tpu.dynamic_rotate %645 by %c4_i32_319 dim 1 : vector<32x128xf32>, i32 -> vector<32x128xf32>
    %653 = vector.broadcast %3 : vector<1x128xf32> to vector<32x128xf32>
    %654 = arith.mulf %652, %653 : vector<32x128xf32>
    %655 = arith.truncf %654 : vector<32x128xf32> to vector<32x128xbf16>
    %c3_i32_320 = arith.constant 3 : i32
    %656 = tpu.dynamic_rotate %645 by %c3_i32_320 dim 1 : vector<32x128xf32>, i32 -> vector<32x128xf32>
    %657 = vector.broadcast %5 : vector<1x128xf32> to vector<32x128xf32>
    %658 = arith.mulf %656, %657 : vector<32x128xf32>
    %659 = arith.truncf %658 : vector<32x128xf32> to vector<32x128xbf16>
    %c1_i32_321 = arith.constant 1 : i32
    %660 = tpu.dynamic_rotate %645 by %c1_i32_321 dim 1 : vector<32x128xf32>, i32 -> vector<32x128xf32>
    %661 = vector.broadcast %7 : vector<1x128xf32> to vector<32x128xf32>
    %662 = arith.mulf %660, %661 : vector<32x128xf32>
    %663 = arith.truncf %662 : vector<32x128xf32> to vector<32x128xbf16>
    %664 = vector.broadcast %9 : vector<1x128xf32> to vector<32x128xf32>
    %665 = arith.mulf %645, %664 : vector<32x128xf32>
    %666 = arith.truncf %665 : vector<32x128xf32> to vector<32x128xbf16>
    %c127_i32_322 = arith.constant 127 : i32
    %667 = tpu.dynamic_rotate %645 by %c127_i32_322 dim 1 : vector<32x128xf32>, i32 -> vector<32x128xf32>
    %668 = vector.broadcast %11 : vector<1x128xf32> to vector<32x128xf32>
    %669 = arith.mulf %667, %668 : vector<32x128xf32>
    %670 = arith.truncf %669 : vector<32x128xf32> to vector<32x128xbf16>
    %c125_i32_323 = arith.constant 125 : i32
    %671 = tpu.dynamic_rotate %645 by %c125_i32_323 dim 1 : vector<32x128xf32>, i32 -> vector<32x128xf32>
    %672 = vector.broadcast %13 : vector<1x128xf32> to vector<32x128xf32>
    %673 = arith.mulf %671, %672 : vector<32x128xf32>
    %674 = arith.truncf %673 : vector<32x128xf32> to vector<32x128xbf16>
    %c124_i32_324 = arith.constant 124 : i32
    %675 = tpu.dynamic_rotate %645 by %c124_i32_324 dim 1 : vector<32x128xf32>, i32 -> vector<32x128xf32>
    %676 = vector.broadcast %15 : vector<1x128xf32> to vector<32x128xf32>
    %677 = arith.mulf %675, %676 : vector<32x128xf32>
    %678 = arith.truncf %677 : vector<32x128xf32> to vector<32x128xbf16>
    %c123_i32_325 = arith.constant 123 : i32
    %679 = tpu.dynamic_rotate %645 by %c123_i32_325 dim 1 : vector<32x128xf32>, i32 -> vector<32x128xf32>
    %680 = vector.broadcast %17 : vector<1x128xf32> to vector<32x128xf32>
    %681 = arith.mulf %679, %680 : vector<32x128xf32>
    %682 = arith.truncf %681 : vector<32x128xf32> to vector<32x128xbf16>
    %683 = tpu.concatenate %651, %655, %659, %663, %666, %670, %674, %678, %682 in 0 : vector<32x128xbf16>, vector<32x128xbf16>, vector<32x128xbf16>, vector<32x128xbf16>, vector<32x128xbf16>, vector<32x128xbf16>, vector<32x128xbf16>, vector<32x128xbf16>, vector<32x128xbf16> -> vector<288x128xbf16>
    %cst_326 = arith.constant dense<0.000000e+00> : vector<3x128xf32>
    %684 = tpu.matmul %646, %683, %cst_326 {dimension_numbers = #tpu.dot_dimension_numbers<[1], [0], [0], [1], [0, 0, 1, 1], [], []>} : vector<3x288xbf16>, vector<288x128xbf16>, vector<3x128xf32> -> vector<3x128xf32>
    %685 = vector.broadcast %647 : vector<3x1xf32> to vector<3x128xf32>
    %686 = arith.addf %684, %685 : vector<3x128xf32>
    %687 = math.tanh %686 : vector<3x128xf32>
    %c0_327 = arith.constant 0 : index
    %c0_328 = arith.constant 0 : index
    %688 = vector.load %arg18[%c0_327, %c0_328] : memref<3x128xf32, #tpu.memory_space<vmem>>, vector<3x128xf32>
    tpu.vector_store %arg18[%c0_327, %c0_328], %687 {strides = array<i32>} : memref<3x128xf32, #tpu.memory_space<vmem>>, vector<3x128xf32>,
    return
  }
}

</mosaic_0001>

<llo_original>
// kernel: down_generator_forward.1
$region0: #{down_generator_forward.1}
  #allocation0 [shape = 'u32[]', space=smem, size = 0x4, offset = 0x4, fixed_abs, tag = 'smem constant byte address 0x4 - core index']
  #allocation1 [shape = 'u32[144,128]{1,0:T(1,128)}', space=vmem, size = 0x12000, scoped, tag = 'internal scratch']
  %s0 = inlined_call_operand.vmem [shape: f32[48,128], index: 0, kind: input, shape index: {}]
  %s1 = inlined_call_operand.vmem [shape: f32[9,1,128], index: 1, kind: input, shape index: {}]
  %s2 = inlined_call_operand.vmem [shape: bf16[9,3,3], index: 2, kind: input, shape index: {}]
  %s3 = inlined_call_operand.vmem [shape: f32[3,1], index: 3, kind: input, shape index: {}]
  %s4 = inlined_call_operand.vmem [shape: bf16[9,32,3], index: 4, kind: input, shape index: {}]
  %s5 = inlined_call_operand.vmem [shape: f32[32,1], index: 5, kind: input, shape index: {}]
  %s6 = inlined_call_operand.vmem [shape: f32[32,1], index: 6, kind: input, shape index: {}]
  %s7 = inlined_call_operand.vmem [shape: f32[32,1], index: 7, kind: input, shape index: {}]
  %s8 = inlined_call_operand.vmem [shape: bf16[32,288], index: 8, kind: input, shape index: {}]
  %s9 = inlined_call_operand.vmem [shape: f32[32,1], index: 9, kind: input, shape index: {}]
  %s10 = inlined_call_operand.vmem [shape: f32[32,1], index: 10, kind: input, shape index: {}]
  %s11 = inlined_call_operand.vmem [shape: f32[32,1], index: 11, kind: input, shape index: {}]
  %s12 = inlined_call_operand.vmem [shape: bf16[32,288], index: 12, kind: input, shape index: {}]
  %s13 = inlined_call_operand.vmem [shape: f32[32,1], index: 13, kind: input, shape index: {}]
  %s14 = inlined_call_operand.vmem [shape: f32[32,1], index: 14, kind: input, shape index: {}]
  %s15 = inlined_call_operand.vmem [shape: f32[32,1], index: 15, kind: input, shape index: {}]
  %s16 = inlined_call_operand.vmem [shape: bf16[3,288], index: 16, kind: input, shape index: {}]
  %s17 = inlined_call_operand.vmem [shape: f32[3,1], index: 17, kind: input, shape index: {}]
  %s18 = inlined_call_operand.vmem [shape: f32[3,128], index: 18, kind: output, shape index: {}]
  %s19 = sld [smem:[#allocation0]]
  $region82: #{down_generator_forward.1} parent=0
    _
  %s21 = ssub.s32 1, %s19
  %s22 = scalar_select 0, %s21, %s19
  // Predicated region
  $region2: #{down_generator_forward.1} parent=0 // pred_check
    _
  $region3: #{down_generator_forward.1} parent=0 // pred_check_branch
    %24 = sbr.rel (0) target = $region5
  $region4: #{down_generator_forward.1} parent=0 // pred_region
    _
  $region5: #{down_generator_forward.1} parent=0 // pred_fallthru
    _
  // Predicated region
  $region6: #{down_generator_forward.1} parent=0 // pred_check
    _
  $region7: #{down_generator_forward.1} parent=0 // pred_check_branch
    %26 = sbr.rel (0) target = $region9
  $region8: #{down_generator_forward.1} parent=0 // pred_region
    _
  $region9: #{down_generator_forward.1} parent=0 // pred_fallthru
    _
  // Predicated region
  $region10: #{down_generator_forward.1} parent=0 // pred_check
    _
  $region11: #{down_generator_forward.1} parent=0 // pred_check_branch
    %28 = sbr.rel (0) target = $region13
  $region12: #{down_generator_forward.1} parent=0 // pred_region
    _
  $region13: #{down_generator_forward.1} parent=0 // pred_fallthru
    _
  // Predicated region
  $region14: #{down_generator_forward.1} parent=0 // pred_check
    _
  $region15: #{down_generator_forward.1} parent=0 // pred_check_branch
    %30 = sbr.rel (0) target = $region17
  $region16: #{down_generator_forward.1} parent=0 // pred_region
    _
  $region17: #{down_generator_forward.1} parent=0 // pred_fallthru
    _
  // Predicated region
  $region18: #{down_generator_forward.1} parent=0 // pred_check
    _
  $region19: #{down_generator_forward.1} parent=0 // pred_check_branch
    %32 = sbr.rel (0) target = $region21
  $region20: #{down_generator_forward.1} parent=0 // pred_region
    _
  $region21: #{down_generator_forward.1} parent=0 // pred_fallthru
    _
  // Predicated region
  $region22: #{down_generator_forward.1} parent=0 // pred_check
    _
  $region23: #{down_generator_forward.1} parent=0 // pred_check_branch
    %34 = sbr.rel (0) target = $region25
  $region24: #{down_generator_forward.1} parent=0 // pred_region
    _
  $region25: #{down_generator_forward.1} parent=0 // pred_fallthru
    _
  // Predicated region
  $region26: #{down_generator_forward.1} parent=0 // pred_check
    _
  $region27: #{down_generator_forward.1} parent=0 // pred_check_branch
    %36 = sbr.rel (0) target = $region29
  $region28: #{down_generator_forward.1} parent=0 // pred_region
    _
  $region29: #{down_generator_forward.1} parent=0 // pred_fallthru
    _
  // Predicated region
  $region30: #{down_generator_forward.1} parent=0 // pred_check
    _
  $region31: #{down_generator_forward.1} parent=0 // pred_check_branch
    %38 = sbr.rel (0) target = $region33
  $region32: #{down_generator_forward.1} parent=0 // pred_region
    _
  $region33: #{down_generator_forward.1} parent=0 // pred_fallthru
    _
  // Predicated region
  $region34: #{down_generator_forward.1} parent=0 // pred_check
    _
  $region35: #{down_generator_forward.1} parent=0 // pred_check_branch
    %40 = sbr.rel (0) target = $region37
  $region36: #{down_generator_forward.1} parent=0 // pred_region
    _
  $region37: #{down_generator_forward.1} parent=0 // pred_fallthru
    _
  // Predicated region
  $region38: #{down_generator_forward.1} parent=0 // pred_check
    _
  $region39: #{down_generator_forward.1} parent=0 // pred_check_branch
    %42 = sbr.rel (0) target = $region41
  $region40: #{down_generator_forward.1} parent=0 // pred_region
    _
  $region41: #{down_generator_forward.1} parent=0 // pred_fallthru
    _
  // Predicated region
  $region42: #{down_generator_forward.1} parent=0 // pred_check
    _
  $region43: #{down_generator_forward.1} parent=0 // pred_check_branch
    %44 = sbr.rel (0) target = $region45
  $region44: #{down_generator_forward.1} parent=0 // pred_region
    _
  $region45: #{down_generator_forward.1} parent=0 // pred_fallthru
    _
  // Predicated region
  $region46: #{down_generator_forward.1} parent=0 // pred_check
    _
  $region47: #{down_generator_forward.1} parent=0 // pred_check_branch
    %46 = sbr.rel (0) target = $region49
  $region48: #{down_generator_forward.1} parent=0 // pred_region
    _
  $region49: #{down_generator_forward.1} parent=0 // pred_fallthru
    _
  // Predicated region
  $region50: #{down_generator_forward.1} parent=0 // pred_check
    _
  $region51: #{down_generator_forward.1} parent=0 // pred_check_branch
    %48 = sbr.rel (0) target = $region53
  $region52: #{down_generator_forward.1} parent=0 // pred_region
    _
  $region53: #{down_generator_forward.1} parent=0 // pred_fallthru
    _
  // Predicated region
  $region54: #{down_generator_forward.1} parent=0 // pred_check
    _
  $region55: #{down_generator_forward.1} parent=0 // pred_check_branch
    %50 = sbr.rel (0) target = $region57
  $region56: #{down_generator_forward.1} parent=0 // pred_region
    _
  $region57: #{down_generator_forward.1} parent=0 // pred_fallthru
    _
  // Predicated region
  $region58: #{down_generator_forward.1} parent=0 // pred_check
    _
  $region59: #{down_generator_forward.1} parent=0 // pred_check_branch
    %52 = sbr.rel (0) target = $region61
  $region60: #{down_generator_forward.1} parent=0 // pred_region
    _
  $region61: #{down_generator_forward.1} parent=0 // pred_fallthru
    _
  // Predicated region
  $region62: #{down_generator_forward.1} parent=0 // pred_check
    _
  $region63: #{down_generator_forward.1} parent=0 // pred_check_branch
    %54 = sbr.rel (0) target = $region65
  $region64: #{down_generator_forward.1} parent=0 // pred_region
    _
  $region65: #{down_generator_forward.1} parent=0 // pred_fallthru
    _
  // Predicated region
  $region66: #{down_generator_forward.1} parent=0 // pred_check
    _
  $region67: #{down_generator_forward.1} parent=0 // pred_check_branch
    %56 = sbr.rel (0) target = $region69
  $region68: #{down_generator_forward.1} parent=0 // pred_region
    _
  $region69: #{down_generator_forward.1} parent=0 // pred_fallthru
    _
  // Predicated region
  $region70: #{down_generator_forward.1} parent=0 // pred_check
    _
  $region71: #{down_generator_forward.1} parent=0 // pred_check_branch
    %58 = sbr.rel (0) target = $region73
  $region72: #{down_generator_forward.1} parent=0 // pred_region
    _
  $region73: #{down_generator_forward.1} parent=0 // pred_fallthru
    _
  %v60 = vld [vmem:[%s1] sm:$0x1]
  %s61 = scalar_lea.vmem %s1, 1
  %v62 = vld [vmem:[%s61] sm:$0x1]
  %s63 = scalar_lea.vmem %s1, 2
  %v64 = vld [vmem:[%s63] sm:$0x1]
  %s65 = scalar_lea.vmem %s1, 3
  %v66 = vld [vmem:[%s65] sm:$0x1]
  %s67 = scalar_lea.vmem %s1, 4
  %v68 = vld [vmem:[%s67] sm:$0x1]
  %s69 = scalar_lea.vmem %s1, 5
  %v70 = vld [vmem:[%s69] sm:$0x1]
  %s71 = scalar_lea.vmem %s1, 6
  %v72 = vld [vmem:[%s71] sm:$0x1]
  %s73 = scalar_lea.vmem %s1, 7
  %v74 = vld [vmem:[%s73] sm:$0x1]
  %s75 = scalar_lea.vmem %s1, 8
  %v76 = vld [vmem:[%s75] sm:$0x1]
  %v77 = vld [vmem:[%s0] sm:$0xff]
  %v78 = vld [vmem:[%s0 + $0x8] sm:$0xff]
  %v79 = vld [vmem:[%s0 + $0x10] sm:$0xff]
  %v80 = vld [vmem:[%s0 + $0x18] sm:$0xff]
  %v81 = vld [vmem:[%s0 + $0x20] sm:$0xff]
  %v82 = vld [vmem:[%s0 + $0x28] sm:$0xff]
  %v83 = vld [vmem:[%s3] sm:$0x7]
  %v85 = vrot.slane %v82, 5
  %87 = vrot.lane.b32.xlu0 %v85, 5
  %v88 = vpop.permute.xlu0 %87
  %v90 = vlaneseq
  %v91 = vshrl.u32 %v90, 7
  %v92 = vsub.s32 0, %v91
  %v93 = vrot.slane %v60, %v92
  %v95 = vmul.f32 %v88, %v93
  %v96 = vpack.c.bf16 %v95, %v95
  %v97 = vld [vmem:[%s2] sm:$0x3]
  %v99 = vrot.slane %v81, 4
  %101 = vrot.lane.b32.xlu0 %v99, 4
  %v102 = vpop.permute.xlu0 %101
  %v104 = vlaneseq
  %v105 = vshrl.u32 %v104, 7
  %v106 = vsub.s32 0, %v105
  %v107 = vrot.slane %v62, %v106
  %v109 = vmul.f32 %v102, %v107
  %v110 = vpack.c.bf16 %v109, %v109
  %s111 = scalar_lea.vmem %s2, 2
  %v112 = vld [vmem:[%s111] sm:$0x3]
  %vm113 = vcmask 23552
  %v115 = vsel %vm113, %v112, 0
  %vm117 = vcmask 1040384
  %vm118 = vcmask 1041408
  %v119 = vsel %vm117, 4294967295, 65535
  %v120 = vsel %vm118, %v119, 0
  %v122 = vand.u32 %v110, %v120
  %124 = vmatprep.subr.bf16.mxu0 0
  %125 = vmatpush1.bf16.msra.mxu0 %v122
  %126 = vmatprep.subr.bf16.mxu0 0
  %127 = vmatpush1.bf16.msra.mxu0 0
  %128 = vmatprep.subr.bf16.mxu0 0
  %129 = vmatpush1.bf16.msra.mxu0 0
  %130 = vmatprep.subr.bf16.mxu0 0
  %131 = vmatpush1.bf16.msra.mxu0 0
  %132 = vmatprep.subr.bf16.mxu0 0
  %133 = vmatpush1.bf16.msra.mxu0 0
  %134 = vmatprep.subr.bf16.mxu0 0
  %135 = vmatpush1.bf16.msra.mxu0 0
  %136 = vmatprep.subr.bf16.mxu0 0
  %137 = vmatpush1.bf16.msra.mxu0 0
  %138 = vmatprep.subr.bf16.mxu0 0
  %139 = vmatpush1.bf16.msra.mxu0 0
  %140 = vmatprep.subr.bf16.mxu0 0
  %141 = vmatpush1.bf16.msra.mxu0 0
  %142 = vmatprep.subr.bf16.mxu0 0
  %143 = vmatpush1.bf16.msra.mxu0 0
  %144 = vmatprep.subr.bf16.mxu0 0
  %145 = vmatpush1.bf16.msra.mxu0 0
  %146 = vmatprep.subr.bf16.mxu0 0
  %147 = vmatpush1.bf16.msra.mxu0 0
  %148 = vmatprep.subr.bf16.mxu0 0
  %149 = vmatpush1.bf16.msra.mxu0 0
  %150 = vmatprep.subr.bf16.mxu0 0
  %151 = vmatpush1.bf16.msra.mxu0 0
  %152 = vmatprep.subr.bf16.mxu0 0
  %153 = vmatpush1.bf16.msra.mxu0 0
  %154 = vmatprep.subr.bf16.mxu0 0
  %155 = vmatpush1.bf16.msra.mxu0 0
  %156 = vmatprep.mubr.bf16.mxu0 0
  %157 = vmatmul.mubr.bf16.gmra.mrb[0].mxu0 %v115
  %v158 = vpop.f32.mrb[0].mxu0
  %v159 = vadd.f32 0.0, %v158
  %v160 = vpop.f32.mrb[0].mxu0
  %v161 = vpop.f32.mrb[0].mxu0
  %v162 = vpop.f32.mrb[0].mxu0
  %163 = vdwg.mxu0
  %v165 = vsel %vm113, %v97, 0
  %v168 = vand.u32 %v96, %v120
  %170 = vmatprep.subr.bf16.mxu0 0
  %171 = vmatpush1.bf16.msra.mxu0 %v168
  %172 = vmatprep.subr.bf16.mxu0 0
  %173 = vmatpush1.bf16.msra.mxu0 0
  %174 = vmatprep.subr.bf16.mxu0 0
  %175 = vmatpush1.bf16.msra.mxu0 0
  %176 = vmatprep.subr.bf16.mxu0 0
  %177 = vmatpush1.bf16.msra.mxu0 0
  %178 = vmatprep.subr.bf16.mxu0 0
  %179 = vmatpush1.bf16.msra.mxu0 0
  %180 = vmatprep.subr.bf16.mxu0 0
  %181 = vmatpush1.bf16.msra.mxu0 0
  %182 = vmatprep.subr.bf16.mxu0 0
  %183 = vmatpush1.bf16.msra.mxu0 0
  %184 = vmatprep.subr.bf16.mxu0 0
  %185 = vmatpush1.bf16.msra.mxu0 0
  %186 = vmatprep.subr.bf16.mxu0 0
  %187 = vmatpush1.bf16.msra.mxu0 0
  %188 = vmatprep.subr.bf16.mxu0 0
  %189 = vmatpush1.bf16.msra.mxu0 0
  %190 = vmatprep.subr.bf16.mxu0 0
  %191 = vmatpush1.bf16.msra.mxu0 0
  %192 = vmatprep.subr.bf16.mxu0 0
  %193 = vmatpush1.bf16.msra.mxu0 0
  %194 = vmatprep.subr.bf16.mxu0 0
  %195 = vmatpush1.bf16.msra.mxu0 0
  %196 = vmatprep.subr.bf16.mxu0 0
  %197 = vmatpush1.bf16.msra.mxu0 0
  %198 = vmatprep.subr.bf16.mxu0 0
  %199 = vmatpush1.bf16.msra.mxu0 0
  %200 = vmatprep.subr.bf16.mxu0 0
  %201 = vmatpush1.bf16.msra.mxu0 0
  %202 = vmatprep.mubr.bf16.mxu0 0
  %203 = vmatmul.mubr.bf16.gmra.mrb[0].mxu0 %v165
  %v204 = vpop.f32.mrb[0].mxu0
  %v205 = vadd.f32 %v159, %v204
  %v206 = vpop.f32.mrb[0].mxu0
  %v207 = vpop.f32.mrb[0].mxu0
  %v208 = vpop.f32.mrb[0].mxu0
  %209 = vdwg.mxu0
  %v210 = vrot.slane %v81, 7
  %v211 = vrot.slane %v82, 7
  %v212 = vsel %vm117, %v210, %v211
  %214 = vrot.lane.b32.xlu0 %v212, 4
  %v215 = vpop.permute.xlu0 %214
  %v216 = vmul.f32 %v215, %v107
  %v217 = vpack.c.bf16 %v216, %v216
  %s218 = scalar_lea.vmem %s2, 4
  %v219 = vld [vmem:[%s218] sm:$0x3]
  %v221 = vsel %vm113, %v219, 0
  %v224 = vand.u32 %v217, %v120
  %226 = vmatprep.subr.bf16.mxu0 0
  %227 = vmatpush1.bf16.msra.mxu0 %v224
  %228 = vmatprep.subr.bf16.mxu0 0
  %229 = vmatpush1.bf16.msra.mxu0 0
  %230 = vmatprep.subr.bf16.mxu0 0
  %231 = vmatpush1.bf16.msra.mxu0 0
  %232 = vmatprep.subr.bf16.mxu0 0
  %233 = vmatpush1.bf16.msra.mxu0 0
  %234 = vmatprep.subr.bf16.mxu0 0
  %235 = vmatpush1.bf16.msra.mxu0 0
  %236 = vmatprep.subr.bf16.mxu0 0
  %237 = vmatpush1.bf16.msra.mxu0 0
  %238 = vmatprep.subr.bf16.mxu0 0
  %239 = vmatpush1.bf16.msra.mxu0 0
  %240 = vmatprep.subr.bf16.mxu0 0
  %241 = vmatpush1.bf16.msra.mxu0 0
  %242 = vmatprep.subr.bf16.mxu0 0
  %243 = vmatpush1.bf16.msra.mxu0 0
  %244 = vmatprep.subr.bf16.mxu0 0
  %245 = vmatpush1.bf16.msra.mxu0 0
  %246 = vmatprep.subr.bf16.mxu0 0
  %247 = vmatpush1.bf16.msra.mxu0 0
  %248 = vmatprep.subr.bf16.mxu0 0
  %249 = vmatpush1.bf16.msra.mxu0 0
  %250 = vmatprep.subr.bf16.mxu0 0
  %251 = vmatpush1.bf16.msra.mxu0 0
  %252 = vmatprep.subr.bf16.mxu0 0
  %253 = vmatpush1.bf16.msra.mxu0 0
  %254 = vmatprep.subr.bf16.mxu0 0
  %255 = vmatpush1.bf16.msra.mxu0 0
  %256 = vmatprep.subr.bf16.mxu0 0
  %257 = vmatpush1.bf16.msra.mxu0 0
  %258 = vmatprep.mubr.bf16.mxu0 0
  %259 = vmatmul.mubr.bf16.gmra.mrb[0].mxu0 %v221
  %v260 = vpop.f32.mrb[0].mxu0
  %v261 = vadd.f32 0.0, %v260
  %v262 = vpop.f32.mrb[0].mxu0
  %v263 = vpop.f32.mrb[0].mxu0
  %v264 = vpop.f32.mrb[0].mxu0
  %265 = vdwg.mxu0
  %v266 = vadd.f32 %v205, %v261
  %v268 = vrot.slane %v78, 1
  %270 = vrot.lane.b32.xlu0 %v268, 1
  %v271 = vpop.permute.xlu0 %270
  %v273 = vlaneseq
  %v274 = vshrl.u32 %v273, 7
  %v275 = vsub.s32 0, %v274
  %v276 = vrot.slane %v66, %v275
  %v278 = vmul.f32 %v271, %v276
  %v279 = vpack.c.bf16 %v278, %v278
  %s280 = scalar_lea.vmem %s2, 6
  %v281 = vld [vmem:[%s280] sm:$0x3]
  %v283 = vsel %vm113, %v281, 0
  %v286 = vand.u32 %v279, %v120
  %288 = vmatprep.subr.bf16.mxu0 0
  %289 = vmatpush1.bf16.msra.mxu0 %v286
  %290 = vmatprep.subr.bf16.mxu0 0
  %291 = vmatpush1.bf16.msra.mxu0 0
  %292 = vmatprep.subr.bf16.mxu0 0
  %293 = vmatpush1.bf16.msra.mxu0 0
  %294 = vmatprep.subr.bf16.mxu0 0
  %295 = vmatpush1.bf16.msra.mxu0 0
  %296 = vmatprep.subr.bf16.mxu0 0
  %297 = vmatpush1.bf16.msra.mxu0 0
  %298 = vmatprep.subr.bf16.mxu0 0
  %299 = vmatpush1.bf16.msra.mxu0 0
  %300 = vmatprep.subr.bf16.mxu0 0
  %301 = vmatpush1.bf16.msra.mxu0 0
  %302 = vmatprep.subr.bf16.mxu0 0
  %303 = vmatpush1.bf16.msra.mxu0 0
  %304 = vmatprep.subr.bf16.mxu0 0
  %305 = vmatpush1.bf16.msra.mxu0 0
  %306 = vmatprep.subr.bf16.mxu0 0
  %307 = vmatpush1.bf16.msra.mxu0 0
  %308 = vmatprep.subr.bf16.mxu0 0
  %309 = vmatpush1.bf16.msra.mxu0 0
  %310 = vmatprep.subr.bf16.mxu0 0
  %311 = vmatpush1.bf16.msra.mxu0 0
  %312 = vmatprep.subr.bf16.mxu0 0
  %313 = vmatpush1.bf16.msra.mxu0 0
  %314 = vmatprep.subr.bf16.mxu0 0
  %315 = vmatpush1.bf16.msra.mxu0 0
  %316 = vmatprep.subr.bf16.mxu0 0
  %317 = vmatpush1.bf16.msra.mxu0 0
  %318 = vmatprep.subr.bf16.mxu0 0
  %319 = vmatpush1.bf16.msra.mxu0 0
  %320 = vmatprep.mubr.bf16.mxu0 0
  %321 = vmatmul.mubr.bf16.gmra.mrb[0].mxu0 %v283
  %v322 = vpop.f32.mrb[0].mxu0
  %v323 = vadd.f32 0.0, %v322
  %v324 = vpop.f32.mrb[0].mxu0
  %v325 = vpop.f32.mrb[0].mxu0
  %v326 = vpop.f32.mrb[0].mxu0
  %327 = vdwg.mxu0
  %v328 = vadd.f32 %v266, %v323
  %v330 = vlaneseq
  %v331 = vshrl.u32 %v330, 7
  %v332 = vsub.s32 0, %v331
  %v333 = vrot.slane %v68, %v332
  %v335 = vmul.f32 %v77, %v333
  %v336 = vpack.c.bf16 %v335, %v335
  %s337 = scalar_lea.vmem %s2, 8
  %v338 = vld [vmem:[%s337] sm:$0x3]
  %v340 = vsel %vm113, %v338, 0
  %v343 = vand.u32 %v336, %v120
  %345 = vmatprep.subr.bf16.mxu0 0
  %346 = vmatpush1.bf16.msra.mxu0 %v343
  %347 = vmatprep.subr.bf16.mxu0 0
  %348 = vmatpush1.bf16.msra.mxu0 0
  %349 = vmatprep.subr.bf16.mxu0 0
  %350 = vmatpush1.bf16.msra.mxu0 0
  %351 = vmatprep.subr.bf16.mxu0 0
  %352 = vmatpush1.bf16.msra.mxu0 0
  %353 = vmatprep.subr.bf16.mxu0 0
  %354 = vmatpush1.bf16.msra.mxu0 0
  %355 = vmatprep.subr.bf16.mxu0 0
  %356 = vmatpush1.bf16.msra.mxu0 0
  %357 = vmatprep.subr.bf16.mxu0 0
  %358 = vmatpush1.bf16.msra.mxu0 0
  %359 = vmatprep.subr.bf16.mxu0 0
  %360 = vmatpush1.bf16.msra.mxu0 0
  %361 = vmatprep.subr.bf16.mxu0 0
  %362 = vmatpush1.bf16.msra.mxu0 0
  %363 = vmatprep.subr.bf16.mxu0 0
  %364 = vmatpush1.bf16.msra.mxu0 0
  %365 = vmatprep.subr.bf16.mxu0 0
  %366 = vmatpush1.bf16.msra.mxu0 0
  %367 = vmatprep.subr.bf16.mxu0 0
  %368 = vmatpush1.bf16.msra.mxu0 0
  %369 = vmatprep.subr.bf16.mxu0 0
  %370 = vmatpush1.bf16.msra.mxu0 0
  %371 = vmatprep.subr.bf16.mxu0 0
  %372 = vmatpush1.bf16.msra.mxu0 0
  %373 = vmatprep.subr.bf16.mxu0 0
  %374 = vmatpush1.bf16.msra.mxu0 0
  %375 = vmatprep.subr.bf16.mxu0 0
  %376 = vmatpush1.bf16.msra.mxu0 0
  %377 = vmatprep.mubr.bf16.mxu0 0
  %378 = vmatmul.mubr.bf16.gmra.mrb[0].mxu0 %v340
  %v379 = vpop.f32.mrb[0].mxu0
  %v380 = vadd.f32 0.0, %v379
  %v381 = vpop.f32.mrb[0].mxu0
  %v382 = vpop.f32.mrb[0].mxu0
  %v383 = vpop.f32.mrb[0].mxu0
  %384 = vdwg.mxu0
  %v385 = vadd.f32 %v328, %v380
  %s386 = scalar_lea.vmem %s2, 10
  %v387 = vld [vmem:[%s386] sm:$0x3]
  %v388 = vshrl.u32 %v336, 16
  %v390 = vrot.slane %v388, 1
  %v391 = vshll.u32 %v336, 16
  %v393 = vrot.slane %v391, 2
  %v394 = vor.u32 %v390, %v393
  %v396 = vsel %vm113, %v387, 0
  %v399 = vand.u32 %v394, %v120
  %401 = vmatprep.subr.bf16.mxu0 0
  %402 = vmatpush1.bf16.msra.mxu0 %v399
  %403 = vmatprep.subr.bf16.mxu0 0
  %404 = vmatpush1.bf16.msra.mxu0 0
  %405 = vmatprep.subr.bf16.mxu0 0
  %406 = vmatpush1.bf16.msra.mxu0 0
  %407 = vmatprep.subr.bf16.mxu0 0
  %408 = vmatpush1.bf16.msra.mxu0 0
  %409 = vmatprep.subr.bf16.mxu0 0
  %410 = vmatpush1.bf16.msra.mxu0 0
  %411 = vmatprep.subr.bf16.mxu0 0
  %412 = vmatpush1.bf16.msra.mxu0 0
  %413 = vmatprep.subr.bf16.mxu0 0
  %414 = vmatpush1.bf16.msra.mxu0 0
  %415 = vmatprep.subr.bf16.mxu0 0
  %416 = vmatpush1.bf16.msra.mxu0 0
  %417 = vmatprep.subr.bf16.mxu0 0
  %418 = vmatpush1.bf16.msra.mxu0 0
  %419 = vmatprep.subr.bf16.mxu0 0
  %420 = vmatpush1.bf16.msra.mxu0 0
  %421 = vmatprep.subr.bf16.mxu0 0
  %422 = vmatpush1.bf16.msra.mxu0 0
  %423 = vmatprep.subr.bf16.mxu0 0
  %424 = vmatpush1.bf16.msra.mxu0 0
  %425 = vmatprep.subr.bf16.mxu0 0
  %426 = vmatpush1.bf16.msra.mxu0 0
  %427 = vmatprep.subr.bf16.mxu0 0
  %428 = vmatpush1.bf16.msra.mxu0 0
  %429 = vmatprep.subr.bf16.mxu0 0
  %430 = vmatpush1.bf16.msra.mxu0 0
  %431 = vmatprep.subr.bf16.mxu0 0
  %432 = vmatpush1.bf16.msra.mxu0 0
  %433 = vmatprep.mubr.bf16.mxu0 0
  %434 = vmatmul.mubr.bf16.gmra.mrb[0].mxu0 %v396
  %v435 = vpop.f32.mrb[0].mxu0
  %v436 = vadd.f32 0.0, %v435
  %v437 = vpop.f32.mrb[0].mxu0
  %v438 = vpop.f32.mrb[0].mxu0
  %v439 = vpop.f32.mrb[0].mxu0
  %440 = vdwg.mxu0
  %v441 = vadd.f32 %v385, %v436
  %v443 = vrot.slane %v79, 5
  %445 = vrot.lane.b32.xlu0 %v443, 1
  %v446 = vpop.permute.xlu0 %445
  %v447 = vmul.f32 %v446, %v276
  %v448 = vpack.c.bf16 %v447, %v447
  %s449 = scalar_lea.vmem %s2, 12
  %v450 = vld [vmem:[%s449] sm:$0x3]
  %v452 = vsel %vm113, %v450, 0
  %v455 = vand.u32 %v448, %v120
  %457 = vmatprep.subr.bf16.mxu0 0
  %458 = vmatpush1.bf16.msra.mxu0 %v455
  %459 = vmatprep.subr.bf16.mxu0 0
  %460 = vmatpush1.bf16.msra.mxu0 0
  %461 = vmatprep.subr.bf16.mxu0 0
  %462 = vmatpush1.bf16.msra.mxu0 0
  %463 = vmatprep.subr.bf16.mxu0 0
  %464 = vmatpush1.bf16.msra.mxu0 0
  %465 = vmatprep.subr.bf16.mxu0 0
  %466 = vmatpush1.bf16.msra.mxu0 0
  %467 = vmatprep.subr.bf16.mxu0 0
  %468 = vmatpush1.bf16.msra.mxu0 0
  %469 = vmatprep.subr.bf16.mxu0 0
  %470 = vmatpush1.bf16.msra.mxu0 0
  %471 = vmatprep.subr.bf16.mxu0 0
  %472 = vmatpush1.bf16.msra.mxu0 0
  %473 = vmatprep.subr.bf16.mxu0 0
  %474 = vmatpush1.bf16.msra.mxu0 0
  %475 = vmatprep.subr.bf16.mxu0 0
  %476 = vmatpush1.bf16.msra.mxu0 0
  %477 = vmatprep.subr.bf16.mxu0 0
  %478 = vmatpush1.bf16.msra.mxu0 0
  %479 = vmatprep.subr.bf16.mxu0 0
  %480 = vmatpush1.bf16.msra.mxu0 0
  %481 = vmatprep.subr.bf16.mxu0 0
  %482 = vmatpush1.bf16.msra.mxu0 0
  %483 = vmatprep.subr.bf16.mxu0 0
  %484 = vmatpush1.bf16.msra.mxu0 0
  %485 = vmatprep.subr.bf16.mxu0 0
  %486 = vmatpush1.bf16.msra.mxu0 0
  %487 = vmatprep.subr.bf16.mxu0 0
  %488 = vmatpush1.bf16.msra.mxu0 0
  %489 = vmatprep.mubr.bf16.mxu0 0
  %490 = vmatmul.mubr.bf16.gmra.mrb[0].mxu0 %v452
  %v491 = vpop.f32.mrb[0].mxu0
  %v492 = vadd.f32 0.0, %v491
  %v493 = vpop.f32.mrb[0].mxu0
  %v494 = vpop.f32.mrb[0].mxu0
  %v495 = vpop.f32.mrb[0].mxu0
  %496 = vdwg.mxu0
  %v497 = vadd.f32 %v441, %v492
  %v498 = vmul.f32 %v78, %v333
  %v499 = vpack.c.bf16 %v498, %v498
  %s500 = scalar_lea.vmem %s2, 14
  %v501 = vld [vmem:[%s500] sm:$0x3]
  %v503 = vrot.slane %v499, 2
  %v505 = vsel %vm113, %v501, 0
  %v508 = vand.u32 %v503, %v120
  %510 = vmatprep.subr.bf16.mxu0 0
  %511 = vmatpush1.bf16.msra.mxu0 %v508
  %512 = vmatprep.subr.bf16.mxu0 0
  %513 = vmatpush1.bf16.msra.mxu0 0
  %514 = vmatprep.subr.bf16.mxu0 0
  %515 = vmatpush1.bf16.msra.mxu0 0
  %516 = vmatprep.subr.bf16.mxu0 0
  %517 = vmatpush1.bf16.msra.mxu0 0
  %518 = vmatprep.subr.bf16.mxu0 0
  %519 = vmatpush1.bf16.msra.mxu0 0
  %520 = vmatprep.subr.bf16.mxu0 0
  %521 = vmatpush1.bf16.msra.mxu0 0
  %522 = vmatprep.subr.bf16.mxu0 0
  %523 = vmatpush1.bf16.msra.mxu0 0
  %524 = vmatprep.subr.bf16.mxu0 0
  %525 = vmatpush1.bf16.msra.mxu0 0
  %526 = vmatprep.subr.bf16.mxu0 0
  %527 = vmatpush1.bf16.msra.mxu0 0
  %528 = vmatprep.subr.bf16.mxu0 0
  %529 = vmatpush1.bf16.msra.mxu0 0
  %530 = vmatprep.subr.bf16.mxu0 0
  %531 = vmatpush1.bf16.msra.mxu0 0
  %532 = vmatprep.subr.bf16.mxu0 0
  %533 = vmatpush1.bf16.msra.mxu0 0
  %534 = vmatprep.subr.bf16.mxu0 0
  %535 = vmatpush1.bf16.msra.mxu0 0
  %536 = vmatprep.subr.bf16.mxu0 0
  %537 = vmatpush1.bf16.msra.mxu0 0
  %538 = vmatprep.subr.bf16.mxu0 0
  %539 = vmatpush1.bf16.msra.mxu0 0
  %540 = vmatprep.subr.bf16.mxu0 0
  %541 = vmatpush1.bf16.msra.mxu0 0
  %542 = vmatprep.mubr.bf16.mxu0 0
  %543 = vmatmul.mubr.bf16.gmra.mrb[0].mxu0 %v505
  %v544 = vpop.f32.mrb[0].mxu0
  %v545 = vadd.f32 0.0, %v544
  %v546 = vpop.f32.mrb[0].mxu0
  %v547 = vpop.f32.mrb[0].mxu0
  %v548 = vpop.f32.mrb[0].mxu0
  %549 = vdwg.mxu0
  %v550 = vadd.f32 %v497, %v545
  %v551 = vmul.f32 %v79, %v333
  %v552 = vpack.c.bf16 %v551, %v498
  %s553 = scalar_lea.vmem %s2, 16
  %v554 = vld [vmem:[%s553] sm:$0x3]
  %v556 = vshrl.u32 %v552, 16
  %v558 = vrot.slane %v556, 3
  %v559 = vshll.u32 %v552, 16
  %v561 = vrot.slane %v559, 4
  %v562 = vor.u32 %v558, %v561
  %v564 = vsel %vm113, %v554, 0
  %v567 = vand.u32 %v562, %v120
  %569 = vmatprep.subr.bf16.mxu0 0
  %570 = vmatpush1.bf16.msra.mxu0 %v567
  %571 = vmatprep.subr.bf16.mxu0 0
  %572 = vmatpush1.bf16.msra.mxu0 0
  %573 = vmatprep.subr.bf16.mxu0 0
  %574 = vmatpush1.bf16.msra.mxu0 0
  %575 = vmatprep.subr.bf16.mxu0 0
  %576 = vmatpush1.bf16.msra.mxu0 0
  %577 = vmatprep.subr.bf16.mxu0 0
  %578 = vmatpush1.bf16.msra.mxu0 0
  %579 = vmatprep.subr.bf16.mxu0 0
  %580 = vmatpush1.bf16.msra.mxu0 0
  %581 = vmatprep.subr.bf16.mxu0 0
  %582 = vmatpush1.bf16.msra.mxu0 0
  %583 = vmatprep.subr.bf16.mxu0 0
  %584 = vmatpush1.bf16.msra.mxu0 0
  %585 = vmatprep.subr.bf16.mxu0 0
  %586 = vmatpush1.bf16.msra.mxu0 0
  %587 = vmatprep.subr.bf16.mxu0 0
  %588 = vmatpush1.bf16.msra.mxu0 0
  %589 = vmatprep.subr.bf16.mxu0 0
  %590 = vmatpush1.bf16.msra.mxu0 0
  %591 = vmatprep.subr.bf16.mxu0 0
  %592 = vmatpush1.bf16.msra.mxu0 0
  %593 = vmatprep.subr.bf16.mxu0 0
  %594 = vmatpush1.bf16.msra.mxu0 0
  %595 = vmatprep.subr.bf16.mxu0 0
  %596 = vmatpush1.bf16.msra.mxu0 0
  %597 = vmatprep.subr.bf16.mxu0 0
  %598 = vmatpush1.bf16.msra.mxu0 0
  %599 = vmatprep.subr.bf16.mxu0 0
  %600 = vmatpush1.bf16.msra.mxu0 0
  %601 = vmatprep.mubr.bf16.mxu0 0
  %602 = vmatmul.mubr.bf16.gmra.mrb[0].mxu0 %v564
  %v603 = vpop.f32.mrb[0].mxu0
  %v604 = vadd.f32 0.0, %v603
  %v605 = vpop.f32.mrb[0].mxu0
  %v606 = vpop.f32.mrb[0].mxu0
  %v607 = vpop.f32.mrb[0].mxu0
  %608 = vdwg.mxu0
  %v609 = vadd.f32 %v550, %v604
  %611 = vset.pattern.permute.xlu0 0
  %612 = vperm.xlu0 %611, %v83
  %v613 = vpop.permute.xlu0 %612
  %v615 = vadd.f32 %v609, %v613
  %v616 = vrot.slane %v82, 2
  %618 = vrot.lane.b32.xlu0 %v616, 4
  %v619 = vpop.permute.xlu0 %618
  %v620 = vmul.f32 %v619, %v107
  %v621 = vpack.c.bf16 %v620, %v620
  %v623 = vand.u32 %v621, %v120
  %625 = vmatprep.subr.bf16.mxu0 0
  %626 = vmatpush1.bf16.msra.mxu0 %v623
  %627 = vmatprep.subr.bf16.mxu0 0
  %628 = vmatpush1.bf16.msra.mxu0 0
  %629 = vmatprep.subr.bf16.mxu0 0
  %630 = vmatpush1.bf16.msra.mxu0 0
  %631 = vmatprep.subr.bf16.mxu0 0
  %632 = vmatpush1.bf16.msra.mxu0 0
  %633 = vmatprep.subr.bf16.mxu0 0
  %634 = vmatpush1.bf16.msra.mxu0 0
  %635 = vmatprep.subr.bf16.mxu0 0
  %636 = vmatpush1.bf16.msra.mxu0 0
  %637 = vmatprep.subr.bf16.mxu0 0
  %638 = vmatpush1.bf16.msra.mxu0 0
  %639 = vmatprep.subr.bf16.mxu0 0
  %640 = vmatpush1.bf16.msra.mxu0 0
  %641 = vmatprep.subr.bf16.mxu0 0
  %642 = vmatpush1.bf16.msra.mxu0 0
  %643 = vmatprep.subr.bf16.mxu0 0
  %644 = vmatpush1.bf16.msra.mxu0 0
  %645 = vmatprep.subr.bf16.mxu0 0
  %646 = vmatpush1.bf16.msra.mxu0 0
  %647 = vmatprep.subr.bf16.mxu0 0
  %648 = vmatpush1.bf16.msra.mxu0 0
  %649 = vmatprep.subr.bf16.mxu0 0
  %650 = vmatpush1.bf16.msra.mxu0 0
  %651 = vmatprep.subr.bf16.mxu0 0
  %652 = vmatpush1.bf16.msra.mxu0 0
  %653 = vmatprep.subr.bf16.mxu0 0
  %654 = vmatpush1.bf16.msra.mxu0 0
  %655 = vmatprep.subr.bf16.mxu0 0
  %656 = vmatpush1.bf16.msra.mxu0 0
  %657 = vmatprep.mubr.bf16.mxu0 0
  %658 = vmatmul.mubr.bf16.gmra.mrb[0].mxu0 %v115
  %v659 = vpop.f32.mrb[0].mxu0
  %v660 = vadd.f32 0.0, %v659
  %v661 = vpop.f32.mrb[0].mxu0
  %v662 = vpop.f32.mrb[0].mxu0
  %v663 = vpop.f32.mrb[0].mxu0
  %664 = vdwg.mxu0
  %665 = vmatprep.subr.bf16.mxu0 0
  %666 = vmatpush1.bf16.msra.mxu0 %v224
  %667 = vmatprep.subr.bf16.mxu0 0
  %668 = vmatpush1.bf16.msra.mxu0 0
  %669 = vmatprep.subr.bf16.mxu0 0
  %670 = vmatpush1.bf16.msra.mxu0 0
  %671 = vmatprep.subr.bf16.mxu0 0
  %672 = vmatpush1.bf16.msra.mxu0 0
  %673 = vmatprep.subr.bf16.mxu0 0
  %674 = vmatpush1.bf16.msra.mxu0 0
  %675 = vmatprep.subr.bf16.mxu0 0
  %676 = vmatpush1.bf16.msra.mxu0 0
  %677 = vmatprep.subr.bf16.mxu0 0
  %678 = vmatpush1.bf16.msra.mxu0 0
  %679 = vmatprep.subr.bf16.mxu0 0
  %680 = vmatpush1.bf16.msra.mxu0 0
  %681 = vmatprep.subr.bf16.mxu0 0
  %682 = vmatpush1.bf16.msra.mxu0 0
  %683 = vmatprep.subr.bf16.mxu0 0
  %684 = vmatpush1.bf16.msra.mxu0 0
  %685 = vmatprep.subr.bf16.mxu0 0
  %686 = vmatpush1.bf16.msra.mxu0 0
  %687 = vmatprep.subr.bf16.mxu0 0
  %688 = vmatpush1.bf16.msra.mxu0 0
  %689 = vmatprep.subr.bf16.mxu0 0
  %690 = vmatpush1.bf16.msra.mxu0 0
  %691 = vmatprep.subr.bf16.mxu0 0
  %692 = vmatpush1.bf16.msra.mxu0 0
  %693 = vmatprep.subr.bf16.mxu0 0
  %694 = vmatpush1.bf16.msra.mxu0 0
  %695 = vmatprep.subr.bf16.mxu0 0
  %696 = vmatpush1.bf16.msra.mxu0 0
  %697 = vmatprep.mubr.bf16.mxu0 0
  %698 = vmatmul.mubr.bf16.gmra.mrb[0].mxu0 %v165
  %v699 = vpop.f32.mrb[0].mxu0
  %v700 = vadd.f32 %v660, %v699
  %v701 = vpop.f32.mrb[0].mxu0
  %v702 = vpop.f32.mrb[0].mxu0
  %v703 = vpop.f32.mrb[0].mxu0
  %704 = vdwg.mxu0
  %705 = vrot.lane.b32.xlu0 %v85, 4
  %v706 = vpop.permute.xlu0 %705
  %v707 = vmul.f32 %v706, %v107
  %v708 = vpack.c.bf16 %v707, %v707
  %v710 = vand.u32 %v708, %v120
  %712 = vmatprep.subr.bf16.mxu0 0
  %713 = vmatpush1.bf16.msra.mxu0 %v710
  %714 = vmatprep.subr.bf16.mxu0 0
  %715 = vmatpush1.bf16.msra.mxu0 0
  %716 = vmatprep.subr.bf16.mxu0 0
  %717 = vmatpush1.bf16.msra.mxu0 0
  %718 = vmatprep.subr.bf16.mxu0 0
  %719 = vmatpush1.bf16.msra.mxu0 0
  %720 = vmatprep.subr.bf16.mxu0 0
  %721 = vmatpush1.bf16.msra.mxu0 0
  %722 = vmatprep.subr.bf16.mxu0 0
  %723 = vmatpush1.bf16.msra.mxu0 0
  %724 = vmatprep.subr.bf16.mxu0 0
  %725 = vmatpush1.bf16.msra.mxu0 0
  %726 = vmatprep.subr.bf16.mxu0 0
  %727 = vmatpush1.bf16.msra.mxu0 0
  %728 = vmatprep.subr.bf16.mxu0 0
  %729 = vmatpush1.bf16.msra.mxu0 0
  %730 = vmatprep.subr.bf16.mxu0 0
  %731 = vmatpush1.bf16.msra.mxu0 0
  %732 = vmatprep.subr.bf16.mxu0 0
  %733 = vmatpush1.bf16.msra.mxu0 0
  %734 = vmatprep.subr.bf16.mxu0 0
  %735 = vmatpush1.bf16.msra.mxu0 0
  %736 = vmatprep.subr.bf16.mxu0 0
  %737 = vmatpush1.bf16.msra.mxu0 0
  %738 = vmatprep.subr.bf16.mxu0 0
  %739 = vmatpush1.bf16.msra.mxu0 0
  %740 = vmatprep.subr.bf16.mxu0 0
  %741 = vmatpush1.bf16.msra.mxu0 0
  %742 = vmatprep.subr.bf16.mxu0 0
  %743 = vmatpush1.bf16.msra.mxu0 0
  %744 = vmatprep.mubr.bf16.mxu0 0
  %745 = vmatmul.mubr.bf16.gmra.mrb[0].mxu0 %v221
  %v746 = vpop.f32.mrb[0].mxu0
  %v747 = vadd.f32 0.0, %v746
  %v748 = vpop.f32.mrb[0].mxu0
  %v749 = vpop.f32.mrb[0].mxu0
  %v750 = vpop.f32.mrb[0].mxu0
  %751 = vdwg.mxu0
  %v752 = vadd.f32 %v700, %v747
  %753 = vmatprep.subr.bf16.mxu0 0
  %754 = vmatpush1.bf16.msra.mxu0 %v399
  %755 = vmatprep.subr.bf16.mxu0 0
  %756 = vmatpush1.bf16.msra.mxu0 0
  %757 = vmatprep.subr.bf16.mxu0 0
  %758 = vmatpush1.bf16.msra.mxu0 0
  %759 = vmatprep.subr.bf16.mxu0 0
  %760 = vmatpush1.bf16.msra.mxu0 0
  %761 = vmatprep.subr.bf16.mxu0 0
  %762 = vmatpush1.bf16.msra.mxu0 0
  %763 = vmatprep.subr.bf16.mxu0 0
  %764 = vmatpush1.bf16.msra.mxu0 0
  %765 = vmatprep.subr.bf16.mxu0 0
  %766 = vmatpush1.bf16.msra.mxu0 0
  %767 = vmatprep.subr.bf16.mxu0 0
  %768 = vmatpush1.bf16.msra.mxu0 0
  %769 = vmatprep.subr.bf16.mxu0 0
  %770 = vmatpush1.bf16.msra.mxu0 0
  %771 = vmatprep.subr.bf16.mxu0 0
  %772 = vmatpush1.bf16.msra.mxu0 0
  %773 = vmatprep.subr.bf16.mxu0 0
  %774 = vmatpush1.bf16.msra.mxu0 0
  %775 = vmatprep.subr.bf16.mxu0 0
  %776 = vmatpush1.bf16.msra.mxu0 0
  %777 = vmatprep.subr.bf16.mxu0 0
  %778 = vmatpush1.bf16.msra.mxu0 0
  %779 = vmatprep.subr.bf16.mxu0 0
  %780 = vmatpush1.bf16.msra.mxu0 0
  %781 = vmatprep.subr.bf16.mxu0 0
  %782 = vmatpush1.bf16.msra.mxu0 0
  %783 = vmatprep.subr.bf16.mxu0 0
  %784 = vmatpush1.bf16.msra.mxu0 0
  %785 = vmatprep.mubr.bf16.mxu0 0
  %786 = vmatmul.mubr.bf16.gmra.mrb[0].mxu0 %v283
  %v787 = vpop.f32.mrb[0].mxu0
  %v788 = vadd.f32 0.0, %v787
  %v789 = vpop.f32.mrb[0].mxu0
  %v790 = vpop.f32.mrb[0].mxu0
  %v791 = vpop.f32.mrb[0].mxu0
  %792 = vdwg.mxu0
  %v793 = vadd.f32 %v752, %v788
  %v794 = vpack.c.bf16 %v498, %v335
  %v796 = vrot.slane %v794, 3
  %v798 = vand.u32 %v796, %v120
  %800 = vmatprep.subr.bf16.mxu0 0
  %801 = vmatpush1.bf16.msra.mxu0 %v798
  %802 = vmatprep.subr.bf16.mxu0 0
  %803 = vmatpush1.bf16.msra.mxu0 0
  %804 = vmatprep.subr.bf16.mxu0 0
  %805 = vmatpush1.bf16.msra.mxu0 0
  %806 = vmatprep.subr.bf16.mxu0 0
  %807 = vmatpush1.bf16.msra.mxu0 0
  %808 = vmatprep.subr.bf16.mxu0 0
  %809 = vmatpush1.bf16.msra.mxu0 0
  %810 = vmatprep.subr.bf16.mxu0 0
  %811 = vmatpush1.bf16.msra.mxu0 0
  %812 = vmatprep.subr.bf16.mxu0 0
  %813 = vmatpush1.bf16.msra.mxu0 0
  %814 = vmatprep.subr.bf16.mxu0 0
  %815 = vmatpush1.bf16.msra.mxu0 0
  %816 = vmatprep.subr.bf16.mxu0 0
  %817 = vmatpush1.bf16.msra.mxu0 0
  %818 = vmatprep.subr.bf16.mxu0 0
  %819 = vmatpush1.bf16.msra.mxu0 0
  %820 = vmatprep.subr.bf16.mxu0 0
  %821 = vmatpush1.bf16.msra.mxu0 0
  %822 = vmatprep.subr.bf16.mxu0 0
  %823 = vmatpush1.bf16.msra.mxu0 0
  %824 = vmatprep.subr.bf16.mxu0 0
  %825 = vmatpush1.bf16.msra.mxu0 0
  %826 = vmatprep.subr.bf16.mxu0 0
  %827 = vmatpush1.bf16.msra.mxu0 0
  %828 = vmatprep.subr.bf16.mxu0 0
  %829 = vmatpush1.bf16.msra.mxu0 0
  %830 = vmatprep.subr.bf16.mxu0 0
  %831 = vmatpush1.bf16.msra.mxu0 0
  %832 = vmatprep.mubr.bf16.mxu0 0
  %833 = vmatmul.mubr.bf16.gmra.mrb[0].mxu0 %v340
  %v834 = vpop.f32.mrb[0].mxu0
  %v835 = vadd.f32 0.0, %v834
  %v836 = vpop.f32.mrb[0].mxu0
  %v837 = vpop.f32.mrb[0].mxu0
  %v838 = vpop.f32.mrb[0].mxu0
  %839 = vdwg.mxu0
  %v840 = vadd.f32 %v793, %v835
  %v842 = vshrl.u32 %v499, 16
  %v844 = vshll.u32 %v499, 16
  %v846 = vrot.slane %v844, 1
  %v847 = vor.u32 %v842, %v846
  %v849 = vand.u32 %v847, %v120
  %851 = vmatprep.subr.bf16.mxu0 0
  %852 = vmatpush1.bf16.msra.mxu0 %v849
  %853 = vmatprep.subr.bf16.mxu0 0
  %854 = vmatpush1.bf16.msra.mxu0 0
  %855 = vmatprep.subr.bf16.mxu0 0
  %856 = vmatpush1.bf16.msra.mxu0 0
  %857 = vmatprep.subr.bf16.mxu0 0
  %858 = vmatpush1.bf16.msra.mxu0 0
  %859 = vmatprep.subr.bf16.mxu0 0
  %860 = vmatpush1.bf16.msra.mxu0 0
  %861 = vmatprep.subr.bf16.mxu0 0
  %862 = vmatpush1.bf16.msra.mxu0 0
  %863 = vmatprep.subr.bf16.mxu0 0
  %864 = vmatpush1.bf16.msra.mxu0 0
  %865 = vmatprep.subr.bf16.mxu0 0
  %866 = vmatpush1.bf16.msra.mxu0 0
  %867 = vmatprep.subr.bf16.mxu0 0
  %868 = vmatpush1.bf16.msra.mxu0 0
  %869 = vmatprep.subr.bf16.mxu0 0
  %870 = vmatpush1.bf16.msra.mxu0 0
  %871 = vmatprep.subr.bf16.mxu0 0
  %872 = vmatpush1.bf16.msra.mxu0 0
  %873 = vmatprep.subr.bf16.mxu0 0
  %874 = vmatpush1.bf16.msra.mxu0 0
  %875 = vmatprep.subr.bf16.mxu0 0
  %876 = vmatpush1.bf16.msra.mxu0 0
  %877 = vmatprep.subr.bf16.mxu0 0
  %878 = vmatpush1.bf16.msra.mxu0 0
  %879 = vmatprep.subr.bf16.mxu0 0
  %880 = vmatpush1.bf16.msra.mxu0 0
  %881 = vmatprep.subr.bf16.mxu0 0
  %882 = vmatpush1.bf16.msra.mxu0 0
  %883 = vmatprep.mubr.bf16.mxu0 0
  %884 = vmatmul.mubr.bf16.gmra.mrb[0].mxu0 %v396
  %v885 = vpop.f32.mrb[0].mxu0
  %v886 = vadd.f32 0.0, %v885
  %v887 = vpop.f32.mrb[0].mxu0
  %v888 = vpop.f32.mrb[0].mxu0
  %v889 = vpop.f32.mrb[0].mxu0
  %890 = vdwg.mxu0
  %v891 = vadd.f32 %v840, %v886
  %892 = vmatprep.subr.bf16.mxu0 0
  %893 = vmatpush1.bf16.msra.mxu0 %v567
  %894 = vmatprep.subr.bf16.mxu0 0
  %895 = vmatpush1.bf16.msra.mxu0 0
  %896 = vmatprep.subr.bf16.mxu0 0
  %897 = vmatpush1.bf16.msra.mxu0 0
  %898 = vmatprep.subr.bf16.mxu0 0
  %899 = vmatpush1.bf16.msra.mxu0 0
  %900 = vmatprep.subr.bf16.mxu0 0
  %901 = vmatpush1.bf16.msra.mxu0 0
  %902 = vmatprep.subr.bf16.mxu0 0
  %903 = vmatpush1.bf16.msra.mxu0 0
  %904 = vmatprep.subr.bf16.mxu0 0
  %905 = vmatpush1.bf16.msra.mxu0 0
  %906 = vmatprep.subr.bf16.mxu0 0
  %907 = vmatpush1.bf16.msra.mxu0 0
  %908 = vmatprep.subr.bf16.mxu0 0
  %909 = vmatpush1.bf16.msra.mxu0 0
  %910 = vmatprep.subr.bf16.mxu0 0
  %911 = vmatpush1.bf16.msra.mxu0 0
  %912 = vmatprep.subr.bf16.mxu0 0
  %913 = vmatpush1.bf16.msra.mxu0 0
  %914 = vmatprep.subr.bf16.mxu0 0
  %915 = vmatpush1.bf16.msra.mxu0 0
  %916 = vmatprep.subr.bf16.mxu0 0
  %917 = vmatpush1.bf16.msra.mxu0 0
  %918 = vmatprep.subr.bf16.mxu0 0
  %919 = vmatpush1.bf16.msra.mxu0 0
  %920 = vmatprep.subr.bf16.mxu0 0
  %921 = vmatpush1.bf16.msra.mxu0 0
  %922 = vmatprep.subr.bf16.mxu0 0
  %923 = vmatpush1.bf16.msra.mxu0 0
  %924 = vmatprep.mubr.bf16.mxu0 0
  %925 = vmatmul.mubr.bf16.gmra.mrb[0].mxu0 %v452
  %v926 = vpop.f32.mrb[0].mxu0
  %v927 = vadd.f32 0.0, %v926
  %v928 = vpop.f32.mrb[0].mxu0
  %v929 = vpop.f32.mrb[0].mxu0
  %v930 = vpop.f32.mrb[0].mxu0
  %931 = vdwg.mxu0
  %v932 = vadd.f32 %v891, %v927
  %v933 = vpack.c.bf16 %v551, %v551
  %v935 = vrot.slane %v933, 1
  %v937 = vand.u32 %v935, %v120
  %939 = vmatprep.subr.bf16.mxu0 0
  %940 = vmatpush1.bf16.msra.mxu0 %v937
  %941 = vmatprep.subr.bf16.mxu0 0
  %942 = vmatpush1.bf16.msra.mxu0 0
  %943 = vmatprep.subr.bf16.mxu0 0
  %944 = vmatpush1.bf16.msra.mxu0 0
  %945 = vmatprep.subr.bf16.mxu0 0
  %946 = vmatpush1.bf16.msra.mxu0 0
  %947 = vmatprep.subr.bf16.mxu0 0
  %948 = vmatpush1.bf16.msra.mxu0 0
  %949 = vmatprep.subr.bf16.mxu0 0
  %950 = vmatpush1.bf16.msra.mxu0 0
  %951 = vmatprep.subr.bf16.mxu0 0
  %952 = vmatpush1.bf16.msra.mxu0 0
  %953 = vmatprep.subr.bf16.mxu0 0
  %954 = vmatpush1.bf16.msra.mxu0 0
  %955 = vmatprep.subr.bf16.mxu0 0
  %956 = vmatpush1.bf16.msra.mxu0 0
  %957 = vmatprep.subr.bf16.mxu0 0
  %958 = vmatpush1.bf16.msra.mxu0 0
  %959 = vmatprep.subr.bf16.mxu0 0
  %960 = vmatpush1.bf16.msra.mxu0 0
  %961 = vmatprep.subr.bf16.mxu0 0
  %962 = vmatpush1.bf16.msra.mxu0 0
  %963 = vmatprep.subr.bf16.mxu0 0
  %964 = vmatpush1.bf16.msra.mxu0 0
  %965 = vmatprep.subr.bf16.mxu0 0
  %966 = vmatpush1.bf16.msra.mxu0 0
  %967 = vmatprep.subr.bf16.mxu0 0
  %968 = vmatpush1.bf16.msra.mxu0 0
  %969 = vmatprep.subr.bf16.mxu0 0
  %970 = vmatpush1.bf16.msra.mxu0 0
  %971 = vmatprep.mubr.bf16.mxu0 0
  %972 = vmatmul.mubr.bf16.gmra.mrb[0].mxu0 %v505
  %v973 = vpop.f32.mrb[0].mxu0
  %v974 = vadd.f32 0.0, %v973
  %v975 = vpop.f32.mrb[0].mxu0
  %v976 = vpop.f32.mrb[0].mxu0
  %v977 = vpop.f32.mrb[0].mxu0
  %978 = vdwg.mxu0
  %v979 = vadd.f32 %v932, %v974
  %v981 = vshrl.u32 %v933, 16
  %v983 = vrot.slane %v981, 2
  %v984 = vshll.u32 %v933, 16
  %v986 = vrot.slane %v984, 3
  %v987 = vor.u32 %v983, %v986
  %v989 = vand.u32 %v987, %v120
  %991 = vmatprep.subr.bf16.mxu0 0
  %992 = vmatpush1.bf16.msra.mxu0 %v989
  %993 = vmatprep.subr.bf16.mxu0 0
  %994 = vmatpush1.bf16.msra.mxu0 0
  %995 = vmatprep.subr.bf16.mxu0 0
  %996 = vmatpush1.bf16.msra.mxu0 0
  %997 = vmatprep.subr.bf16.mxu0 0
  %998 = vmatpush1.bf16.msra.mxu0 0
  %999 = vmatprep.subr.bf16.mxu0 0
  %1000 = vmatpush1.bf16.msra.mxu0 0
  %1001 = vmatprep.subr.bf16.mxu0 0
  %1002 = vmatpush1.bf16.msra.mxu0 0
  %1003 = vmatprep.subr.bf16.mxu0 0
  %1004 = vmatpush1.bf16.msra.mxu0 0
  %1005 = vmatprep.subr.bf16.mxu0 0
  %1006 = vmatpush1.bf16.msra.mxu0 0
  %1007 = vmatprep.subr.bf16.mxu0 0
  %1008 = vmatpush1.bf16.msra.mxu0 0
  %1009 = vmatprep.subr.bf16.mxu0 0
  %1010 = vmatpush1.bf16.msra.mxu0 0
  %1011 = vmatprep.subr.bf16.mxu0 0
  %1012 = vmatpush1.bf16.msra.mxu0 0
  %1013 = vmatprep.subr.bf16.mxu0 0
  %1014 = vmatpush1.bf16.msra.mxu0 0
  %1015 = vmatprep.subr.bf16.mxu0 0
  %1016 = vmatpush1.bf16.msra.mxu0 0
  %1017 = vmatprep.subr.bf16.mxu0 0
  %1018 = vmatpush1.bf16.msra.mxu0 0
  %1019 = vmatprep.subr.bf16.mxu0 0
  %1020 = vmatpush1.bf16.msra.mxu0 0
  %1021 = vmatprep.subr.bf16.mxu0 0
  %1022 = vmatpush1.bf16.msra.mxu0 0
  %1023 = vmatprep.mubr.bf16.mxu0 0
  %1024 = vmatmul.mubr.bf16.gmra.mrb[0].mxu0 %v564
  %v1025 = vpop.f32.mrb[0].mxu0
  %v1026 = vadd.f32 0.0, %v1025
  %v1027 = vpop.f32.mrb[0].mxu0
  %v1028 = vpop.f32.mrb[0].mxu0
  %v1029 = vpop.f32.mrb[0].mxu0
  %1030 = vdwg.mxu0
  %v1031 = vadd.f32 %v979, %v1026
  %v1032 = vadd.f32 %v1031, %v613
  %1033 = vmatprep.subr.bf16.mxu0 0
  %1034 = vmatpush1.bf16.msra.mxu0 %v508
  %1035 = vmatprep.subr.bf16.mxu0 0
  %1036 = vmatpush1.bf16.msra.mxu0 0
  %1037 = vmatprep.subr.bf16.mxu0 0
  %1038 = vmatpush1.bf16.msra.mxu0 0
  %1039 = vmatprep.subr.bf16.mxu0 0
  %1040 = vmatpush1.bf16.msra.mxu0 0
  %1041 = vmatprep.subr.bf16.mxu0 0
  %1042 = vmatpush1.bf16.msra.mxu0 0
  %1043 = vmatprep.subr.bf16.mxu0 0
  %1044 = vmatpush1.bf16.msra.mxu0 0
  %1045 = vmatprep.subr.bf16.mxu0 0
  %1046 = vmatpush1.bf16.msra.mxu0 0
  %1047 = vmatprep.subr.bf16.mxu0 0
  %1048 = vmatpush1.bf16.msra.mxu0 0
  %1049 = vmatprep.subr.bf16.mxu0 0
  %1050 = vmatpush1.bf16.msra.mxu0 0
  %1051 = vmatprep.subr.bf16.mxu0 0
  %1052 = vmatpush1.bf16.msra.mxu0 0
  %1053 = vmatprep.subr.bf16.mxu0 0
  %1054 = vmatpush1.bf16.msra.mxu0 0
  %1055 = vmatprep.subr.bf16.mxu0 0
  %1056 = vmatpush1.bf16.msra.mxu0 0
  %1057 = vmatprep.subr.bf16.mxu0 0
  %1058 = vmatpush1.bf16.msra.mxu0 0
  %1059 = vmatprep.subr.bf16.mxu0 0
  %1060 = vmatpush1.bf16.msra.mxu0 0
  %1061 = vmatprep.subr.bf16.mxu0 0
  %1062 = vmatpush1.bf16.msra.mxu0 0
  %1063 = vmatprep.subr.bf16.mxu0 0
  %1064 = vmatpush1.bf16.msra.mxu0 0
  %1065 = vmatprep.mubr.bf16.mxu0 0
  %1066 = vmatmul.mubr.bf16.gmra.mrb[0].mxu0 %v115
  %v1067 = vpop.f32.mrb[0].mxu0
  %v1068 = vadd.f32 0.0, %v1067
  %v1069 = vpop.f32.mrb[0].mxu0
  %v1070 = vpop.f32.mrb[0].mxu0
  %v1071 = vpop.f32.mrb[0].mxu0
  %1072 = vdwg.mxu0
  %1073 = vmatprep.subr.bf16.mxu0 0
  %1074 = vmatpush1.bf16.msra.mxu0 %v455
  %1075 = vmatprep.subr.bf16.mxu0 0
  %1076 = vmatpush1.bf16.msra.mxu0 0
  %1077 = vmatprep.subr.bf16.mxu0 0
  %1078 = vmatpush1.bf16.msra.mxu0 0
  %1079 = vmatprep.subr.bf16.mxu0 0
  %1080 = vmatpush1.bf16.msra.mxu0 0
  %1081 = vmatprep.subr.bf16.mxu0 0
  %1082 = vmatpush1.bf16.msra.mxu0 0
  %1083 = vmatprep.subr.bf16.mxu0 0
  %1084 = vmatpush1.bf16.msra.mxu0 0
  %1085 = vmatprep.subr.bf16.mxu0 0
  %1086 = vmatpush1.bf16.msra.mxu0 0
  %1087 = vmatprep.subr.bf16.mxu0 0
  %1088 = vmatpush1.bf16.msra.mxu0 0
  %1089 = vmatprep.subr.bf16.mxu0 0
  %1090 = vmatpush1.bf16.msra.mxu0 0
  %1091 = vmatprep.subr.bf16.mxu0 0
  %1092 = vmatpush1.bf16.msra.mxu0 0
  %1093 = vmatprep.subr.bf16.mxu0 0
  %1094 = vmatpush1.bf16.msra.mxu0 0
  %1095 = vmatprep.subr.bf16.mxu0 0
  %1096 = vmatpush1.bf16.msra.mxu0 0
  %1097 = vmatprep.subr.bf16.mxu0 0
  %1098 = vmatpush1.bf16.msra.mxu0 0
  %1099 = vmatprep.subr.bf16.mxu0 0
  %1100 = vmatpush1.bf16.msra.mxu0 0
  %1101 = vmatprep.subr.bf16.mxu0 0
  %1102 = vmatpush1.bf16.msra.mxu0 0
  %1103 = vmatprep.subr.bf16.mxu0 0
  %1104 = vmatpush1.bf16.msra.mxu0 0
  %1105 = vmatprep.mubr.bf16.mxu0 0
  %1106 = vmatmul.mubr.bf16.gmra.mrb[0].mxu0 %v165
  %v1107 = vpop.f32.mrb[0].mxu0
  %v1108 = vadd.f32 %v1068, %v1107
  %v1109 = vpop.f32.mrb[0].mxu0
  %v1110 = vpop.f32.mrb[0].mxu0
  %v1111 = vpop.f32.mrb[0].mxu0
  %1112 = vdwg.mxu0
  %1113 = vmatprep.subr.bf16.mxu0 0
  %1114 = vmatpush1.bf16.msra.mxu0 %v567
  %1115 = vmatprep.subr.bf16.mxu0 0
  %1116 = vmatpush1.bf16.msra.mxu0 0
  %1117 = vmatprep.subr.bf16.mxu0 0
  %1118 = vmatpush1.bf16.msra.mxu0 0
  %1119 = vmatprep.subr.bf16.mxu0 0
  %1120 = vmatpush1.bf16.msra.mxu0 0
  %1121 = vmatprep.subr.bf16.mxu0 0
  %1122 = vmatpush1.bf16.msra.mxu0 0
  %1123 = vmatprep.subr.bf16.mxu0 0
  %1124 = vmatpush1.bf16.msra.mxu0 0
  %1125 = vmatprep.subr.bf16.mxu0 0
  %1126 = vmatpush1.bf16.msra.mxu0 0
  %1127 = vmatprep.subr.bf16.mxu0 0
  %1128 = vmatpush1.bf16.msra.mxu0 0
  %1129 = vmatprep.subr.bf16.mxu0 0
  %1130 = vmatpush1.bf16.msra.mxu0 0
  %1131 = vmatprep.subr.bf16.mxu0 0
  %1132 = vmatpush1.bf16.msra.mxu0 0
  %1133 = vmatprep.subr.bf16.mxu0 0
  %1134 = vmatpush1.bf16.msra.mxu0 0
  %1135 = vmatprep.subr.bf16.mxu0 0
  %1136 = vmatpush1.bf16.msra.mxu0 0
  %1137 = vmatprep.subr.bf16.mxu0 0
  %1138 = vmatpush1.bf16.msra.mxu0 0
  %1139 = vmatprep.subr.bf16.mxu0 0
  %1140 = vmatpush1.bf16.msra.mxu0 0
  %1141 = vmatprep.subr.bf16.mxu0 0
  %1142 = vmatpush1.bf16.msra.mxu0 0
  %1143 = vmatprep.subr.bf16.mxu0 0
  %1144 = vmatpush1.bf16.msra.mxu0 0
  %1145 = vmatprep.mubr.bf16.mxu0 0
  %1146 = vmatmul.mubr.bf16.gmra.mrb[0].mxu0 %v221
  %v1147 = vpop.f32.mrb[0].mxu0
  %v1148 = vadd.f32 0.0, %v1147
  %v1149 = vpop.f32.mrb[0].mxu0
  %v1150 = vpop.f32.mrb[0].mxu0
  %v1151 = vpop.f32.mrb[0].mxu0
  %1152 = vdwg.mxu0
  %v1153 = vadd.f32 %v1108, %v1148
  %v1154 = vrot.slane %v81, 1
  %1156 = vrot.lane.b32.xlu0 %v1154, 1
  %v1157 = vpop.permute.xlu0 %1156
  %v1158 = vmul.f32 %v1157, %v276
  %v1159 = vpack.c.bf16 %v1158, %v1158
  %v1161 = vand.u32 %v1159, %v120
  %1163 = vmatprep.subr.bf16.mxu0 0
  %1164 = vmatpush1.bf16.msra.mxu0 %v1161
  %1165 = vmatprep.subr.bf16.mxu0 0
  %1166 = vmatpush1.bf16.msra.mxu0 0
  %1167 = vmatprep.subr.bf16.mxu0 0
  %1168 = vmatpush1.bf16.msra.mxu0 0
  %1169 = vmatprep.subr.bf16.mxu0 0
  %1170 = vmatpush1.bf16.msra.mxu0 0
  %1171 = vmatprep.subr.bf16.mxu0 0
  %1172 = vmatpush1.bf16.msra.mxu0 0
  %1173 = vmatprep.subr.bf16.mxu0 0
  %1174 = vmatpush1.bf16.msra.mxu0 0
  %1175 = vmatprep.subr.bf16.mxu0 0
  %1176 = vmatpush1.bf16.msra.mxu0 0
  %1177 = vmatprep.subr.bf16.mxu0 0
  %1178 = vmatpush1.bf16.msra.mxu0 0
  %1179 = vmatprep.subr.bf16.mxu0 0
  %1180 = vmatpush1.bf16.msra.mxu0 0
  %1181 = vmatprep.subr.bf16.mxu0 0
  %1182 = vmatpush1.bf16.msra.mxu0 0
  %1183 = vmatprep.subr.bf16.mxu0 0
  %1184 = vmatpush1.bf16.msra.mxu0 0
  %1185 = vmatprep.subr.bf16.mxu0 0
  %1186 = vmatpush1.bf16.msra.mxu0 0
  %1187 = vmatprep.subr.bf16.mxu0 0
  %1188 = vmatpush1.bf16.msra.mxu0 0
  %1189 = vmatprep.subr.bf16.mxu0 0
  %1190 = vmatpush1.bf16.msra.mxu0 0
  %1191 = vmatprep.subr.bf16.mxu0 0
  %1192 = vmatpush1.bf16.msra.mxu0 0
  %1193 = vmatprep.subr.bf16.mxu0 0
  %1194 = vmatpush1.bf16.msra.mxu0 0
  %1195 = vmatprep.mubr.bf16.mxu0 0
  %1196 = vmatmul.mubr.bf16.gmra.mrb[0].mxu0 %v283
  %v1197 = vpop.f32.mrb[0].mxu0
  %v1198 = vadd.f32 0.0, %v1197
  %v1199 = vpop.f32.mrb[0].mxu0
  %v1200 = vpop.f32.mrb[0].mxu0
  %v1201 = vpop.f32.mrb[0].mxu0
  %1202 = vdwg.mxu0
  %v1203 = vadd.f32 %v1153, %v1198
  %v1204 = vmul.f32 %v80, %v333
  %v1205 = vpack.c.bf16 %v1204, %v1204
  %v1207 = vand.u32 %v1205, %v120
  %1209 = vmatprep.subr.bf16.mxu0 0
  %1210 = vmatpush1.bf16.msra.mxu0 %v1207
  %1211 = vmatprep.subr.bf16.mxu0 0
  %1212 = vmatpush1.bf16.msra.mxu0 0
  %1213 = vmatprep.subr.bf16.mxu0 0
  %1214 = vmatpush1.bf16.msra.mxu0 0
  %1215 = vmatprep.subr.bf16.mxu0 0
  %1216 = vmatpush1.bf16.msra.mxu0 0
  %1217 = vmatprep.subr.bf16.mxu0 0
  %1218 = vmatpush1.bf16.msra.mxu0 0
  %1219 = vmatprep.subr.bf16.mxu0 0
  %1220 = vmatpush1.bf16.msra.mxu0 0
  %1221 = vmatprep.subr.bf16.mxu0 0
  %1222 = vmatpush1.bf16.msra.mxu0 0
  %1223 = vmatprep.subr.bf16.mxu0 0
  %1224 = vmatpush1.bf16.msra.mxu0 0
  %1225 = vmatprep.subr.bf16.mxu0 0
  %1226 = vmatpush1.bf16.msra.mxu0 0
  %1227 = vmatprep.subr.bf16.mxu0 0
  %1228 = vmatpush1.bf16.msra.mxu0 0
  %1229 = vmatprep.subr.bf16.mxu0 0
  %1230 = vmatpush1.bf16.msra.mxu0 0
  %1231 = vmatprep.subr.bf16.mxu0 0
  %1232 = vmatpush1.bf16.msra.mxu0 0
  %1233 = vmatprep.subr.bf16.mxu0 0
  %1234 = vmatpush1.bf16.msra.mxu0 0
  %1235 = vmatprep.subr.bf16.mxu0 0
  %1236 = vmatpush1.bf16.msra.mxu0 0
  %1237 = vmatprep.subr.bf16.mxu0 0
  %1238 = vmatpush1.bf16.msra.mxu0 0
  %1239 = vmatprep.subr.bf16.mxu0 0
  %1240 = vmatpush1.bf16.msra.mxu0 0
  %1241 = vmatprep.mubr.bf16.mxu0 0
  %1242 = vmatmul.mubr.bf16.gmra.mrb[0].mxu0 %v340
  %v1243 = vpop.f32.mrb[0].mxu0
  %v1244 = vadd.f32 0.0, %v1243
  %v1245 = vpop.f32.mrb[0].mxu0
  %v1246 = vpop.f32.mrb[0].mxu0
  %v1247 = vpop.f32.mrb[0].mxu0
  %1248 = vdwg.mxu0
  %v1249 = vadd.f32 %v1203, %v1244
  %v1250 = vshrl.u32 %v1205, 16
  %v1252 = vrot.slane %v1250, 1
  %v1253 = vshll.u32 %v1205, 16
  %v1255 = vrot.slane %v1253, 2
  %v1256 = vor.u32 %v1252, %v1255
  %v1258 = vand.u32 %v1256, %v120
  %1260 = vmatprep.subr.bf16.mxu0 0
  %1261 = vmatpush1.bf16.msra.mxu0 %v1258
  %1262 = vmatprep.subr.bf16.mxu0 0
  %1263 = vmatpush1.bf16.msra.mxu0 0
  %1264 = vmatprep.subr.bf16.mxu0 0
  %1265 = vmatpush1.bf16.msra.mxu0 0
  %1266 = vmatprep.subr.bf16.mxu0 0
  %1267 = vmatpush1.bf16.msra.mxu0 0
  %1268 = vmatprep.subr.bf16.mxu0 0
  %1269 = vmatpush1.bf16.msra.mxu0 0
  %1270 = vmatprep.subr.bf16.mxu0 0
  %1271 = vmatpush1.bf16.msra.mxu0 0
  %1272 = vmatprep.subr.bf16.mxu0 0
  %1273 = vmatpush1.bf16.msra.mxu0 0
  %1274 = vmatprep.subr.bf16.mxu0 0
  %1275 = vmatpush1.bf16.msra.mxu0 0
  %1276 = vmatprep.subr.bf16.mxu0 0
  %1277 = vmatpush1.bf16.msra.mxu0 0
  %1278 = vmatprep.subr.bf16.mxu0 0
  %1279 = vmatpush1.bf16.msra.mxu0 0
  %1280 = vmatprep.subr.bf16.mxu0 0
  %1281 = vmatpush1.bf16.msra.mxu0 0
  %1282 = vmatprep.subr.bf16.mxu0 0
  %1283 = vmatpush1.bf16.msra.mxu0 0
  %1284 = vmatprep.subr.bf16.mxu0 0
  %1285 = vmatpush1.bf16.msra.mxu0 0
  %1286 = vmatprep.subr.bf16.mxu0 0
  %1287 = vmatpush1.bf16.msra.mxu0 0
  %1288 = vmatprep.subr.bf16.mxu0 0
  %1289 = vmatpush1.bf16.msra.mxu0 0
  %1290 = vmatprep.subr.bf16.mxu0 0
  %1291 = vmatpush1.bf16.msra.mxu0 0
  %1292 = vmatprep.mubr.bf16.mxu0 0
  %1293 = vmatmul.mubr.bf16.gmra.mrb[0].mxu0 %v396
  %v1294 = vpop.f32.mrb[0].mxu0
  %v1295 = vadd.f32 0.0, %v1294
  %v1296 = vpop.f32.mrb[0].mxu0
  %v1297 = vpop.f32.mrb[0].mxu0
  %v1298 = vpop.f32.mrb[0].mxu0
  %1299 = vdwg.mxu0
  %v1300 = vadd.f32 %v1249, %v1295
  %1301 = vrot.lane.b32.xlu0 %v85, 1
  %v1302 = vpop.permute.xlu0 %1301
  %v1303 = vmul.f32 %v1302, %v276
  %v1304 = vpack.c.bf16 %v1303, %v1303
  %v1306 = vand.u32 %v1304, %v120
  %1308 = vmatprep.subr.bf16.mxu0 0
  %1309 = vmatpush1.bf16.msra.mxu0 %v1306
  %1310 = vmatprep.subr.bf16.mxu0 0
  %1311 = vmatpush1.bf16.msra.mxu0 0
  %1312 = vmatprep.subr.bf16.mxu0 0
  %1313 = vmatpush1.bf16.msra.mxu0 0
  %1314 = vmatprep.subr.bf16.mxu0 0
  %1315 = vmatpush1.bf16.msra.mxu0 0
  %1316 = vmatprep.subr.bf16.mxu0 0
  %1317 = vmatpush1.bf16.msra.mxu0 0
  %1318 = vmatprep.subr.bf16.mxu0 0
  %1319 = vmatpush1.bf16.msra.mxu0 0
  %1320 = vmatprep.subr.bf16.mxu0 0
  %1321 = vmatpush1.bf16.msra.mxu0 0
  %1322 = vmatprep.subr.bf16.mxu0 0
  %1323 = vmatpush1.bf16.msra.mxu0 0
  %1324 = vmatprep.subr.bf16.mxu0 0
  %1325 = vmatpush1.bf16.msra.mxu0 0
  %1326 = vmatprep.subr.bf16.mxu0 0
  %1327 = vmatpush1.bf16.msra.mxu0 0
  %1328 = vmatprep.subr.bf16.mxu0 0
  %1329 = vmatpush1.bf16.msra.mxu0 0
  %1330 = vmatprep.subr.bf16.mxu0 0
  %1331 = vmatpush1.bf16.msra.mxu0 0
  %1332 = vmatprep.subr.bf16.mxu0 0
  %1333 = vmatpush1.bf16.msra.mxu0 0
  %1334 = vmatprep.subr.bf16.mxu0 0
  %1335 = vmatpush1.bf16.msra.mxu0 0
  %1336 = vmatprep.subr.bf16.mxu0 0
  %1337 = vmatpush1.bf16.msra.mxu0 0
  %1338 = vmatprep.subr.bf16.mxu0 0
  %1339 = vmatpush1.bf16.msra.mxu0 0
  %1340 = vmatprep.mubr.bf16.mxu0 0
  %1341 = vmatmul.mubr.bf16.gmra.mrb[0].mxu0 %v452
  %v1342 = vpop.f32.mrb[0].mxu0
  %v1343 = vadd.f32 0.0, %v1342
  %v1344 = vpop.f32.mrb[0].mxu0
  %v1345 = vpop.f32.mrb[0].mxu0
  %v1346 = vpop.f32.mrb[0].mxu0
  %1347 = vdwg.mxu0
  %v1348 = vadd.f32 %v1300, %v1343
  %v1349 = vmul.f32 %v81, %v333
  %v1350 = vpack.c.bf16 %v1349, %v1349
  %v1352 = vrot.slane %v1350, 2
  %v1354 = vand.u32 %v1352, %v120
  %1356 = vmatprep.subr.bf16.mxu0 0
  %1357 = vmatpush1.bf16.msra.mxu0 %v1354
  %1358 = vmatprep.subr.bf16.mxu0 0
  %1359 = vmatpush1.bf16.msra.mxu0 0
  %1360 = vmatprep.subr.bf16.mxu0 0
  %1361 = vmatpush1.bf16.msra.mxu0 0
  %1362 = vmatprep.subr.bf16.mxu0 0
  %1363 = vmatpush1.bf16.msra.mxu0 0
  %1364 = vmatprep.subr.bf16.mxu0 0
  %1365 = vmatpush1.bf16.msra.mxu0 0
  %1366 = vmatprep.subr.bf16.mxu0 0
  %1367 = vmatpush1.bf16.msra.mxu0 0
  %1368 = vmatprep.subr.bf16.mxu0 0
  %1369 = vmatpush1.bf16.msra.mxu0 0
  %1370 = vmatprep.subr.bf16.mxu0 0
  %1371 = vmatpush1.bf16.msra.mxu0 0
  %1372 = vmatprep.subr.bf16.mxu0 0
  %1373 = vmatpush1.bf16.msra.mxu0 0
  %1374 = vmatprep.subr.bf16.mxu0 0
  %1375 = vmatpush1.bf16.msra.mxu0 0
  %1376 = vmatprep.subr.bf16.mxu0 0
  %1377 = vmatpush1.bf16.msra.mxu0 0
  %1378 = vmatprep.subr.bf16.mxu0 0
  %1379 = vmatpush1.bf16.msra.mxu0 0
  %1380 = vmatprep.subr.bf16.mxu0 0
  %1381 = vmatpush1.bf16.msra.mxu0 0
  %1382 = vmatprep.subr.bf16.mxu0 0
  %1383 = vmatpush1.bf16.msra.mxu0 0
  %1384 = vmatprep.subr.bf16.mxu0 0
  %1385 = vmatpush1.bf16.msra.mxu0 0
  %1386 = vmatprep.subr.bf16.mxu0 0
  %1387 = vmatpush1.bf16.msra.mxu0 0
  %1388 = vmatprep.mubr.bf16.mxu0 0
  %1389 = vmatmul.mubr.bf16.gmra.mrb[0].mxu0 %v505
  %v1390 = vpop.f32.mrb[0].mxu0
  %v1391 = vadd.f32 0.0, %v1390
  %v1392 = vpop.f32.mrb[0].mxu0
  %v1393 = vpop.f32.mrb[0].mxu0
  %v1394 = vpop.f32.mrb[0].mxu0
  %1395 = vdwg.mxu0
  %v1396 = vadd.f32 %v1348, %v1391
  %v1397 = vmul.f32 %v82, %v333
  %v1398 = vpack.c.bf16 %v1397, %v1349
  %v1400 = vshrl.u32 %v1398, 16
  %v1402 = vrot.slane %v1400, 3
  %v1403 = vshll.u32 %v1398, 16
  %v1405 = vrot.slane %v1403, 4
  %v1406 = vor.u32 %v1402, %v1405
  %v1408 = vand.u32 %v1406, %v120
  %1410 = vmatprep.subr.bf16.mxu0 0
  %1411 = vmatpush1.bf16.msra.mxu0 %v1408
  %1412 = vmatprep.subr.bf16.mxu0 0
  %1413 = vmatpush1.bf16.msra.mxu0 0
  %1414 = vmatprep.subr.bf16.mxu0 0
  %1415 = vmatpush1.bf16.msra.mxu0 0
  %1416 = vmatprep.subr.bf16.mxu0 0
  %1417 = vmatpush1.bf16.msra.mxu0 0
  %1418 = vmatprep.subr.bf16.mxu0 0
  %1419 = vmatpush1.bf16.msra.mxu0 0
  %1420 = vmatprep.subr.bf16.mxu0 0
  %1421 = vmatpush1.bf16.msra.mxu0 0
  %1422 = vmatprep.subr.bf16.mxu0 0
  %1423 = vmatpush1.bf16.msra.mxu0 0
  %1424 = vmatprep.subr.bf16.mxu0 0
  %1425 = vmatpush1.bf16.msra.mxu0 0
  %1426 = vmatprep.subr.bf16.mxu0 0
  %1427 = vmatpush1.bf16.msra.mxu0 0
  %1428 = vmatprep.subr.bf16.mxu0 0
  %1429 = vmatpush1.bf16.msra.mxu0 0
  %1430 = vmatprep.subr.bf16.mxu0 0
  %1431 = vmatpush1.bf16.msra.mxu0 0
  %1432 = vmatprep.subr.bf16.mxu0 0
  %1433 = vmatpush1.bf16.msra.mxu0 0
  %1434 = vmatprep.subr.bf16.mxu0 0
  %1435 = vmatpush1.bf16.msra.mxu0 0
  %1436 = vmatprep.subr.bf16.mxu0 0
  %1437 = vmatpush1.bf16.msra.mxu0 0
  %1438 = vmatprep.subr.bf16.mxu0 0
  %1439 = vmatpush1.bf16.msra.mxu0 0
  %1440 = vmatprep.subr.bf16.mxu0 0
  %1441 = vmatpush1.bf16.msra.mxu0 0
  %1442 = vmatprep.mubr.bf16.mxu0 0
  %1443 = vmatmul.mubr.bf16.gmra.mrb[0].mxu0 %v564
  %v1444 = vpop.f32.mrb[0].mxu0
  %v1445 = vadd.f32 0.0, %v1444
  %v1446 = vpop.f32.mrb[0].mxu0
  %v1447 = vpop.f32.mrb[0].mxu0
  %v1448 = vpop.f32.mrb[0].mxu0
  %1449 = vdwg.mxu0
  %v1450 = vadd.f32 %v1396, %v1445
  %v1451 = vadd.f32 %v1450, %v613
  %1452 = vmatprep.subr.bf16.mxu0 0
  %1453 = vmatpush1.bf16.msra.mxu0 %v937
  %1454 = vmatprep.subr.bf16.mxu0 0
  %1455 = vmatpush1.bf16.msra.mxu0 0
  %1456 = vmatprep.subr.bf16.mxu0 0
  %1457 = vmatpush1.bf16.msra.mxu0 0
  %1458 = vmatprep.subr.bf16.mxu0 0
  %1459 = vmatpush1.bf16.msra.mxu0 0
  %1460 = vmatprep.subr.bf16.mxu0 0
  %1461 = vmatpush1.bf16.msra.mxu0 0
  %1462 = vmatprep.subr.bf16.mxu0 0
  %1463 = vmatpush1.bf16.msra.mxu0 0
  %1464 = vmatprep.subr.bf16.mxu0 0
  %1465 = vmatpush1.bf16.msra.mxu0 0
  %1466 = vmatprep.subr.bf16.mxu0 0
  %1467 = vmatpush1.bf16.msra.mxu0 0
  %1468 = vmatprep.subr.bf16.mxu0 0
  %1469 = vmatpush1.bf16.msra.mxu0 0
  %1470 = vmatprep.subr.bf16.mxu0 0
  %1471 = vmatpush1.bf16.msra.mxu0 0
  %1472 = vmatprep.subr.bf16.mxu0 0
  %1473 = vmatpush1.bf16.msra.mxu0 0
  %1474 = vmatprep.subr.bf16.mxu0 0
  %1475 = vmatpush1.bf16.msra.mxu0 0
  %1476 = vmatprep.subr.bf16.mxu0 0
  %1477 = vmatpush1.bf16.msra.mxu0 0
  %1478 = vmatprep.subr.bf16.mxu0 0
  %1479 = vmatpush1.bf16.msra.mxu0 0
  %1480 = vmatprep.subr.bf16.mxu0 0
  %1481 = vmatpush1.bf16.msra.mxu0 0
  %1482 = vmatprep.subr.bf16.mxu0 0
  %1483 = vmatpush1.bf16.msra.mxu0 0
  %1484 = vmatprep.mubr.bf16.mxu0 0
  %1485 = vmatmul.mubr.bf16.gmra.mrb[0].mxu0 %v115
  %v1486 = vpop.f32.mrb[0].mxu0
  %v1487 = vadd.f32 0.0, %v1486
  %v1488 = vpop.f32.mrb[0].mxu0
  %v1489 = vpop.f32.mrb[0].mxu0
  %v1490 = vpop.f32.mrb[0].mxu0
  %1491 = vdwg.mxu0
  %1492 = vmatprep.subr.bf16.mxu0 0
  %1493 = vmatpush1.bf16.msra.mxu0 %v567
  %1494 = vmatprep.subr.bf16.mxu0 0
  %1495 = vmatpush1.bf16.msra.mxu0 0
  %1496 = vmatprep.subr.bf16.mxu0 0
  %1497 = vmatpush1.bf16.msra.mxu0 0
  %1498 = vmatprep.subr.bf16.mxu0 0
  %1499 = vmatpush1.bf16.msra.mxu0 0
  %1500 = vmatprep.subr.bf16.mxu0 0
  %1501 = vmatpush1.bf16.msra.mxu0 0
  %1502 = vmatprep.subr.bf16.mxu0 0
  %1503 = vmatpush1.bf16.msra.mxu0 0
  %1504 = vmatprep.subr.bf16.mxu0 0
  %1505 = vmatpush1.bf16.msra.mxu0 0
  %1506 = vmatprep.subr.bf16.mxu0 0
  %1507 = vmatpush1.bf16.msra.mxu0 0
  %1508 = vmatprep.subr.bf16.mxu0 0
  %1509 = vmatpush1.bf16.msra.mxu0 0
  %1510 = vmatprep.subr.bf16.mxu0 0
  %1511 = vmatpush1.bf16.msra.mxu0 0
  %1512 = vmatprep.subr.bf16.mxu0 0
  %1513 = vmatpush1.bf16.msra.mxu0 0
  %1514 = vmatprep.subr.bf16.mxu0 0
  %1515 = vmatpush1.bf16.msra.mxu0 0
  %1516 = vmatprep.subr.bf16.mxu0 0
  %1517 = vmatpush1.bf16.msra.mxu0 0
  %1518 = vmatprep.subr.bf16.mxu0 0
  %1519 = vmatpush1.bf16.msra.mxu0 0
  %1520 = vmatprep.subr.bf16.mxu0 0
  %1521 = vmatpush1.bf16.msra.mxu0 0
  %1522 = vmatprep.subr.bf16.mxu0 0
  %1523 = vmatpush1.bf16.msra.mxu0 0
  %1524 = vmatprep.mubr.bf16.mxu0 0
  %1525 = vmatmul.mubr.bf16.gmra.mrb[0].mxu0 %v165
  %v1526 = vpop.f32.mrb[0].mxu0
  %v1527 = vadd.f32 %v1487, %v1526
  %v1528 = vpop.f32.mrb[0].mxu0
  %v1529 = vpop.f32.mrb[0].mxu0
  %v1530 = vpop.f32.mrb[0].mxu0
  %1531 = vdwg.mxu0
  %1532 = vmatprep.subr.bf16.mxu0 0
  %1533 = vmatpush1.bf16.msra.mxu0 %v989
  %1534 = vmatprep.subr.bf16.mxu0 0
  %1535 = vmatpush1.bf16.msra.mxu0 0
  %1536 = vmatprep.subr.bf16.mxu0 0
  %1537 = vmatpush1.bf16.msra.mxu0 0
  %1538 = vmatprep.subr.bf16.mxu0 0
  %1539 = vmatpush1.bf16.msra.mxu0 0
  %1540 = vmatprep.subr.bf16.mxu0 0
  %1541 = vmatpush1.bf16.msra.mxu0 0
  %1542 = vmatprep.subr.bf16.mxu0 0
  %1543 = vmatpush1.bf16.msra.mxu0 0
  %1544 = vmatprep.subr.bf16.mxu0 0
  %1545 = vmatpush1.bf16.msra.mxu0 0
  %1546 = vmatprep.subr.bf16.mxu0 0
  %1547 = vmatpush1.bf16.msra.mxu0 0
  %1548 = vmatprep.subr.bf16.mxu0 0
  %1549 = vmatpush1.bf16.msra.mxu0 0
  %1550 = vmatprep.subr.bf16.mxu0 0
  %1551 = vmatpush1.bf16.msra.mxu0 0
  %1552 = vmatprep.subr.bf16.mxu0 0
  %1553 = vmatpush1.bf16.msra.mxu0 0
  %1554 = vmatprep.subr.bf16.mxu0 0
  %1555 = vmatpush1.bf16.msra.mxu0 0
  %1556 = vmatprep.subr.bf16.mxu0 0
  %1557 = vmatpush1.bf16.msra.mxu0 0
  %1558 = vmatprep.subr.bf16.mxu0 0
  %1559 = vmatpush1.bf16.msra.mxu0 0
  %1560 = vmatprep.subr.bf16.mxu0 0
  %1561 = vmatpush1.bf16.msra.mxu0 0
  %1562 = vmatprep.subr.bf16.mxu0 0
  %1563 = vmatpush1.bf16.msra.mxu0 0
  %1564 = vmatprep.mubr.bf16.mxu0 0
  %1565 = vmatmul.mubr.bf16.gmra.mrb[0].mxu0 %v221
  %v1566 = vpop.f32.mrb[0].mxu0
  %v1567 = vadd.f32 0.0, %v1566
  %v1568 = vpop.f32.mrb[0].mxu0
  %v1569 = vpop.f32.mrb[0].mxu0
  %v1570 = vpop.f32.mrb[0].mxu0
  %1571 = vdwg.mxu0
  %v1572 = vadd.f32 %v1527, %v1567
  %1573 = vmatprep.subr.bf16.mxu0 0
  %1574 = vmatpush1.bf16.msra.mxu0 %v1258
  %1575 = vmatprep.subr.bf16.mxu0 0
  %1576 = vmatpush1.bf16.msra.mxu0 0
  %1577 = vmatprep.subr.bf16.mxu0 0
  %1578 = vmatpush1.bf16.msra.mxu0 0
  %1579 = vmatprep.subr.bf16.mxu0 0
  %1580 = vmatpush1.bf16.msra.mxu0 0
  %1581 = vmatprep.subr.bf16.mxu0 0
  %1582 = vmatpush1.bf16.msra.mxu0 0
  %1583 = vmatprep.subr.bf16.mxu0 0
  %1584 = vmatpush1.bf16.msra.mxu0 0
  %1585 = vmatprep.subr.bf16.mxu0 0
  %1586 = vmatpush1.bf16.msra.mxu0 0
  %1587 = vmatprep.subr.bf16.mxu0 0
  %1588 = vmatpush1.bf16.msra.mxu0 0
  %1589 = vmatprep.subr.bf16.mxu0 0
  %1590 = vmatpush1.bf16.msra.mxu0 0
  %1591 = vmatprep.subr.bf16.mxu0 0
  %1592 = vmatpush1.bf16.msra.mxu0 0
  %1593 = vmatprep.subr.bf16.mxu0 0
  %1594 = vmatpush1.bf16.msra.mxu0 0
  %1595 = vmatprep.subr.bf16.mxu0 0
  %1596 = vmatpush1.bf16.msra.mxu0 0
  %1597 = vmatprep.subr.bf16.mxu0 0
  %1598 = vmatpush1.bf16.msra.mxu0 0
  %1599 = vmatprep.subr.bf16.mxu0 0
  %1600 = vmatpush1.bf16.msra.mxu0 0
  %1601 = vmatprep.subr.bf16.mxu0 0
  %1602 = vmatpush1.bf16.msra.mxu0 0
  %1603 = vmatprep.subr.bf16.mxu0 0
  %1604 = vmatpush1.bf16.msra.mxu0 0
  %1605 = vmatprep.mubr.bf16.mxu0 0
  %1606 = vmatmul.mubr.bf16.gmra.mrb[0].mxu0 %v283
  %v1607 = vpop.f32.mrb[0].mxu0
  %v1608 = vadd.f32 0.0, %v1607
  %v1609 = vpop.f32.mrb[0].mxu0
  %v1610 = vpop.f32.mrb[0].mxu0
  %v1611 = vpop.f32.mrb[0].mxu0
  %1612 = vdwg.mxu0
  %v1613 = vadd.f32 %v1572, %v1608
  %v1614 = vpack.c.bf16 %v1349, %v1204
  %v1616 = vrot.slane %v1614, 3
  %v1618 = vand.u32 %v1616, %v120
  %1620 = vmatprep.subr.bf16.mxu0 0
  %1621 = vmatpush1.bf16.msra.mxu0 %v1618
  %1622 = vmatprep.subr.bf16.mxu0 0
  %1623 = vmatpush1.bf16.msra.mxu0 0
  %1624 = vmatprep.subr.bf16.mxu0 0
  %1625 = vmatpush1.bf16.msra.mxu0 0
  %1626 = vmatprep.subr.bf16.mxu0 0
  %1627 = vmatpush1.bf16.msra.mxu0 0
  %1628 = vmatprep.subr.bf16.mxu0 0
  %1629 = vmatpush1.bf16.msra.mxu0 0
  %1630 = vmatprep.subr.bf16.mxu0 0
  %1631 = vmatpush1.bf16.msra.mxu0 0
  %1632 = vmatprep.subr.bf16.mxu0 0
  %1633 = vmatpush1.bf16.msra.mxu0 0
  %1634 = vmatprep.subr.bf16.mxu0 0
  %1635 = vmatpush1.bf16.msra.mxu0 0
  %1636 = vmatprep.subr.bf16.mxu0 0
  %1637 = vmatpush1.bf16.msra.mxu0 0
  %1638 = vmatprep.subr.bf16.mxu0 0
  %1639 = vmatpush1.bf16.msra.mxu0 0
  %1640 = vmatprep.subr.bf16.mxu0 0
  %1641 = vmatpush1.bf16.msra.mxu0 0
  %1642 = vmatprep.subr.bf16.mxu0 0
  %1643 = vmatpush1.bf16.msra.mxu0 0
  %1644 = vmatprep.subr.bf16.mxu0 0
  %1645 = vmatpush1.bf16.msra.mxu0 0
  %1646 = vmatprep.subr.bf16.mxu0 0
  %1647 = vmatpush1.bf16.msra.mxu0 0
  %1648 = vmatprep.subr.bf16.mxu0 0
  %1649 = vmatpush1.bf16.msra.mxu0 0
  %1650 = vmatprep.subr.bf16.mxu0 0
  %1651 = vmatpush1.bf16.msra.mxu0 0
  %1652 = vmatprep.mubr.bf16.mxu0 0
  %1653 = vmatmul.mubr.bf16.gmra.mrb[0].mxu0 %v340
  %v1654 = vpop.f32.mrb[0].mxu0
  %v1655 = vadd.f32 0.0, %v1654
  %v1656 = vpop.f32.mrb[0].mxu0
  %v1657 = vpop.f32.mrb[0].mxu0
  %v1658 = vpop.f32.mrb[0].mxu0
  %1659 = vdwg.mxu0
  %v1660 = vadd.f32 %v1613, %v1655
  %v1662 = vshrl.u32 %v1350, 16
  %v1664 = vshll.u32 %v1350, 16
  %v1666 = vrot.slane %v1664, 1
  %v1667 = vor.u32 %v1662, %v1666
  %v1669 = vand.u32 %v1667, %v120
  %1671 = vmatprep.subr.bf16.mxu0 0
  %1672 = vmatpush1.bf16.msra.mxu0 %v1669
  %1673 = vmatprep.subr.bf16.mxu0 0
  %1674 = vmatpush1.bf16.msra.mxu0 0
  %1675 = vmatprep.subr.bf16.mxu0 0
  %1676 = vmatpush1.bf16.msra.mxu0 0
  %1677 = vmatprep.subr.bf16.mxu0 0
  %1678 = vmatpush1.bf16.msra.mxu0 0
  %1679 = vmatprep.subr.bf16.mxu0 0
  %1680 = vmatpush1.bf16.msra.mxu0 0
  %1681 = vmatprep.subr.bf16.mxu0 0
  %1682 = vmatpush1.bf16.msra.mxu0 0
  %1683 = vmatprep.subr.bf16.mxu0 0
  %1684 = vmatpush1.bf16.msra.mxu0 0
  %1685 = vmatprep.subr.bf16.mxu0 0
  %1686 = vmatpush1.bf16.msra.mxu0 0
  %1687 = vmatprep.subr.bf16.mxu0 0
  %1688 = vmatpush1.bf16.msra.mxu0 0
  %1689 = vmatprep.subr.bf16.mxu0 0
  %1690 = vmatpush1.bf16.msra.mxu0 0
  %1691 = vmatprep.subr.bf16.mxu0 0
  %1692 = vmatpush1.bf16.msra.mxu0 0
  %1693 = vmatprep.subr.bf16.mxu0 0
  %1694 = vmatpush1.bf16.msra.mxu0 0
  %1695 = vmatprep.subr.bf16.mxu0 0
  %1696 = vmatpush1.bf16.msra.mxu0 0
  %1697 = vmatprep.subr.bf16.mxu0 0
  %1698 = vmatpush1.bf16.msra.mxu0 0
  %1699 = vmatprep.subr.bf16.mxu0 0
  %1700 = vmatpush1.bf16.msra.mxu0 0
  %1701 = vmatprep.subr.bf16.mxu0 0
  %1702 = vmatpush1.bf16.msra.mxu0 0
  %1703 = vmatprep.mubr.bf16.mxu0 0
  %1704 = vmatmul.mubr.bf16.gmra.mrb[0].mxu0 %v396
  %v1705 = vpop.f32.mrb[0].mxu0
  %v1706 = vadd.f32 0.0, %v1705
  %v1707 = vpop.f32.mrb[0].mxu0
  %v1708 = vpop.f32.mrb[0].mxu0
  %v1709 = vpop.f32.mrb[0].mxu0
  %1710 = vdwg.mxu0
  %v1711 = vadd.f32 %v1660, %v1706
  %1712 = vmatprep.subr.bf16.mxu0 0
  %1713 = vmatpush1.bf16.msra.mxu0 %v1408
  %1714 = vmatprep.subr.bf16.mxu0 0
  %1715 = vmatpush1.bf16.msra.mxu0 0
  %1716 = vmatprep.subr.bf16.mxu0 0
  %1717 = vmatpush1.bf16.msra.mxu0 0
  %1718 = vmatprep.subr.bf16.mxu0 0
  %1719 = vmatpush1.bf16.msra.mxu0 0
  %1720 = vmatprep.subr.bf16.mxu0 0
  %1721 = vmatpush1.bf16.msra.mxu0 0
  %1722 = vmatprep.subr.bf16.mxu0 0
  %1723 = vmatpush1.bf16.msra.mxu0 0
  %1724 = vmatprep.subr.bf16.mxu0 0
  %1725 = vmatpush1.bf16.msra.mxu0 0
  %1726 = vmatprep.subr.bf16.mxu0 0
  %1727 = vmatpush1.bf16.msra.mxu0 0
  %1728 = vmatprep.subr.bf16.mxu0 0
  %1729 = vmatpush1.bf16.msra.mxu0 0
  %1730 = vmatprep.subr.bf16.mxu0 0
  %1731 = vmatpush1.bf16.msra.mxu0 0
  %1732 = vmatprep.subr.bf16.mxu0 0
  %1733 = vmatpush1.bf16.msra.mxu0 0
  %1734 = vmatprep.subr.bf16.mxu0 0
  %1735 = vmatpush1.bf16.msra.mxu0 0
  %1736 = vmatprep.subr.bf16.mxu0 0
  %1737 = vmatpush1.bf16.msra.mxu0 0
  %1738 = vmatprep.subr.bf16.mxu0 0
  %1739 = vmatpush1.bf16.msra.mxu0 0
  %1740 = vmatprep.subr.bf16.mxu0 0
  %1741 = vmatpush1.bf16.msra.mxu0 0
  %1742 = vmatprep.subr.bf16.mxu0 0
  %1743 = vmatpush1.bf16.msra.mxu0 0
  %1744 = vmatprep.mubr.bf16.mxu0 0
  %1745 = vmatmul.mubr.bf16.gmra.mrb[0].mxu0 %v452
  %v1746 = vpop.f32.mrb[0].mxu0
  %v1747 = vadd.f32 0.0, %v1746
  %v1748 = vpop.f32.mrb[0].mxu0
  %v1749 = vpop.f32.mrb[0].mxu0
  %v1750 = vpop.f32.mrb[0].mxu0
  %1751 = vdwg.mxu0
  %v1752 = vadd.f32 %v1711, %v1747
  %v1753 = vpack.c.bf16 %v1397, %v1397
  %v1755 = vrot.slane %v1753, 1
  %v1757 = vand.u32 %v1755, %v120
  %1759 = vmatprep.subr.bf16.mxu0 0
  %1760 = vmatpush1.bf16.msra.mxu0 %v1757
  %1761 = vmatprep.subr.bf16.mxu0 0
  %1762 = vmatpush1.bf16.msra.mxu0 0
  %1763 = vmatprep.subr.bf16.mxu0 0
  %1764 = vmatpush1.bf16.msra.mxu0 0
  %1765 = vmatprep.subr.bf16.mxu0 0
  %1766 = vmatpush1.bf16.msra.mxu0 0
  %1767 = vmatprep.subr.bf16.mxu0 0
  %1768 = vmatpush1.bf16.msra.mxu0 0
  %1769 = vmatprep.subr.bf16.mxu0 0
  %1770 = vmatpush1.bf16.msra.mxu0 0
  %1771 = vmatprep.subr.bf16.mxu0 0
  %1772 = vmatpush1.bf16.msra.mxu0 0
  %1773 = vmatprep.subr.bf16.mxu0 0
  %1774 = vmatpush1.bf16.msra.mxu0 0
  %1775 = vmatprep.subr.bf16.mxu0 0
  %1776 = vmatpush1.bf16.msra.mxu0 0
  %1777 = vmatprep.subr.bf16.mxu0 0
  %1778 = vmatpush1.bf16.msra.mxu0 0
  %1779 = vmatprep.subr.bf16.mxu0 0
  %1780 = vmatpush1.bf16.msra.mxu0 0
  %1781 = vmatprep.subr.bf16.mxu0 0
  %1782 = vmatpush1.bf16.msra.mxu0 0
  %1783 = vmatprep.subr.bf16.mxu0 0
  %1784 = vmatpush1.bf16.msra.mxu0 0
  %1785 = vmatprep.subr.bf16.mxu0 0
  %1786 = vmatpush1.bf16.msra.mxu0 0
  %1787 = vmatprep.subr.bf16.mxu0 0
  %1788 = vmatpush1.bf16.msra.mxu0 0
  %1789 = vmatprep.subr.bf16.mxu0 0
  %1790 = vmatpush1.bf16.msra.mxu0 0
  %1791 = vmatprep.mubr.bf16.mxu0 0
  %1792 = vmatmul.mubr.bf16.gmra.mrb[0].mxu0 %v505
  %v1793 = vpop.f32.mrb[0].mxu0
  %v1794 = vadd.f32 0.0, %v1793
  %v1795 = vpop.f32.mrb[0].mxu0
  %v1796 = vpop.f32.mrb[0].mxu0
  %v1797 = vpop.f32.mrb[0].mxu0
  %1798 = vdwg.mxu0
  %v1799 = vadd.f32 %v1752, %v1794
  %v1801 = vshrl.u32 %v1753, 16
  %v1803 = vrot.slane %v1801, 2
  %v1804 = vshll.u32 %v1753, 16
  %v1806 = vrot.slane %v1804, 3
  %v1807 = vor.u32 %v1803, %v1806
  %v1809 = vand.u32 %v1807, %v120
  %1811 = vmatprep.subr.bf16.mxu0 0
  %1812 = vmatpush1.bf16.msra.mxu0 %v1809
  %1813 = vmatprep.subr.bf16.mxu0 0
  %1814 = vmatpush1.bf16.msra.mxu0 0
  %1815 = vmatprep.subr.bf16.mxu0 0
  %1816 = vmatpush1.bf16.msra.mxu0 0
  %1817 = vmatprep.subr.bf16.mxu0 0
  %1818 = vmatpush1.bf16.msra.mxu0 0
  %1819 = vmatprep.subr.bf16.mxu0 0
  %1820 = vmatpush1.bf16.msra.mxu0 0
  %1821 = vmatprep.subr.bf16.mxu0 0
  %1822 = vmatpush1.bf16.msra.mxu0 0
  %1823 = vmatprep.subr.bf16.mxu0 0
  %1824 = vmatpush1.bf16.msra.mxu0 0
  %1825 = vmatprep.subr.bf16.mxu0 0
  %1826 = vmatpush1.bf16.msra.mxu0 0
  %1827 = vmatprep.subr.bf16.mxu0 0
  %1828 = vmatpush1.bf16.msra.mxu0 0
  %1829 = vmatprep.subr.bf16.mxu0 0
  %1830 = vmatpush1.bf16.msra.mxu0 0
  %1831 = vmatprep.subr.bf16.mxu0 0
  %1832 = vmatpush1.bf16.msra.mxu0 0
  %1833 = vmatprep.subr.bf16.mxu0 0
  %1834 = vmatpush1.bf16.msra.mxu0 0
  %1835 = vmatprep.subr.bf16.mxu0 0
  %1836 = vmatpush1.bf16.msra.mxu0 0
  %1837 = vmatprep.subr.bf16.mxu0 0
  %1838 = vmatpush1.bf16.msra.mxu0 0
  %1839 = vmatprep.subr.bf16.mxu0 0
  %1840 = vmatpush1.bf16.msra.mxu0 0
  %1841 = vmatprep.subr.bf16.mxu0 0
  %1842 = vmatpush1.bf16.msra.mxu0 0
  %1843 = vmatprep.mubr.bf16.mxu0 0
  %1844 = vmatmul.mubr.bf16.gmra.mrb[0].mxu0 %v564
  %v1845 = vpop.f32.mrb[0].mxu0
  %v1846 = vadd.f32 0.0, %v1845
  %v1847 = vpop.f32.mrb[0].mxu0
  %v1848 = vpop.f32.mrb[0].mxu0
  %v1849 = vpop.f32.mrb[0].mxu0
  %1850 = vdwg.mxu0
  %v1851 = vadd.f32 %v1799, %v1846
  %v1852 = vadd.f32 %v1851, %v613
  %1853 = vrot.lane.b32.xlu0 %v1852, 5
  %v1854 = vpop.permute.xlu0 %1853
  %v1855 = vmul.f32 %v1854, %v93
  %v1856 = vpack.c.bf16 %v1855, %v1855
  %1857 = vrot.lane.b32.xlu0 %v1451, 4
  %v1858 = vpop.permute.xlu0 %1857
  %v1859 = vmul.f32 %v1858, %v107
  %v1860 = vpack.c.bf16 %v1859, %v1859
  %v1862 = vand.u32 %v1860, %v120
  %1864 = vmatprep.subr.bf16.mxu0 0
  %1865 = vmatpush1.bf16.msra.mxu0 %v1862
  %1866 = vmatprep.subr.bf16.mxu0 0
  %1867 = vmatpush1.bf16.msra.mxu0 0
  %1868 = vmatprep.subr.bf16.mxu0 0
  %1869 = vmatpush1.bf16.msra.mxu0 0
  %1870 = vmatprep.subr.bf16.mxu0 0
  %1871 = vmatpush1.bf16.msra.mxu0 0
  %1872 = vmatprep.subr.bf16.mxu0 0
  %1873 = vmatpush1.bf16.msra.mxu0 0
  %1874 = vmatprep.subr.bf16.mxu0 0
  %1875 = vmatpush1.bf16.msra.mxu0 0
  %1876 = vmatprep.subr.bf16.mxu0 0
  %1877 = vmatpush1.bf16.msra.mxu0 0
  %1878 = vmatprep.subr.bf16.mxu0 0
  %1879 = vmatpush1.bf16.msra.mxu0 0
  %1880 = vmatprep.subr.bf16.mxu0 0
  %1881 = vmatpush1.bf16.msra.mxu0 0
  %1882 = vmatprep.subr.bf16.mxu0 0
  %1883 = vmatpush1.bf16.msra.mxu0 0
  %1884 = vmatprep.subr.bf16.mxu0 0
  %1885 = vmatpush1.bf16.msra.mxu0 0
  %1886 = vmatprep.subr.bf16.mxu0 0
  %1887 = vmatpush1.bf16.msra.mxu0 0
  %1888 = vmatprep.subr.bf16.mxu0 0
  %1889 = vmatpush1.bf16.msra.mxu0 0
  %1890 = vmatprep.subr.bf16.mxu0 0
  %1891 = vmatpush1.bf16.msra.mxu0 0
  %1892 = vmatprep.subr.bf16.mxu0 0
  %1893 = vmatpush1.bf16.msra.mxu0 0
  %1894 = vmatprep.subr.bf16.mxu0 0
  %1895 = vmatpush1.bf16.msra.mxu0 0
  %1896 = vmatprep.mubr.bf16.mxu0 0
  %1897 = vmatmul.mubr.bf16.gmra.mrb[0].mxu0 %v115
  %v1898 = vpop.f32.mrb[0].mxu0
  %v1899 = vadd.f32 0.0, %v1898
  %v1900 = vpop.f32.mrb[0].mxu0
  %v1901 = vpop.f32.mrb[0].mxu0
  %v1902 = vpop.f32.mrb[0].mxu0
  %1903 = vdwg.mxu0
  %v1905 = vand.u32 %v1856, %v120
  %1907 = vmatprep.subr.bf16.mxu0 0
  %1908 = vmatpush1.bf16.msra.mxu0 %v1905
  %1909 = vmatprep.subr.bf16.mxu0 0
  %1910 = vmatpush1.bf16.msra.mxu0 0
  %1911 = vmatprep.subr.bf16.mxu0 0
  %1912 = vmatpush1.bf16.msra.mxu0 0
  %1913 = vmatprep.subr.bf16.mxu0 0
  %1914 = vmatpush1.bf16.msra.mxu0 0
  %1915 = vmatprep.subr.bf16.mxu0 0
  %1916 = vmatpush1.bf16.msra.mxu0 0
  %1917 = vmatprep.subr.bf16.mxu0 0
  %1918 = vmatpush1.bf16.msra.mxu0 0
  %1919 = vmatprep.subr.bf16.mxu0 0
  %1920 = vmatpush1.bf16.msra.mxu0 0
  %1921 = vmatprep.subr.bf16.mxu0 0
  %1922 = vmatpush1.bf16.msra.mxu0 0
  %1923 = vmatprep.subr.bf16.mxu0 0
  %1924 = vmatpush1.bf16.msra.mxu0 0
  %1925 = vmatprep.subr.bf16.mxu0 0
  %1926 = vmatpush1.bf16.msra.mxu0 0
  %1927 = vmatprep.subr.bf16.mxu0 0
  %1928 = vmatpush1.bf16.msra.mxu0 0
  %1929 = vmatprep.subr.bf16.mxu0 0
  %1930 = vmatpush1.bf16.msra.mxu0 0
  %1931 = vmatprep.subr.bf16.mxu0 0
  %1932 = vmatpush1.bf16.msra.mxu0 0
  %1933 = vmatprep.subr.bf16.mxu0 0
  %1934 = vmatpush1.bf16.msra.mxu0 0
  %1935 = vmatprep.subr.bf16.mxu0 0
  %1936 = vmatpush1.bf16.msra.mxu0 0
  %1937 = vmatprep.subr.bf16.mxu0 0
  %1938 = vmatpush1.bf16.msra.mxu0 0
  %1939 = vmatprep.mubr.bf16.mxu0 0
  %1940 = vmatmul.mubr.bf16.gmra.mrb[0].mxu0 %v165
  %v1941 = vpop.f32.mrb[0].mxu0
  %v1942 = vadd.f32 %v1899, %v1941
  %v1943 = vpop.f32.mrb[0].mxu0
  %v1944 = vpop.f32.mrb[0].mxu0
  %v1945 = vpop.f32.mrb[0].mxu0
  %1946 = vdwg.mxu0
  %1947 = vrot.lane.b32.xlu0 %v1852, 4
  %v1948 = vpop.permute.xlu0 %1947
  %v1949 = vmul.f32 %v1948, %v107
  %v1950 = vpack.c.bf16 %v1949, %v1949
  %v1952 = vand.u32 %v1950, %v120
  %1954 = vmatprep.subr.bf16.mxu0 0
  %1955 = vmatpush1.bf16.msra.mxu0 %v1952
  %1956 = vmatprep.subr.bf16.mxu0 0
  %1957 = vmatpush1.bf16.msra.mxu0 0
  %1958 = vmatprep.subr.bf16.mxu0 0
  %1959 = vmatpush1.bf16.msra.mxu0 0
  %1960 = vmatprep.subr.bf16.mxu0 0
  %1961 = vmatpush1.bf16.msra.mxu0 0
  %1962 = vmatprep.subr.bf16.mxu0 0
  %1963 = vmatpush1.bf16.msra.mxu0 0
  %1964 = vmatprep.subr.bf16.mxu0 0
  %1965 = vmatpush1.bf16.msra.mxu0 0
  %1966 = vmatprep.subr.bf16.mxu0 0
  %1967 = vmatpush1.bf16.msra.mxu0 0
  %1968 = vmatprep.subr.bf16.mxu0 0
  %1969 = vmatpush1.bf16.msra.mxu0 0
  %1970 = vmatprep.subr.bf16.mxu0 0
  %1971 = vmatpush1.bf16.msra.mxu0 0
  %1972 = vmatprep.subr.bf16.mxu0 0
  %1973 = vmatpush1.bf16.msra.mxu0 0
  %1974 = vmatprep.subr.bf16.mxu0 0
  %1975 = vmatpush1.bf16.msra.mxu0 0
  %1976 = vmatprep.subr.bf16.mxu0 0
  %1977 = vmatpush1.bf16.msra.mxu0 0
  %1978 = vmatprep.subr.bf16.mxu0 0
  %1979 = vmatpush1.bf16.msra.mxu0 0
  %1980 = vmatprep.subr.bf16.mxu0 0
  %1981 = vmatpush1.bf16.msra.mxu0 0
  %1982 = vmatprep.subr.bf16.mxu0 0
  %1983 = vmatpush1.bf16.msra.mxu0 0
  %1984 = vmatprep.subr.bf16.mxu0 0
  %1985 = vmatpush1.bf16.msra.mxu0 0
  %1986 = vmatprep.mubr.bf16.mxu0 0
  %1987 = vmatmul.mubr.bf16.gmra.mrb[0].mxu0 %v221
  %v1988 = vpop.f32.mrb[0].mxu0
  %v1989 = vadd.f32 0.0, %v1988
  %v1990 = vpop.f32.mrb[0].mxu0
  %v1991 = vpop.f32.mrb[0].mxu0
  %v1992 = vpop.f32.mrb[0].mxu0
  %1993 = vdwg.mxu0
  %v1994 = vadd.f32 %v1942, %v1989
  %1995 = vrot.lane.b32.xlu0 %v1032, 1
  %v1996 = vpop.permute.xlu0 %1995
  %v1997 = vmul.f32 %v1996, %v276
  %v1998 = vpack.c.bf16 %v1997, %v1997
  %v2000 = vand.u32 %v1998, %v120
  %2002 = vmatprep.subr.bf16.mxu0 0
  %2003 = vmatpush1.bf16.msra.mxu0 %v2000
  %2004 = vmatprep.subr.bf16.mxu0 0
  %2005 = vmatpush1.bf16.msra.mxu0 0
  %2006 = vmatprep.subr.bf16.mxu0 0
  %2007 = vmatpush1.bf16.msra.mxu0 0
  %2008 = vmatprep.subr.bf16.mxu0 0
  %2009 = vmatpush1.bf16.msra.mxu0 0
  %2010 = vmatprep.subr.bf16.mxu0 0
  %2011 = vmatpush1.bf16.msra.mxu0 0
  %2012 = vmatprep.subr.bf16.mxu0 0
  %2013 = vmatpush1.bf16.msra.mxu0 0
  %2014 = vmatprep.subr.bf16.mxu0 0
  %2015 = vmatpush1.bf16.msra.mxu0 0
  %2016 = vmatprep.subr.bf16.mxu0 0
  %2017 = vmatpush1.bf16.msra.mxu0 0
  %2018 = vmatprep.subr.bf16.mxu0 0
  %2019 = vmatpush1.bf16.msra.mxu0 0
  %2020 = vmatprep.subr.bf16.mxu0 0
  %2021 = vmatpush1.bf16.msra.mxu0 0
  %2022 = vmatprep.subr.bf16.mxu0 0
  %2023 = vmatpush1.bf16.msra.mxu0 0
  %2024 = vmatprep.subr.bf16.mxu0 0
  %2025 = vmatpush1.bf16.msra.mxu0 0
  %2026 = vmatprep.subr.bf16.mxu0 0
  %2027 = vmatpush1.bf16.msra.mxu0 0
  %2028 = vmatprep.subr.bf16.mxu0 0
  %2029 = vmatpush1.bf16.msra.mxu0 0
  %2030 = vmatprep.subr.bf16.mxu0 0
  %2031 = vmatpush1.bf16.msra.mxu0 0
  %2032 = vmatprep.subr.bf16.mxu0 0
  %2033 = vmatpush1.bf16.msra.mxu0 0
  %2034 = vmatprep.mubr.bf16.mxu0 0
  %2035 = vmatmul.mubr.bf16.gmra.mrb[0].mxu0 %v283
  %v2036 = vpop.f32.mrb[0].mxu0
  %v2037 = vadd.f32 0.0, %v2036
  %v2038 = vpop.f32.mrb[0].mxu0
  %v2039 = vpop.f32.mrb[0].mxu0
  %v2040 = vpop.f32.mrb[0].mxu0
  %2041 = vdwg.mxu0
  %v2042 = vadd.f32 %v1994, %v2037
  %v2043 = vmul.f32 %v615, %v333
  %v2044 = vpack.c.bf16 %v2043, %v2043
  %v2046 = vand.u32 %v2044, %v120
  %2048 = vmatprep.subr.bf16.mxu0 0
  %2049 = vmatpush1.bf16.msra.mxu0 %v2046
  %2050 = vmatprep.subr.bf16.mxu0 0
  %2051 = vmatpush1.bf16.msra.mxu0 0
  %2052 = vmatprep.subr.bf16.mxu0 0
  %2053 = vmatpush1.bf16.msra.mxu0 0
  %2054 = vmatprep.subr.bf16.mxu0 0
  %2055 = vmatpush1.bf16.msra.mxu0 0
  %2056 = vmatprep.subr.bf16.mxu0 0
  %2057 = vmatpush1.bf16.msra.mxu0 0
  %2058 = vmatprep.subr.bf16.mxu0 0
  %2059 = vmatpush1.bf16.msra.mxu0 0
  %2060 = vmatprep.subr.bf16.mxu0 0
  %2061 = vmatpush1.bf16.msra.mxu0 0
  %2062 = vmatprep.subr.bf16.mxu0 0
  %2063 = vmatpush1.bf16.msra.mxu0 0
  %2064 = vmatprep.subr.bf16.mxu0 0
  %2065 = vmatpush1.bf16.msra.mxu0 0
  %2066 = vmatprep.subr.bf16.mxu0 0
  %2067 = vmatpush1.bf16.msra.mxu0 0
  %2068 = vmatprep.subr.bf16.mxu0 0
  %2069 = vmatpush1.bf16.msra.mxu0 0
  %2070 = vmatprep.subr.bf16.mxu0 0
  %2071 = vmatpush1.bf16.msra.mxu0 0
  %2072 = vmatprep.subr.bf16.mxu0 0
  %2073 = vmatpush1.bf16.msra.mxu0 0
  %2074 = vmatprep.subr.bf16.mxu0 0
  %2075 = vmatpush1.bf16.msra.mxu0 0
  %2076 = vmatprep.subr.bf16.mxu0 0
  %2077 = vmatpush1.bf16.msra.mxu0 0
  %2078 = vmatprep.subr.bf16.mxu0 0
  %2079 = vmatpush1.bf16.msra.mxu0 0
  %2080 = vmatprep.mubr.bf16.mxu0 0
  %2081 = vmatmul.mubr.bf16.gmra.mrb[0].mxu0 %v340
  %v2082 = vpop.f32.mrb[0].mxu0
  %v2083 = vadd.f32 0.0, %v2082
  %v2084 = vpop.f32.mrb[0].mxu0
  %v2085 = vpop.f32.mrb[0].mxu0
  %v2086 = vpop.f32.mrb[0].mxu0
  %2087 = vdwg.mxu0
  %v2088 = vadd.f32 %v2042, %v2083
  %v2089 = vmul.f32 %v1032, %v333
  %v2090 = vpack.c.bf16 %v2089, %v2089
  %v2092 = vand.u32 %v2090, %v120
  %2094 = vmatprep.subr.bf16.mxu0 0
  %2095 = vmatpush1.bf16.msra.mxu0 %v2092
  %2096 = vmatprep.subr.bf16.mxu0 0
  %2097 = vmatpush1.bf16.msra.mxu0 0
  %2098 = vmatprep.subr.bf16.mxu0 0
  %2099 = vmatpush1.bf16.msra.mxu0 0
  %2100 = vmatprep.subr.bf16.mxu0 0
  %2101 = vmatpush1.bf16.msra.mxu0 0
  %2102 = vmatprep.subr.bf16.mxu0 0
  %2103 = vmatpush1.bf16.msra.mxu0 0
  %2104 = vmatprep.subr.bf16.mxu0 0
  %2105 = vmatpush1.bf16.msra.mxu0 0
  %2106 = vmatprep.subr.bf16.mxu0 0
  %2107 = vmatpush1.bf16.msra.mxu0 0
  %2108 = vmatprep.subr.bf16.mxu0 0
  %2109 = vmatpush1.bf16.msra.mxu0 0
  %2110 = vmatprep.subr.bf16.mxu0 0
  %2111 = vmatpush1.bf16.msra.mxu0 0
  %2112 = vmatprep.subr.bf16.mxu0 0
  %2113 = vmatpush1.bf16.msra.mxu0 0
  %2114 = vmatprep.subr.bf16.mxu0 0
  %2115 = vmatpush1.bf16.msra.mxu0 0
  %2116 = vmatprep.subr.bf16.mxu0 0
  %2117 = vmatpush1.bf16.msra.mxu0 0
  %2118 = vmatprep.subr.bf16.mxu0 0
  %2119 = vmatpush1.bf16.msra.mxu0 0
  %2120 = vmatprep.subr.bf16.mxu0 0
  %2121 = vmatpush1.bf16.msra.mxu0 0
  %2122 = vmatprep.subr.bf16.mxu0 0
  %2123 = vmatpush1.bf16.msra.mxu0 0
  %2124 = vmatprep.subr.bf16.mxu0 0
  %2125 = vmatpush1.bf16.msra.mxu0 0
  %2126 = vmatprep.mubr.bf16.mxu0 0
  %2127 = vmatmul.mubr.bf16.gmra.mrb[0].mxu0 %v396
  %v2128 = vpop.f32.mrb[0].mxu0
  %v2129 = vadd.f32 0.0, %v2128
  %v2130 = vpop.f32.mrb[0].mxu0
  %v2131 = vpop.f32.mrb[0].mxu0
  %v2132 = vpop.f32.mrb[0].mxu0
  %2133 = vdwg.mxu0
  %v2134 = vadd.f32 %v2088, %v2129
  %2135 = vrot.lane.b32.xlu0 %v1852, 1
  %v2136 = vpop.permute.xlu0 %2135
  %v2137 = vmul.f32 %v2136, %v276
  %v2138 = vpack.c.bf16 %v2137, %v2137
  %v2140 = vand.u32 %v2138, %v120
  %2142 = vmatprep.subr.bf16.mxu0 0
  %2143 = vmatpush1.bf16.msra.mxu0 %v2140
  %2144 = vmatprep.subr.bf16.mxu0 0
  %2145 = vmatpush1.bf16.msra.mxu0 0
  %2146 = vmatprep.subr.bf16.mxu0 0
  %2147 = vmatpush1.bf16.msra.mxu0 0
  %2148 = vmatprep.subr.bf16.mxu0 0
  %2149 = vmatpush1.bf16.msra.mxu0 0
  %2150 = vmatprep.subr.bf16.mxu0 0
  %2151 = vmatpush1.bf16.msra.mxu0 0
  %2152 = vmatprep.subr.bf16.mxu0 0
  %2153 = vmatpush1.bf16.msra.mxu0 0
  %2154 = vmatprep.subr.bf16.mxu0 0
  %2155 = vmatpush1.bf16.msra.mxu0 0
  %2156 = vmatprep.subr.bf16.mxu0 0
  %2157 = vmatpush1.bf16.msra.mxu0 0
  %2158 = vmatprep.subr.bf16.mxu0 0
  %2159 = vmatpush1.bf16.msra.mxu0 0
  %2160 = vmatprep.subr.bf16.mxu0 0
  %2161 = vmatpush1.bf16.msra.mxu0 0
  %2162 = vmatprep.subr.bf16.mxu0 0
  %2163 = vmatpush1.bf16.msra.mxu0 0
  %2164 = vmatprep.subr.bf16.mxu0 0
  %2165 = vmatpush1.bf16.msra.mxu0 0
  %2166 = vmatprep.subr.bf16.mxu0 0
  %2167 = vmatpush1.bf16.msra.mxu0 0
  %2168 = vmatprep.subr.bf16.mxu0 0
  %2169 = vmatpush1.bf16.msra.mxu0 0
  %2170 = vmatprep.subr.bf16.mxu0 0
  %2171 = vmatpush1.bf16.msra.mxu0 0
  %2172 = vmatprep.subr.bf16.mxu0 0
  %2173 = vmatpush1.bf16.msra.mxu0 0
  %2174 = vmatprep.mubr.bf16.mxu0 0
  %2175 = vmatmul.mubr.bf16.gmra.mrb[0].mxu0 %v452
  %v2176 = vpop.f32.mrb[0].mxu0
  %v2177 = vadd.f32 0.0, %v2176
  %v2178 = vpop.f32.mrb[0].mxu0
  %v2179 = vpop.f32.mrb[0].mxu0
  %v2180 = vpop.f32.mrb[0].mxu0
  %2181 = vdwg.mxu0
  %v2182 = vadd.f32 %v2134, %v2177
  %v2183 = vmul.f32 %v1451, %v333
  %v2184 = vpack.c.bf16 %v2183, %v2183
  %v2186 = vand.u32 %v2184, %v120
  %2188 = vmatprep.subr.bf16.mxu0 0
  %2189 = vmatpush1.bf16.msra.mxu0 %v2186
  %2190 = vmatprep.subr.bf16.mxu0 0
  %2191 = vmatpush1.bf16.msra.mxu0 0
  %2192 = vmatprep.subr.bf16.mxu0 0
  %2193 = vmatpush1.bf16.msra.mxu0 0
  %2194 = vmatprep.subr.bf16.mxu0 0
  %2195 = vmatpush1.bf16.msra.mxu0 0
  %2196 = vmatprep.subr.bf16.mxu0 0
  %2197 = vmatpush1.bf16.msra.mxu0 0
  %2198 = vmatprep.subr.bf16.mxu0 0
  %2199 = vmatpush1.bf16.msra.mxu0 0
  %2200 = vmatprep.subr.bf16.mxu0 0
  %2201 = vmatpush1.bf16.msra.mxu0 0
  %2202 = vmatprep.subr.bf16.mxu0 0
  %2203 = vmatpush1.bf16.msra.mxu0 0
  %2204 = vmatprep.subr.bf16.mxu0 0
  %2205 = vmatpush1.bf16.msra.mxu0 0
  %2206 = vmatprep.subr.bf16.mxu0 0
  %2207 = vmatpush1.bf16.msra.mxu0 0
  %2208 = vmatprep.subr.bf16.mxu0 0
  %2209 = vmatpush1.bf16.msra.mxu0 0
  %2210 = vmatprep.subr.bf16.mxu0 0
  %2211 = vmatpush1.bf16.msra.mxu0 0
  %2212 = vmatprep.subr.bf16.mxu0 0
  %2213 = vmatpush1.bf16.msra.mxu0 0
  %2214 = vmatprep.subr.bf16.mxu0 0
  %2215 = vmatpush1.bf16.msra.mxu0 0
  %2216 = vmatprep.subr.bf16.mxu0 0
  %2217 = vmatpush1.bf16.msra.mxu0 0
  %2218 = vmatprep.subr.bf16.mxu0 0
  %2219 = vmatpush1.bf16.msra.mxu0 0
  %2220 = vmatprep.mubr.bf16.mxu0 0
  %2221 = vmatmul.mubr.bf16.gmra.mrb[0].mxu0 %v505
  %v2222 = vpop.f32.mrb[0].mxu0
  %v2223 = vadd.f32 0.0, %v2222
  %v2224 = vpop.f32.mrb[0].mxu0
  %v2225 = vpop.f32.mrb[0].mxu0
  %v2226 = vpop.f32.mrb[0].mxu0
  %2227 = vdwg.mxu0
  %v2228 = vadd.f32 %v2182, %v2223
  %v2229 = vmul.f32 %v1852, %v333
  %v2230 = vpack.c.bf16 %v2229, %v2229
  %v2232 = vand.u32 %v2230, %v120
  %2234 = vmatprep.subr.bf16.mxu0 0
  %2235 = vmatpush1.bf16.msra.mxu0 %v2232
  %2236 = vmatprep.subr.bf16.mxu0 0
  %2237 = vmatpush1.bf16.msra.mxu0 0
  %2238 = vmatprep.subr.bf16.mxu0 0
  %2239 = vmatpush1.bf16.msra.mxu0 0
  %2240 = vmatprep.subr.bf16.mxu0 0
  %2241 = vmatpush1.bf16.msra.mxu0 0
  %2242 = vmatprep.subr.bf16.mxu0 0
  %2243 = vmatpush1.bf16.msra.mxu0 0
  %2244 = vmatprep.subr.bf16.mxu0 0
  %2245 = vmatpush1.bf16.msra.mxu0 0
  %2246 = vmatprep.subr.bf16.mxu0 0
  %2247 = vmatpush1.bf16.msra.mxu0 0
  %2248 = vmatprep.subr.bf16.mxu0 0
  %2249 = vmatpush1.bf16.msra.mxu0 0
  %2250 = vmatprep.subr.bf16.mxu0 0
  %2251 = vmatpush1.bf16.msra.mxu0 0
  %2252 = vmatprep.subr.bf16.mxu0 0
  %2253 = vmatpush1.bf16.msra.mxu0 0
  %2254 = vmatprep.subr.bf16.mxu0 0
  %2255 = vmatpush1.bf16.msra.mxu0 0
  %2256 = vmatprep.subr.bf16.mxu0 0
  %2257 = vmatpush1.bf16.msra.mxu0 0
  %2258 = vmatprep.subr.bf16.mxu0 0
  %2259 = vmatpush1.bf16.msra.mxu0 0
  %2260 = vmatprep.subr.bf16.mxu0 0
  %2261 = vmatpush1.bf16.msra.mxu0 0
  %2262 = vmatprep.subr.bf16.mxu0 0
  %2263 = vmatpush1.bf16.msra.mxu0 0
  %2264 = vmatprep.subr.bf16.mxu0 0
  %2265 = vmatpush1.bf16.msra.mxu0 0
  %2266 = vmatprep.mubr.bf16.mxu0 0
  %2267 = vmatmul.mubr.bf16.gmra.mrb[0].mxu0 %v564
  %v2268 = vpop.f32.mrb[0].mxu0
  %v2269 = vadd.f32 0.0, %v2268
  %v2270 = vpop.f32.mrb[0].mxu0
  %v2271 = vpop.f32.mrb[0].mxu0
  %v2272 = vpop.f32.mrb[0].mxu0
  %2273 = vdwg.mxu0
  %v2274 = vadd.f32 %v2228, %v2269
  %v2275 = vadd.f32 %v2274, %v613
  %v2276 = vld [vmem:[%s5] sm:$0xff]
  %v2277 = vld [vmem:[%s5 + $0x8] sm:$0xff]
  %v2278 = vld [vmem:[%s5 + $0x10] sm:$0xff]
  %v2279 = vld [vmem:[%s5 + $0x18] sm:$0xff]
  %2280 = vrot.lane.b32.xlu0 %v2275, 5
  %v2281 = vpop.permute.xlu0 %2280
  %v2282 = vmul.f32 %v2281, %v93
  %v2283 = vpack.c.bf16 %v2282, %v2282
  %v2284 = vld [vmem:[%s4] sm:$0xf]
  %v2285 = vld [vmem:[%s4 + $0x4] sm:$0xf]
  %v2286 = vld [vmem:[%s4 + $0x8] sm:$0xf]
  %v2287 = vld [vmem:[%s4 + $0xc] sm:$0xf]
  %2288 = vrot.lane.b32.xlu0 %v2275, 4
  %v2289 = vpop.permute.xlu0 %2288
  %v2290 = vmul.f32 %v2289, %v107
  %v2291 = vpack.c.bf16 %v2290, %v2290
  %s2292 = scalar_lea.vmem %s4, 16
  %v2293 = vld [vmem:[%s2292] sm:$0xf]
  %v2294 = vld [vmem:[%s2292 + $0x4] sm:$0xf]
  %v2295 = vld [vmem:[%s2292 + $0x8] sm:$0xf]
  %v2296 = vld [vmem:[%s2292 + $0xc] sm:$0xf]
  %v2301 = vunpack.c.l.b16 %v2293
  %v2302 = vunpack.c.l.b16 %v2294
  %v2303 = vunpack.c.l.b16 %v2295
  %v2304 = vunpack.c.l.b16 %v2296
  %v2305 = vpack.c.b16 %v2302, %v2301
  %v2306 = vpack.c.b16 %v2304, %v2303
  %v2308 = vsel %vm113, %v2305, 0
  %v2311 = vsel %vm113, %v2306, 0
  %v2314 = vand.u32 %v2291, %v120
  %2316 = vmatprep.subr.bf16.mxu0 0
  %2317 = vmatpush1.bf16.msra.mxu0 %v2314
  %2318 = vmatprep.subr.bf16.mxu0 0
  %2319 = vmatpush1.bf16.msra.mxu0 0
  %2320 = vmatprep.subr.bf16.mxu0 0
  %2321 = vmatpush1.bf16.msra.mxu0 0
  %2322 = vmatprep.subr.bf16.mxu0 0
  %2323 = vmatpush1.bf16.msra.mxu0 0
  %2324 = vmatprep.subr.bf16.mxu0 0
  %2325 = vmatpush1.bf16.msra.mxu0 0
  %2326 = vmatprep.subr.bf16.mxu0 0
  %2327 = vmatpush1.bf16.msra.mxu0 0
  %2328 = vmatprep.subr.bf16.mxu0 0
  %2329 = vmatpush1.bf16.msra.mxu0 0
  %2330 = vmatprep.subr.bf16.mxu0 0
  %2331 = vmatpush1.bf16.msra.mxu0 0
  %2332 = vmatprep.subr.bf16.mxu0 0
  %2333 = vmatpush1.bf16.msra.mxu0 0
  %2334 = vmatprep.subr.bf16.mxu0 0
  %2335 = vmatpush1.bf16.msra.mxu0 0
  %2336 = vmatprep.subr.bf16.mxu0 0
  %2337 = vmatpush1.bf16.msra.mxu0 0
  %2338 = vmatprep.subr.bf16.mxu0 0
  %2339 = vmatpush1.bf16.msra.mxu0 0
  %2340 = vmatprep.subr.bf16.mxu0 0
  %2341 = vmatpush1.bf16.msra.mxu0 0
  %2342 = vmatprep.subr.bf16.mxu0 0
  %2343 = vmatpush1.bf16.msra.mxu0 0
  %2344 = vmatprep.subr.bf16.mxu0 0
  %2345 = vmatpush1.bf16.msra.mxu0 0
  %2346 = vmatprep.subr.bf16.mxu0 0
  %2347 = vmatpush1.bf16.msra.mxu0 0
  %2348 = vmatprep.mubr.bf16.mxu0 0
  %2349 = vmatmul.mubr.bf16.gmra.mrb[0].mxu0 %v2308
  %v2350 = vpop.f32.mrb[0].mxu0
  %v2351 = vadd.f32 0.0, %v2350
  %v2352 = vpop.f32.mrb[0].mxu0
  %v2353 = vpop.f32.mrb[0].mxu0
  %v2354 = vadd.f32 0.0, %v2353
  %v2355 = vpop.f32.mrb[0].mxu0
  %2356 = vmatprep.mubr.bf16.mxu0 0
  %2357 = vmatmul.mubr.bf16.gmra.mrb[0].mxu0 %v2311
  %v2358 = vpop.f32.mrb[0].mxu0
  %v2359 = vadd.f32 0.0, %v2358
  %v2360 = vpop.f32.mrb[0].mxu0
  %v2361 = vpop.f32.mrb[0].mxu0
  %v2362 = vadd.f32 0.0, %v2361
  %v2363 = vpop.f32.mrb[0].mxu0
  %2364 = vdwg.mxu0
  %v2369 = vunpack.c.l.b16 %v2284
  %v2370 = vunpack.c.l.b16 %v2285
  %v2371 = vunpack.c.l.b16 %v2286
  %v2372 = vunpack.c.l.b16 %v2287
  %v2373 = vpack.c.b16 %v2370, %v2369
  %v2374 = vpack.c.b16 %v2372, %v2371
  %v2376 = vsel %vm113, %v2373, 0
  %v2379 = vsel %vm113, %v2374, 0
  %v2382 = vand.u32 %v2283, %v120
  %2384 = vmatprep.subr.bf16.mxu0 0
  %2385 = vmatpush1.bf16.msra.mxu0 %v2382
  %2386 = vmatprep.subr.bf16.mxu0 0
  %2387 = vmatpush1.bf16.msra.mxu0 0
  %2388 = vmatprep.subr.bf16.mxu0 0
  %2389 = vmatpush1.bf16.msra.mxu0 0
  %2390 = vmatprep.subr.bf16.mxu0 0
  %2391 = vmatpush1.bf16.msra.mxu0 0
  %2392 = vmatprep.subr.bf16.mxu0 0
  %2393 = vmatpush1.bf16.msra.mxu0 0
  %2394 = vmatprep.subr.bf16.mxu0 0
  %2395 = vmatpush1.bf16.msra.mxu0 0
  %2396 = vmatprep.subr.bf16.mxu0 0
  %2397 = vmatpush1.bf16.msra.mxu0 0
  %2398 = vmatprep.subr.bf16.mxu0 0
  %2399 = vmatpush1.bf16.msra.mxu0 0
  %2400 = vmatprep.subr.bf16.mxu0 0
  %2401 = vmatpush1.bf16.msra.mxu0 0
  %2402 = vmatprep.subr.bf16.mxu0 0
  %2403 = vmatpush1.bf16.msra.mxu0 0
  %2404 = vmatprep.subr.bf16.mxu0 0
  %2405 = vmatpush1.bf16.msra.mxu0 0
  %2406 = vmatprep.subr.bf16.mxu0 0
  %2407 = vmatpush1.bf16.msra.mxu0 0
  %2408 = vmatprep.subr.bf16.mxu0 0
  %2409 = vmatpush1.bf16.msra.mxu0 0
  %2410 = vmatprep.subr.bf16.mxu0 0
  %2411 = vmatpush1.bf16.msra.mxu0 0
  %2412 = vmatprep.subr.bf16.mxu0 0
  %2413 = vmatpush1.bf16.msra.mxu0 0
  %2414 = vmatprep.subr.bf16.mxu0 0
  %2415 = vmatpush1.bf16.msra.mxu0 0
  %2416 = vmatprep.mubr.bf16.mxu0 0
  %2417 = vmatmul.mubr.bf16.gmra.mrb[0].mxu0 %v2376
  %v2418 = vpop.f32.mrb[0].mxu0
  %v2419 = vadd.f32 %v2351, %v2418
  %v2420 = vpop.f32.mrb[0].mxu0
  %v2421 = vpop.f32.mrb[0].mxu0
  %v2422 = vadd.f32 %v2354, %v2421
  %v2423 = vpop.f32.mrb[0].mxu0
  %2424 = vmatprep.mubr.bf16.mxu0 0
  %2425 = vmatmul.mubr.bf16.gmra.mrb[0].mxu0 %v2379
  %v2426 = vpop.f32.mrb[0].mxu0
  %v2427 = vadd.f32 %v2359, %v2426
  %v2428 = vpop.f32.mrb[0].mxu0
  %v2429 = vpop.f32.mrb[0].mxu0
  %v2430 = vadd.f32 %v2362, %v2429
  %v2431 = vpop.f32.mrb[0].mxu0
  %2432 = vdwg.mxu0
  %2433 = vrot.lane.b32.xlu0 %v2275, 3
  %v2434 = vpop.permute.xlu0 %2433
  %v2436 = vlaneseq
  %v2437 = vshrl.u32 %v2436, 7
  %v2438 = vsub.s32 0, %v2437
  %v2439 = vrot.slane %v64, %v2438
  %v2441 = vmul.f32 %v2434, %v2439
  %v2442 = vpack.c.bf16 %v2441, %v2441
  %s2443 = scalar_lea.vmem %s4, 32
  %v2444 = vld [vmem:[%s2443] sm:$0xf]
  %v2445 = vld [vmem:[%s2443 + $0x4] sm:$0xf]
  %v2446 = vld [vmem:[%s2443 + $0x8] sm:$0xf]
  %v2447 = vld [vmem:[%s2443 + $0xc] sm:$0xf]
  %v2452 = vunpack.c.l.b16 %v2444
  %v2453 = vunpack.c.l.b16 %v2445
  %v2454 = vunpack.c.l.b16 %v2446
  %v2455 = vunpack.c.l.b16 %v2447
  %v2456 = vpack.c.b16 %v2453, %v2452
  %v2457 = vpack.c.b16 %v2455, %v2454
  %v2459 = vsel %vm113, %v2456, 0
  %v2462 = vsel %vm113, %v2457, 0
  %v2465 = vand.u32 %v2442, %v120
  %2467 = vmatprep.subr.bf16.mxu0 0
  %2468 = vmatpush1.bf16.msra.mxu0 %v2465
  %2469 = vmatprep.subr.bf16.mxu0 0
  %2470 = vmatpush1.bf16.msra.mxu0 0
  %2471 = vmatprep.subr.bf16.mxu0 0
  %2472 = vmatpush1.bf16.msra.mxu0 0
  %2473 = vmatprep.subr.bf16.mxu0 0
  %2474 = vmatpush1.bf16.msra.mxu0 0
  %2475 = vmatprep.subr.bf16.mxu0 0
  %2476 = vmatpush1.bf16.msra.mxu0 0
  %2477 = vmatprep.subr.bf16.mxu0 0
  %2478 = vmatpush1.bf16.msra.mxu0 0
  %2479 = vmatprep.subr.bf16.mxu0 0
  %2480 = vmatpush1.bf16.msra.mxu0 0
  %2481 = vmatprep.subr.bf16.mxu0 0
  %2482 = vmatpush1.bf16.msra.mxu0 0
  %2483 = vmatprep.subr.bf16.mxu0 0
  %2484 = vmatpush1.bf16.msra.mxu0 0
  %2485 = vmatprep.subr.bf16.mxu0 0
  %2486 = vmatpush1.bf16.msra.mxu0 0
  %2487 = vmatprep.subr.bf16.mxu0 0
  %2488 = vmatpush1.bf16.msra.mxu0 0
  %2489 = vmatprep.subr.bf16.mxu0 0
  %2490 = vmatpush1.bf16.msra.mxu0 0
  %2491 = vmatprep.subr.bf16.mxu0 0
  %2492 = vmatpush1.bf16.msra.mxu0 0
  %2493 = vmatprep.subr.bf16.mxu0 0
  %2494 = vmatpush1.bf16.msra.mxu0 0
  %2495 = vmatprep.subr.bf16.mxu0 0
  %2496 = vmatpush1.bf16.msra.mxu0 0
  %2497 = vmatprep.subr.bf16.mxu0 0
  %2498 = vmatpush1.bf16.msra.mxu0 0
  %2499 = vmatprep.mubr.bf16.mxu0 0
  %2500 = vmatmul.mubr.bf16.gmra.mrb[0].mxu0 %v2459
  %v2501 = vpop.f32.mrb[0].mxu0
  %v2502 = vadd.f32 0.0, %v2501
  %v2503 = vpop.f32.mrb[0].mxu0
  %v2504 = vpop.f32.mrb[0].mxu0
  %v2505 = vadd.f32 0.0, %v2504
  %v2506 = vpop.f32.mrb[0].mxu0
  %2507 = vmatprep.mubr.bf16.mxu0 0
  %2508 = vmatmul.mubr.bf16.gmra.mrb[0].mxu0 %v2462
  %v2509 = vpop.f32.mrb[0].mxu0
  %v2510 = vadd.f32 0.0, %v2509
  %v2511 = vpop.f32.mrb[0].mxu0
  %v2512 = vpop.f32.mrb[0].mxu0
  %v2513 = vadd.f32 0.0, %v2512
  %v2514 = vpop.f32.mrb[0].mxu0
  %2515 = vdwg.mxu0
  %v2516 = vadd.f32 %v2419, %v2502
  %v2517 = vadd.f32 %v2422, %v2505
  %v2518 = vadd.f32 %v2427, %v2510
  %v2519 = vadd.f32 %v2430, %v2513
  %2520 = vrot.lane.b32.xlu0 %v2275, 1
  %v2521 = vpop.permute.xlu0 %2520
  %v2522 = vmul.f32 %v2521, %v276
  %v2523 = vpack.c.bf16 %v2522, %v2522
  %s2524 = scalar_lea.vmem %s4, 48
  %v2525 = vld [vmem:[%s2524] sm:$0xf]
  %v2526 = vld [vmem:[%s2524 + $0x4] sm:$0xf]
  %v2527 = vld [vmem:[%s2524 + $0x8] sm:$0xf]
  %v2528 = vld [vmem:[%s2524 + $0xc] sm:$0xf]
  %v2533 = vunpack.c.l.b16 %v2525
  %v2534 = vunpack.c.l.b16 %v2526
  %v2535 = vunpack.c.l.b16 %v2527
  %v2536 = vunpack.c.l.b16 %v2528
  %v2537 = vpack.c.b16 %v2534, %v2533
  %v2538 = vpack.c.b16 %v2536, %v2535
  %v2540 = vsel %vm113, %v2537, 0
  %v2543 = vsel %vm113, %v2538, 0
  %v2546 = vand.u32 %v2523, %v120
  %2548 = vmatprep.subr.bf16.mxu0 0
  %2549 = vmatpush1.bf16.msra.mxu0 %v2546
  %2550 = vmatprep.subr.bf16.mxu0 0
  %2551 = vmatpush1.bf16.msra.mxu0 0
  %2552 = vmatprep.subr.bf16.mxu0 0
  %2553 = vmatpush1.bf16.msra.mxu0 0
  %2554 = vmatprep.subr.bf16.mxu0 0
  %2555 = vmatpush1.bf16.msra.mxu0 0
  %2556 = vmatprep.subr.bf16.mxu0 0
  %2557 = vmatpush1.bf16.msra.mxu0 0
  %2558 = vmatprep.subr.bf16.mxu0 0
  %2559 = vmatpush1.bf16.msra.mxu0 0
  %2560 = vmatprep.subr.bf16.mxu0 0
  %2561 = vmatpush1.bf16.msra.mxu0 0
  %2562 = vmatprep.subr.bf16.mxu0 0
  %2563 = vmatpush1.bf16.msra.mxu0 0
  %2564 = vmatprep.subr.bf16.mxu0 0
  %2565 = vmatpush1.bf16.msra.mxu0 0
  %2566 = vmatprep.subr.bf16.mxu0 0
  %2567 = vmatpush1.bf16.msra.mxu0 0
  %2568 = vmatprep.subr.bf16.mxu0 0
  %2569 = vmatpush1.bf16.msra.mxu0 0
  %2570 = vmatprep.subr.bf16.mxu0 0
  %2571 = vmatpush1.bf16.msra.mxu0 0
  %2572 = vmatprep.subr.bf16.mxu0 0
  %2573 = vmatpush1.bf16.msra.mxu0 0
  %2574 = vmatprep.subr.bf16.mxu0 0
  %2575 = vmatpush1.bf16.msra.mxu0 0
  %2576 = vmatprep.subr.bf16.mxu0 0
  %2577 = vmatpush1.bf16.msra.mxu0 0
  %2578 = vmatprep.subr.bf16.mxu0 0
  %2579 = vmatpush1.bf16.msra.mxu0 0
  %2580 = vmatprep.mubr.bf16.mxu0 0
  %2581 = vmatmul.mubr.bf16.gmra.mrb[0].mxu0 %v2540
  %v2582 = vpop.f32.mrb[0].mxu0
  %v2583 = vadd.f32 0.0, %v2582
  %v2584 = vpop.f32.mrb[0].mxu0
  %v2585 = vpop.f32.mrb[0].mxu0
  %v2586 = vadd.f32 0.0, %v2585
  %v2587 = vpop.f32.mrb[0].mxu0
  %2588 = vmatprep.mubr.bf16.mxu0 0
  %2589 = vmatmul.mubr.bf16.gmra.mrb[0].mxu0 %v2543
  %v2590 = vpop.f32.mrb[0].mxu0
  %v2591 = vadd.f32 0.0, %v2590
  %v2592 = vpop.f32.mrb[0].mxu0
  %v2593 = vpop.f32.mrb[0].mxu0
  %v2594 = vadd.f32 0.0, %v2593
  %v2595 = vpop.f32.mrb[0].mxu0
  %2596 = vdwg.mxu0
  %v2597 = vadd.f32 %v2516, %v2583
  %v2598 = vadd.f32 %v2517, %v2586
  %v2599 = vadd.f32 %v2518, %v2591
  %v2600 = vadd.f32 %v2519, %v2594
  %v2601 = vmul.f32 %v2275, %v333
  %v2602 = vpack.c.bf16 %v2601, %v2601
  %s2603 = scalar_lea.vmem %s4, 64
  %v2604 = vld [vmem:[%s2603] sm:$0xf]
  %v2605 = vld [vmem:[%s2603 + $0x4] sm:$0xf]
  %v2606 = vld [vmem:[%s2603 + $0x8] sm:$0xf]
  %v2607 = vld [vmem:[%s2603 + $0xc] sm:$0xf]
  %v2612 = vunpack.c.l.b16 %v2604
  %v2613 = vunpack.c.l.b16 %v2605
  %v2614 = vunpack.c.l.b16 %v2606
  %v2615 = vunpack.c.l.b16 %v2607
  %v2616 = vpack.c.b16 %v2613, %v2612
  %v2617 = vpack.c.b16 %v2615, %v2614
  %v2619 = vsel %vm113, %v2616, 0
  %v2622 = vsel %vm113, %v2617, 0
  %v2625 = vand.u32 %v2602, %v120
  %2627 = vmatprep.subr.bf16.mxu0 0
  %2628 = vmatpush1.bf16.msra.mxu0 %v2625
  %2629 = vmatprep.subr.bf16.mxu0 0
  %2630 = vmatpush1.bf16.msra.mxu0 0
  %2631 = vmatprep.subr.bf16.mxu0 0
  %2632 = vmatpush1.bf16.msra.mxu0 0
  %2633 = vmatprep.subr.bf16.mxu0 0
  %2634 = vmatpush1.bf16.msra.mxu0 0
  %2635 = vmatprep.subr.bf16.mxu0 0
  %2636 = vmatpush1.bf16.msra.mxu0 0
  %2637 = vmatprep.subr.bf16.mxu0 0
  %2638 = vmatpush1.bf16.msra.mxu0 0
  %2639 = vmatprep.subr.bf16.mxu0 0
  %2640 = vmatpush1.bf16.msra.mxu0 0
  %2641 = vmatprep.subr.bf16.mxu0 0
  %2642 = vmatpush1.bf16.msra.mxu0 0
  %2643 = vmatprep.subr.bf16.mxu0 0
  %2644 = vmatpush1.bf16.msra.mxu0 0
  %2645 = vmatprep.subr.bf16.mxu0 0
  %2646 = vmatpush1.bf16.msra.mxu0 0
  %2647 = vmatprep.subr.bf16.mxu0 0
  %2648 = vmatpush1.bf16.msra.mxu0 0
  %2649 = vmatprep.subr.bf16.mxu0 0
  %2650 = vmatpush1.bf16.msra.mxu0 0
  %2651 = vmatprep.subr.bf16.mxu0 0
  %2652 = vmatpush1.bf16.msra.mxu0 0
  %2653 = vmatprep.subr.bf16.mxu0 0
  %2654 = vmatpush1.bf16.msra.mxu0 0
  %2655 = vmatprep.subr.bf16.mxu0 0
  %2656 = vmatpush1.bf16.msra.mxu0 0
  %2657 = vmatprep.subr.bf16.mxu0 0
  %2658 = vmatpush1.bf16.msra.mxu0 0
  %2659 = vmatprep.mubr.bf16.mxu0 0
  %2660 = vmatmul.mubr.bf16.gmra.mrb[0].mxu0 %v2619
  %v2661 = vpop.f32.mrb[0].mxu0
  %v2662 = vadd.f32 0.0, %v2661
  %v2663 = vpop.f32.mrb[0].mxu0
  %v2664 = vpop.f32.mrb[0].mxu0
  %v2665 = vadd.f32 0.0, %v2664
  %v2666 = vpop.f32.mrb[0].mxu0
  %2667 = vmatprep.mubr.bf16.mxu0 0
  %2668 = vmatmul.mubr.bf16.gmra.mrb[0].mxu0 %v2622
  %v2669 = vpop.f32.mrb[0].mxu0
  %v2670 = vadd.f32 0.0, %v2669
  %v2671 = vpop.f32.mrb[0].mxu0
  %v2672 = vpop.f32.mrb[0].mxu0
  %v2673 = vadd.f32 0.0, %v2672
  %v2674 = vpop.f32.mrb[0].mxu0
  %2675 = vdwg.mxu0
  %v2676 = vadd.f32 %v2597, %v2662
  %v2677 = vadd.f32 %v2598, %v2665
  %v2678 = vadd.f32 %v2599, %v2670
  %v2679 = vadd.f32 %v2600, %v2673
  %2680 = vrot.lane.b32.xlu0 %v2275, 127
  %v2681 = vpop.permute.xlu0 %2680
  %v2683 = vlaneseq
  %v2684 = vshrl.u32 %v2683, 7
  %v2685 = vsub.s32 0, %v2684
  %v2686 = vrot.slane %v70, %v2685
  %v2688 = vmul.f32 %v2681, %v2686
  %v2689 = vpack.c.bf16 %v2688, %v2688
  %s2690 = scalar_lea.vmem %s4, 80
  %v2691 = vld [vmem:[%s2690] sm:$0xf]
  %v2692 = vld [vmem:[%s2690 + $0x4] sm:$0xf]
  %v2693 = vld [vmem:[%s2690 + $0x8] sm:$0xf]
  %v2694 = vld [vmem:[%s2690 + $0xc] sm:$0xf]
  %v2699 = vunpack.c.l.b16 %v2691
  %v2700 = vunpack.c.l.b16 %v2692
  %v2701 = vunpack.c.l.b16 %v2693
  %v2702 = vunpack.c.l.b16 %v2694
  %v2703 = vpack.c.b16 %v2700, %v2699
  %v2704 = vpack.c.b16 %v2702, %v2701
  %v2706 = vsel %vm113, %v2703, 0
  %v2709 = vsel %vm113, %v2704, 0
  %v2712 = vand.u32 %v2689, %v120
  %2714 = vmatprep.subr.bf16.mxu0 0
  %2715 = vmatpush1.bf16.msra.mxu0 %v2712
  %2716 = vmatprep.subr.bf16.mxu0 0
  %2717 = vmatpush1.bf16.msra.mxu0 0
  %2718 = vmatprep.subr.bf16.mxu0 0
  %2719 = vmatpush1.bf16.msra.mxu0 0
  %2720 = vmatprep.subr.bf16.mxu0 0
  %2721 = vmatpush1.bf16.msra.mxu0 0
  %2722 = vmatprep.subr.bf16.mxu0 0
  %2723 = vmatpush1.bf16.msra.mxu0 0
  %2724 = vmatprep.subr.bf16.mxu0 0
  %2725 = vmatpush1.bf16.msra.mxu0 0
  %2726 = vmatprep.subr.bf16.mxu0 0
  %2727 = vmatpush1.bf16.msra.mxu0 0
  %2728 = vmatprep.subr.bf16.mxu0 0
  %2729 = vmatpush1.bf16.msra.mxu0 0
  %2730 = vmatprep.subr.bf16.mxu0 0
  %2731 = vmatpush1.bf16.msra.mxu0 0
  %2732 = vmatprep.subr.bf16.mxu0 0
  %2733 = vmatpush1.bf16.msra.mxu0 0
  %2734 = vmatprep.subr.bf16.mxu0 0
  %2735 = vmatpush1.bf16.msra.mxu0 0
  %2736 = vmatprep.subr.bf16.mxu0 0
  %2737 = vmatpush1.bf16.msra.mxu0 0
  %2738 = vmatprep.subr.bf16.mxu0 0
  %2739 = vmatpush1.bf16.msra.mxu0 0
  %2740 = vmatprep.subr.bf16.mxu0 0
  %2741 = vmatpush1.bf16.msra.mxu0 0
  %2742 = vmatprep.subr.bf16.mxu0 0
  %2743 = vmatpush1.bf16.msra.mxu0 0
  %2744 = vmatprep.subr.bf16.mxu0 0
  %2745 = vmatpush1.bf16.msra.mxu0 0
  %2746 = vmatprep.mubr.bf16.mxu0 0
  %2747 = vmatmul.mubr.bf16.gmra.mrb[0].mxu0 %v2706
  %v2748 = vpop.f32.mrb[0].mxu0
  %v2749 = vadd.f32 0.0, %v2748
  %v2750 = vpop.f32.mrb[0].mxu0
  %v2751 = vpop.f32.mrb[0].mxu0
  %v2752 = vadd.f32 0.0, %v2751
  %v2753 = vpop.f32.mrb[0].mxu0
  %2754 = vmatprep.mubr.bf16.mxu0 0
  %2755 = vmatmul.mubr.bf16.gmra.mrb[0].mxu0 %v2709
  %v2756 = vpop.f32.mrb[0].mxu0
  %v2757 = vadd.f32 0.0, %v2756
  %v2758 = vpop.f32.mrb[0].mxu0
  %v2759 = vpop.f32.mrb[0].mxu0
  %v2760 = vadd.f32 0.0, %v2759
  %v2761 = vpop.f32.mrb[0].mxu0
  %2762 = vdwg.mxu0
  %v2763 = vadd.f32 %v2676, %v2749
  %v2764 = vadd.f32 %v2677, %v2752
  %v2765 = vadd.f32 %v2678, %v2757
  %v2766 = vadd.f32 %v2679, %v2760
  %2767 = vrot.lane.b32.xlu0 %v2275, 125
  %v2768 = vpop.permute.xlu0 %2767
  %v2770 = vlaneseq
  %v2771 = vshrl.u32 %v2770, 7
  %v2772 = vsub.s32 0, %v2771
  %v2773 = vrot.slane %v72, %v2772
  %v2775 = vmul.f32 %v2768, %v2773
  %v2776 = vpack.c.bf16 %v2775, %v2775
  %s2777 = scalar_lea.vmem %s4, 96
  %v2778 = vld [vmem:[%s2777] sm:$0xf]
  %v2779 = vld [vmem:[%s2777 + $0x4] sm:$0xf]
  %v2780 = vld [vmem:[%s2777 + $0x8] sm:$0xf]
  %v2781 = vld [vmem:[%s2777 + $0xc] sm:$0xf]
  %v2786 = vunpack.c.l.b16 %v2778
  %v2787 = vunpack.c.l.b16 %v2779
  %v2788 = vunpack.c.l.b16 %v2780
  %v2789 = vunpack.c.l.b16 %v2781
  %v2790 = vpack.c.b16 %v2787, %v2786
  %v2791 = vpack.c.b16 %v2789, %v2788
  %v2793 = vsel %vm113, %v2790, 0
  %v2796 = vsel %vm113, %v2791, 0
  %v2799 = vand.u32 %v2776, %v120
  %2801 = vmatprep.subr.bf16.mxu0 0
  %2802 = vmatpush1.bf16.msra.mxu0 %v2799
  %2803 = vmatprep.subr.bf16.mxu0 0
  %2804 = vmatpush1.bf16.msra.mxu0 0
  %2805 = vmatprep.subr.bf16.mxu0 0
  %2806 = vmatpush1.bf16.msra.mxu0 0
  %2807 = vmatprep.subr.bf16.mxu0 0
  %2808 = vmatpush1.bf16.msra.mxu0 0
  %2809 = vmatprep.subr.bf16.mxu0 0
  %2810 = vmatpush1.bf16.msra.mxu0 0
  %2811 = vmatprep.subr.bf16.mxu0 0
  %2812 = vmatpush1.bf16.msra.mxu0 0
  %2813 = vmatprep.subr.bf16.mxu0 0
  %2814 = vmatpush1.bf16.msra.mxu0 0
  %2815 = vmatprep.subr.bf16.mxu0 0
  %2816 = vmatpush1.bf16.msra.mxu0 0
  %2817 = vmatprep.subr.bf16.mxu0 0
  %2818 = vmatpush1.bf16.msra.mxu0 0
  %2819 = vmatprep.subr.bf16.mxu0 0
  %2820 = vmatpush1.bf16.msra.mxu0 0
  %2821 = vmatprep.subr.bf16.mxu0 0
  %2822 = vmatpush1.bf16.msra.mxu0 0
  %2823 = vmatprep.subr.bf16.mxu0 0
  %2824 = vmatpush1.bf16.msra.mxu0 0
  %2825 = vmatprep.subr.bf16.mxu0 0
  %2826 = vmatpush1.bf16.msra.mxu0 0
  %2827 = vmatprep.subr.bf16.mxu0 0
  %2828 = vmatpush1.bf16.msra.mxu0 0
  %2829 = vmatprep.subr.bf16.mxu0 0
  %2830 = vmatpush1.bf16.msra.mxu0 0
  %2831 = vmatprep.subr.bf16.mxu0 0
  %2832 = vmatpush1.bf16.msra.mxu0 0
  %2833 = vmatprep.mubr.bf16.mxu0 0
  %2834 = vmatmul.mubr.bf16.gmra.mrb[0].mxu0 %v2793
  %v2835 = vpop.f32.mrb[0].mxu0
  %v2836 = vadd.f32 0.0, %v2835
  %v2837 = vpop.f32.mrb[0].mxu0
  %v2838 = vpop.f32.mrb[0].mxu0
  %v2839 = vadd.f32 0.0, %v2838
  %v2840 = vpop.f32.mrb[0].mxu0
  %2841 = vmatprep.mubr.bf16.mxu0 0
  %2842 = vmatmul.mubr.bf16.gmra.mrb[0].mxu0 %v2796
  %v2843 = vpop.f32.mrb[0].mxu0
  %v2844 = vadd.f32 0.0, %v2843
  %v2845 = vpop.f32.mrb[0].mxu0
  %v2846 = vpop.f32.mrb[0].mxu0
  %v2847 = vadd.f32 0.0, %v2846
  %v2848 = vpop.f32.mrb[0].mxu0
  %2849 = vdwg.mxu0
  %v2850 = vadd.f32 %v2763, %v2836
  %v2851 = vadd.f32 %v2764, %v2839
  %v2852 = vadd.f32 %v2765, %v2844
  %v2853 = vadd.f32 %v2766, %v2847
  %2854 = vrot.lane.b32.xlu0 %v2275, 124
  %v2855 = vpop.permute.xlu0 %2854
  %v2857 = vlaneseq
  %v2858 = vshrl.u32 %v2857, 7
  %v2859 = vsub.s32 0, %v2858
  %v2860 = vrot.slane %v74, %v2859
  %v2862 = vmul.f32 %v2855, %v2860
  %v2863 = vpack.c.bf16 %v2862, %v2862
  %s2864 = scalar_lea.vmem %s4, 112
  %v2865 = vld [vmem:[%s2864] sm:$0xf]
  %v2866 = vld [vmem:[%s2864 + $0x4] sm:$0xf]
  %v2867 = vld [vmem:[%s2864 + $0x8] sm:$0xf]
  %v2868 = vld [vmem:[%s2864 + $0xc] sm:$0xf]
  %v2873 = vunpack.c.l.b16 %v2865
  %v2874 = vunpack.c.l.b16 %v2866
  %v2875 = vunpack.c.l.b16 %v2867
  %v2876 = vunpack.c.l.b16 %v2868
  %v2877 = vpack.c.b16 %v2874, %v2873
  %v2878 = vpack.c.b16 %v2876, %v2875
  %v2880 = vsel %vm113, %v2877, 0
  %v2883 = vsel %vm113, %v2878, 0
  %v2886 = vand.u32 %v2863, %v120
  %2888 = vmatprep.subr.bf16.mxu0 0
  %2889 = vmatpush1.bf16.msra.mxu0 %v2886
  %2890 = vmatprep.subr.bf16.mxu0 0
  %2891 = vmatpush1.bf16.msra.mxu0 0
  %2892 = vmatprep.subr.bf16.mxu0 0
  %2893 = vmatpush1.bf16.msra.mxu0 0
  %2894 = vmatprep.subr.bf16.mxu0 0
  %2895 = vmatpush1.bf16.msra.mxu0 0
  %2896 = vmatprep.subr.bf16.mxu0 0
  %2897 = vmatpush1.bf16.msra.mxu0 0
  %2898 = vmatprep.subr.bf16.mxu0 0
  %2899 = vmatpush1.bf16.msra.mxu0 0
  %2900 = vmatprep.subr.bf16.mxu0 0
  %2901 = vmatpush1.bf16.msra.mxu0 0
  %2902 = vmatprep.subr.bf16.mxu0 0
  %2903 = vmatpush1.bf16.msra.mxu0 0
  %2904 = vmatprep.subr.bf16.mxu0 0
  %2905 = vmatpush1.bf16.msra.mxu0 0
  %2906 = vmatprep.subr.bf16.mxu0 0
  %2907 = vmatpush1.bf16.msra.mxu0 0
  %2908 = vmatprep.subr.bf16.mxu0 0
  %2909 = vmatpush1.bf16.msra.mxu0 0
  %2910 = vmatprep.subr.bf16.mxu0 0
  %2911 = vmatpush1.bf16.msra.mxu0 0
  %2912 = vmatprep.subr.bf16.mxu0 0
  %2913 = vmatpush1.bf16.msra.mxu0 0
  %2914 = vmatprep.subr.bf16.mxu0 0
  %2915 = vmatpush1.bf16.msra.mxu0 0
  %2916 = vmatprep.subr.bf16.mxu0 0
  %2917 = vmatpush1.bf16.msra.mxu0 0
  %2918 = vmatprep.subr.bf16.mxu0 0
  %2919 = vmatpush1.bf16.msra.mxu0 0
  %2920 = vmatprep.mubr.bf16.mxu0 0
  %2921 = vmatmul.mubr.bf16.gmra.mrb[0].mxu0 %v2880
  %v2922 = vpop.f32.mrb[0].mxu0
  %v2923 = vadd.f32 0.0, %v2922
  %v2924 = vpop.f32.mrb[0].mxu0
  %v2925 = vpop.f32.mrb[0].mxu0
  %v2926 = vadd.f32 0.0, %v2925
  %v2927 = vpop.f32.mrb[0].mxu0
  %2928 = vmatprep.mubr.bf16.mxu0 0
  %2929 = vmatmul.mubr.bf16.gmra.mrb[0].mxu0 %v2883
  %v2930 = vpop.f32.mrb[0].mxu0
  %v2931 = vadd.f32 0.0, %v2930
  %v2932 = vpop.f32.mrb[0].mxu0
  %v2933 = vpop.f32.mrb[0].mxu0
  %v2934 = vadd.f32 0.0, %v2933
  %v2935 = vpop.f32.mrb[0].mxu0
  %2936 = vdwg.mxu0
  %v2937 = vadd.f32 %v2850, %v2923
  %v2938 = vadd.f32 %v2851, %v2926
  %v2939 = vadd.f32 %v2852, %v2931
  %v2940 = vadd.f32 %v2853, %v2934
  %2941 = vrot.lane.b32.xlu0 %v2275, 123
  %v2942 = vpop.permute.xlu0 %2941
  %v2944 = vlaneseq
  %v2945 = vshrl.u32 %v2944, 7
  %v2946 = vsub.s32 0, %v2945
  %v2947 = vrot.slane %v76, %v2946
  %v2949 = vmul.f32 %v2942, %v2947
  %v2950 = vpack.c.bf16 %v2949, %v2949
  %s2951 = scalar_lea.vmem %s4, 128
  %v2952 = vld [vmem:[%s2951] sm:$0xf]
  %v2953 = vld [vmem:[%s2951 + $0x4] sm:$0xf]
  %v2954 = vld [vmem:[%s2951 + $0x8] sm:$0xf]
  %v2955 = vld [vmem:[%s2951 + $0xc] sm:$0xf]
  %v2960 = vunpack.c.l.b16 %v2952
  %v2961 = vunpack.c.l.b16 %v2953
  %v2962 = vunpack.c.l.b16 %v2954
  %v2963 = vunpack.c.l.b16 %v2955
  %v2964 = vpack.c.b16 %v2961, %v2960
  %v2965 = vpack.c.b16 %v2963, %v2962
  %v2967 = vsel %vm113, %v2964, 0
  %v2970 = vsel %vm113, %v2965, 0
  %v2973 = vand.u32 %v2950, %v120
  %2975 = vmatprep.subr.bf16.mxu0 0
  %2976 = vmatpush1.bf16.msra.mxu0 %v2973
  %2977 = vmatprep.subr.bf16.mxu0 0
  %2978 = vmatpush1.bf16.msra.mxu0 0
  %2979 = vmatprep.subr.bf16.mxu0 0
  %2980 = vmatpush1.bf16.msra.mxu0 0
  %2981 = vmatprep.subr.bf16.mxu0 0
  %2982 = vmatpush1.bf16.msra.mxu0 0
  %2983 = vmatprep.subr.bf16.mxu0 0
  %2984 = vmatpush1.bf16.msra.mxu0 0
  %2985 = vmatprep.subr.bf16.mxu0 0
  %2986 = vmatpush1.bf16.msra.mxu0 0
  %2987 = vmatprep.subr.bf16.mxu0 0
  %2988 = vmatpush1.bf16.msra.mxu0 0
  %2989 = vmatprep.subr.bf16.mxu0 0
  %2990 = vmatpush1.bf16.msra.mxu0 0
  %2991 = vmatprep.subr.bf16.mxu0 0
  %2992 = vmatpush1.bf16.msra.mxu0 0
  %2993 = vmatprep.subr.bf16.mxu0 0
  %2994 = vmatpush1.bf16.msra.mxu0 0
  %2995 = vmatprep.subr.bf16.mxu0 0
  %2996 = vmatpush1.bf16.msra.mxu0 0
  %2997 = vmatprep.subr.bf16.mxu0 0
  %2998 = vmatpush1.bf16.msra.mxu0 0
  %2999 = vmatprep.subr.bf16.mxu0 0
  %3000 = vmatpush1.bf16.msra.mxu0 0
  %3001 = vmatprep.subr.bf16.mxu0 0
  %3002 = vmatpush1.bf16.msra.mxu0 0
  %3003 = vmatprep.subr.bf16.mxu0 0
  %3004 = vmatpush1.bf16.msra.mxu0 0
  %3005 = vmatprep.subr.bf16.mxu0 0
  %3006 = vmatpush1.bf16.msra.mxu0 0
  %3007 = vmatprep.mubr.bf16.mxu0 0
  %3008 = vmatmul.mubr.bf16.gmra.mrb[0].mxu0 %v2967
  %v3009 = vpop.f32.mrb[0].mxu0
  %v3010 = vadd.f32 0.0, %v3009
  %v3011 = vpop.f32.mrb[0].mxu0
  %v3012 = vpop.f32.mrb[0].mxu0
  %v3013 = vadd.f32 0.0, %v3012
  %v3014 = vpop.f32.mrb[0].mxu0
  %3015 = vmatprep.mubr.bf16.mxu0 0
  %3016 = vmatmul.mubr.bf16.gmra.mrb[0].mxu0 %v2970
  %v3017 = vpop.f32.mrb[0].mxu0
  %v3018 = vadd.f32 0.0, %v3017
  %v3019 = vpop.f32.mrb[0].mxu0
  %v3020 = vpop.f32.mrb[0].mxu0
  %v3021 = vadd.f32 0.0, %v3020
  %v3022 = vpop.f32.mrb[0].mxu0
  %3023 = vdwg.mxu0
  %v3024 = vadd.f32 %v2937, %v3010
  %v3025 = vadd.f32 %v2938, %v3013
  %v3026 = vadd.f32 %v2939, %v3018
  %v3027 = vadd.f32 %v2940, %v3021
  %3029 = vset.pattern.permute.xlu0 0
  %3030 = vperm.xlu0 %3029, %v2276
  %v3031 = vpop.permute.xlu0 %3030
  %3034 = vset.pattern.permute.xlu0 0
  %3035 = vperm.xlu0 %3034, %v2277
  %v3036 = vpop.permute.xlu0 %3035
  %3039 = vset.pattern.permute.xlu0 0
  %3040 = vperm.xlu0 %3039, %v2278
  %v3041 = vpop.permute.xlu0 %3040
  %3044 = vset.pattern.permute.xlu0 0
  %3045 = vperm.xlu0 %3044, %v2279
  %v3046 = vpop.permute.xlu0 %3045
  %v3048 = vadd.f32 %v3024, %v3031
  %v3049 = vadd.f32 %v3025, %v3036
  %v3050 = vadd.f32 %v3026, %v3041
  %v3051 = vadd.f32 %v3027, %v3046
  %v3052 = vld [vmem:[%s6] sm:$0xff]
  %v3053 = vld [vmem:[%s6 + $0x8] sm:$0xff]
  %v3054 = vld [vmem:[%s6 + $0x10] sm:$0xff]
  %v3055 = vld [vmem:[%s6 + $0x18] sm:$0xff]
  %v3056 = vld [vmem:[%s7] sm:$0xff]
  %v3057 = vld [vmem:[%s7 + $0x8] sm:$0xff]
  %v3058 = vld [vmem:[%s7 + $0x10] sm:$0xff]
  %v3059 = vld [vmem:[%s7 + $0x18] sm:$0xff]
  %v3060 = vmul.f32 %v3048, %v333
  %v3061 = vmul.f32 %v3049, %v333
  %v3062 = vmul.f32 %v3050, %v333
  %v3063 = vmul.f32 %v3051, %v333
  %3064 = vadd.xlane.f32.xlu0 %v3060
  %v3065 = vpop.xlane.xlu0 %3064
  %3066 = vadd.xlane.f32.xlu0 %v3061
  %v3067 = vpop.xlane.xlu0 %3066
  %3068 = vadd.xlane.f32.xlu0 %v3062
  %v3069 = vpop.xlane.xlu0 %3068
  %3070 = vadd.xlane.f32.xlu0 %v3063
  %v3071 = vpop.xlane.xlu0 %3070
  %v3072 = vmul.f32 %v3065, 0.03125
  %v3073 = vmul.f32 %v3067, 0.03125
  %v3074 = vmul.f32 %v3069, 0.03125
  %v3075 = vmul.f32 %v3071, 0.03125
  %v3076 = vsub.f32 %v3048, %v3072
  %v3077 = vsub.f32 %v3049, %v3073
  %v3078 = vsub.f32 %v3050, %v3074
  %v3079 = vsub.f32 %v3051, %v3075
  %v3080 = vmul.f32 %v3076, %v333
  %v3081 = vmul.f32 %v3077, %v333
  %v3082 = vmul.f32 %v3078, %v333
  %v3083 = vmul.f32 %v3079, %v333
  %v3084 = vmul.f32 %v3080, %v3080
  %v3085 = vmul.f32 %v3081, %v3081
  %v3086 = vmul.f32 %v3082, %v3082
  %v3087 = vmul.f32 %v3083, %v3083
  %3088 = vadd.xlane.f32.xlu0 %v3084
  %v3089 = vpop.xlane.xlu0 %3088
  %3090 = vadd.xlane.f32.xlu0 %v3085
  %v3091 = vpop.xlane.xlu0 %3090
  %3092 = vadd.xlane.f32.xlu0 %v3086
  %v3093 = vpop.xlane.xlu0 %3092
  %3094 = vadd.xlane.f32.xlu0 %v3087
  %v3095 = vpop.xlane.xlu0 %3094
  %v3096 = vmul.f32 %v3089, 0.03125
  %v3097 = vmul.f32 %v3091, 0.03125
  %v3098 = vmul.f32 %v3093, 0.03125
  %v3099 = vmul.f32 %v3095, 0.03125
  %v3100 = vadd.f32 %v3096, 1e-05
  %v3101 = vadd.f32 %v3097, 1e-05
  %v3102 = vadd.f32 %v3098, 1e-05
  %v3103 = vadd.f32 %v3099, 1e-05
  %v3104 = vrsqrt.pop %v3100
  %v3105 = vrsqrt.pop %v3101
  %v3106 = vrsqrt.pop %v3102
  %v3107 = vrsqrt.pop %v3103
  %v3108 = vmul.f32 %v3076, %v3104
  %v3109 = vmul.f32 %v3077, %v3105
  %v3110 = vmul.f32 %v3078, %v3106
  %v3111 = vmul.f32 %v3079, %v3107
  %3113 = vset.pattern.permute.xlu0 0
  %3114 = vperm.xlu0 %3113, %v3052
  %v3115 = vpop.permute.xlu0 %3114
  %3118 = vset.pattern.permute.xlu0 0
  %3119 = vperm.xlu0 %3118, %v3053
  %v3120 = vpop.permute.xlu0 %3119
  %3123 = vset.pattern.permute.xlu0 0
  %3124 = vperm.xlu0 %3123, %v3054
  %v3125 = vpop.permute.xlu0 %3124
  %3128 = vset.pattern.permute.xlu0 0
  %3129 = vperm.xlu0 %3128, %v3055
  %v3130 = vpop.permute.xlu0 %3129
  %v3132 = vmul.f32 %v3108, %v3115
  %v3133 = vmul.f32 %v3109, %v3120
  %v3134 = vmul.f32 %v3110, %v3125
  %v3135 = vmul.f32 %v3111, %v3130
  %3137 = vset.pattern.permute.xlu0 0
  %3138 = vperm.xlu0 %3137, %v3056
  %v3139 = vpop.permute.xlu0 %3138
  %3142 = vset.pattern.permute.xlu0 0
  %3143 = vperm.xlu0 %3142, %v3057
  %v3144 = vpop.permute.xlu0 %3143
  %3147 = vset.pattern.permute.xlu0 0
  %3148 = vperm.xlu0 %3147, %v3058
  %v3149 = vpop.permute.xlu0 %3148
  %3152 = vset.pattern.permute.xlu0 0
  %3153 = vperm.xlu0 %3152, %v3059
  %v3154 = vpop.permute.xlu0 %3153
  %v3156 = vadd.f32 %v3132, %v3139
  %v3157 = vadd.f32 %v3133, %v3144
  %v3158 = vadd.f32 %v3134, %v3149
  %v3159 = vadd.f32 %v3135, %v3154
  %vm3160 = vcmp.gt.f32.partialorder %v3156, 0.0
  %vm3161 = vcmp.gt.f32.partialorder %v3157, 0.0
  %vm3162 = vcmp.gt.f32.partialorder %v3158, 0.0
  %vm3163 = vcmp.gt.f32.partialorder %v3159, 0.0
  %v3164 = vmul.f32 %v3156, 0.2
  %v3165 = vmul.f32 %v3157, 0.2
  %v3166 = vmul.f32 %v3158, 0.2
  %v3167 = vmul.f32 %v3159, 0.2
  %v3168 = vsel %vm3160, %v3156, %v3164
  %v3169 = vsel %vm3161, %v3157, %v3165
  %v3170 = vsel %vm3162, %v3158, %v3166
  %v3171 = vsel %vm3163, %v3159, %v3167
  %v3172 = vld [vmem:[%s8] sm:$0xff]
  %v3173 = vld [vmem:[%s8 + $0x8] sm:$0xf]
  %v3174 = vld [vmem:[%s8 + $0xc] sm:$0xff]
  %v3175 = vld [vmem:[%s8 + $0x14] sm:$0xf]
  %v3176 = vld [vmem:[%s8 + $0x18] sm:$0xff]
  %v3177 = vld [vmem:[%s8 + $0x20] sm:$0xf]
  %v3178 = vld [vmem:[%s8 + $0x24] sm:$0xff]
  %v3179 = vld [vmem:[%s8 + $0x2c] sm:$0xf]
  %v3180 = vld [vmem:[%s9] sm:$0xff]
  %v3181 = vld [vmem:[%s9 + $0x8] sm:$0xff]
  %v3182 = vld [vmem:[%s9 + $0x10] sm:$0xff]
  %v3183 = vld [vmem:[%s9 + $0x18] sm:$0xff]
  %3184 = vrot.lane.b32.xlu0 %v3168, 5
  %v3185 = vpop.permute.xlu0 %3184
  %3186 = vrot.lane.b32.xlu0 %v3169, 5
  %v3187 = vpop.permute.xlu0 %3186
  %3188 = vrot.lane.b32.xlu0 %v3170, 5
  %v3189 = vpop.permute.xlu0 %3188
  %3190 = vrot.lane.b32.xlu0 %v3171, 5
  %v3191 = vpop.permute.xlu0 %3190
  %v3192 = vmul.f32 %v3185, %v93
  %v3193 = vmul.f32 %v3187, %v93
  %v3194 = vmul.f32 %v3189, %v93
  %v3195 = vmul.f32 %v3191, %v93
  %v3196 = vpack.c.bf16 %v3193, %v3192
  %v3197 = vpack.c.bf16 %v3195, %v3194
  %3198 = vrot.lane.b32.xlu0 %v3168, 4
  %v3199 = vpop.permute.xlu0 %3198
  %3200 = vrot.lane.b32.xlu0 %v3169, 4
  %v3201 = vpop.permute.xlu0 %3200
  %3202 = vrot.lane.b32.xlu0 %v3170, 4
  %v3203 = vpop.permute.xlu0 %3202
  %3204 = vrot.lane.b32.xlu0 %v3171, 4
  %v3205 = vpop.permute.xlu0 %3204
  %v3206 = vmul.f32 %v3199, %v107
  %v3207 = vmul.f32 %v3201, %v107
  %v3208 = vmul.f32 %v3203, %v107
  %v3209 = vmul.f32 %v3205, %v107
  %v3210 = vpack.c.bf16 %v3207, %v3206
  %v3211 = vpack.c.bf16 %v3209, %v3208
  %3212 = vrot.lane.b32.xlu0 %v3168, 3
  %v3213 = vpop.permute.xlu0 %3212
  %3214 = vrot.lane.b32.xlu0 %v3169, 3
  %v3215 = vpop.permute.xlu0 %3214
  %3216 = vrot.lane.b32.xlu0 %v3170, 3
  %v3217 = vpop.permute.xlu0 %3216
  %3218 = vrot.lane.b32.xlu0 %v3171, 3
  %v3219 = vpop.permute.xlu0 %3218
  %v3220 = vmul.f32 %v3213, %v2439
  %v3221 = vmul.f32 %v3215, %v2439
  %v3222 = vmul.f32 %v3217, %v2439
  %v3223 = vmul.f32 %v3219, %v2439
  %v3224 = vpack.c.bf16 %v3221, %v3220
  %v3225 = vpack.c.bf16 %v3223, %v3222
  %3226 = vrot.lane.b32.xlu0 %v3168, 1
  %v3227 = vpop.permute.xlu0 %3226
  %3228 = vrot.lane.b32.xlu0 %v3169, 1
  %v3229 = vpop.permute.xlu0 %3228
  %3230 = vrot.lane.b32.xlu0 %v3170, 1
  %v3231 = vpop.permute.xlu0 %3230
  %3232 = vrot.lane.b32.xlu0 %v3171, 1
  %v3233 = vpop.permute.xlu0 %3232
  %v3234 = vmul.f32 %v3227, %v276
  %v3235 = vmul.f32 %v3229, %v276
  %v3236 = vmul.f32 %v3231, %v276
  %v3237 = vmul.f32 %v3233, %v276
  %v3238 = vpack.c.bf16 %v3235, %v3234
  %v3239 = vpack.c.bf16 %v3237, %v3236
  %v3240 = vmul.f32 %v3168, %v333
  %v3241 = vmul.f32 %v3169, %v333
  %v3242 = vmul.f32 %v3170, %v333
  %v3243 = vmul.f32 %v3171, %v333
  %v3244 = vpack.c.bf16 %v3241, %v3240
  %v3245 = vpack.c.bf16 %v3243, %v3242
  %3246 = vrot.lane.b32.xlu0 %v3168, 127
  %v3247 = vpop.permute.xlu0 %3246
  %3248 = vrot.lane.b32.xlu0 %v3169, 127
  %v3249 = vpop.permute.xlu0 %3248
  %3250 = vrot.lane.b32.xlu0 %v3170, 127
  %v3251 = vpop.permute.xlu0 %3250
  %3252 = vrot.lane.b32.xlu0 %v3171, 127
  %v3253 = vpop.permute.xlu0 %3252
  %v3254 = vmul.f32 %v3247, %v2686
  %v3255 = vmul.f32 %v3249, %v2686
  %v3256 = vmul.f32 %v3251, %v2686
  %v3257 = vmul.f32 %v3253, %v2686
  %v3258 = vpack.c.bf16 %v3255, %v3254
  %v3259 = vpack.c.bf16 %v3257, %v3256
  %3260 = vrot.lane.b32.xlu0 %v3168, 125
  %v3261 = vpop.permute.xlu0 %3260
  %3262 = vrot.lane.b32.xlu0 %v3169, 125
  %v3263 = vpop.permute.xlu0 %3262
  %3264 = vrot.lane.b32.xlu0 %v3170, 125
  %v3265 = vpop.permute.xlu0 %3264
  %3266 = vrot.lane.b32.xlu0 %v3171, 125
  %v3267 = vpop.permute.xlu0 %3266
  %v3268 = vmul.f32 %v3261, %v2773
  %v3269 = vmul.f32 %v3263, %v2773
  %v3270 = vmul.f32 %v3265, %v2773
  %v3271 = vmul.f32 %v3267, %v2773
  %v3272 = vpack.c.bf16 %v3269, %v3268
  %v3273 = vpack.c.bf16 %v3271, %v3270
  %3274 = vrot.lane.b32.xlu0 %v3168, 124
  %v3275 = vpop.permute.xlu0 %3274
  %3276 = vrot.lane.b32.xlu0 %v3169, 124
  %v3277 = vpop.permute.xlu0 %3276
  %3278 = vrot.lane.b32.xlu0 %v3170, 124
  %v3279 = vpop.permute.xlu0 %3278
  %3280 = vrot.lane.b32.xlu0 %v3171, 124
  %v3281 = vpop.permute.xlu0 %3280
  %v3282 = vmul.f32 %v3275, %v2860
  %v3283 = vmul.f32 %v3277, %v2860
  %v3284 = vmul.f32 %v3279, %v2860
  %v3285 = vmul.f32 %v3281, %v2860
  %v3286 = vpack.c.bf16 %v3283, %v3282
  %v3287 = vpack.c.bf16 %v3285, %v3284
  %3288 = vrot.lane.b32.xlu0 %v3168, 123
  %v3289 = vpop.permute.xlu0 %3288
  %3290 = vrot.lane.b32.xlu0 %v3169, 123
  %v3291 = vpop.permute.xlu0 %3290
  %3292 = vrot.lane.b32.xlu0 %v3170, 123
  %v3293 = vpop.permute.xlu0 %3292
  %3294 = vrot.lane.b32.xlu0 %v3171, 123
  %v3295 = vpop.permute.xlu0 %3294
  %v3296 = vmul.f32 %v3289, %v2947
  %v3297 = vmul.f32 %v3291, %v2947
  %v3298 = vmul.f32 %v3293, %v2947
  %v3299 = vmul.f32 %v3295, %v2947
  %v3300 = vpack.c.bf16 %v3297, %v3296
  %v3301 = vpack.c.bf16 %v3299, %v3298
  %3303 = vset.pattern.permute.xlu0 0
  %3304 = vperm.xlu0 %3303, %v3180
  %v3305 = vpop.permute.xlu0 %3304
  %3308 = vset.pattern.permute.xlu0 0
  %3309 = vperm.xlu0 %3308, %v3181
  %v3310 = vpop.permute.xlu0 %3309
  %3313 = vset.pattern.permute.xlu0 0
  %3314 = vperm.xlu0 %3313, %v3182
  %v3315 = vpop.permute.xlu0 %3314
  %3318 = vset.pattern.permute.xlu0 0
  %3319 = vperm.xlu0 %3318, %v3183
  %v3320 = vpop.permute.xlu0 %3319
  %v3330 = vunpack.c.l.b16 %v3172
  %v3331 = vunpack.c.h.b16 %v3172
  %v3332 = vunpack.c.l.b16 %v3173
  %v3333 = vunpack.c.l.b16 %v3174
  %v3334 = vunpack.c.h.b16 %v3174
  %v3335 = vunpack.c.l.b16 %v3175
  %v3336 = vunpack.c.l.b16 %v3176
  %v3337 = vunpack.c.h.b16 %v3176
  %v3338 = vunpack.c.l.b16 %v3177
  %v3339 = vunpack.c.l.b16 %v3178
  %v3340 = vunpack.c.h.b16 %v3178
  %v3341 = vunpack.c.l.b16 %v3179
  %v3342 = vpack.c.b16 %v3333, %v3330
  %v3343 = vpack.c.b16 %v3334, %v3331
  %v3344 = vpack.c.b16 %v3335, %v3332
  %v3345 = vpack.c.b16 %v3339, %v3336
  %v3346 = vpack.c.b16 %v3340, %v3337
  %v3347 = vpack.c.b16 %v3341, %v3338
  %vm3352 = vcmask 261120
  %v3354 = vsel %vm3352, %v3344, 0
  %v3357 = vsel %vm3352, %v3347, 0
  %3359 = vmatprep.subr.bf16.mxu0 0
  %3360 = vmatpush1.bf16.msra.mxu0 %v3196
  %3361 = vmatprep.subr.bf16.mxu0 0
  %3362 = vmatpush1.bf16.msra.mxu0 %v3197
  %3363 = vmatprep.subr.bf16.mxu0 0
  %3364 = vmatpush1.bf16.msra.mxu0 %v3210
  %3365 = vmatprep.subr.bf16.mxu0 0
  %3366 = vmatpush1.bf16.msra.mxu0 %v3211
  %3367 = vmatprep.subr.bf16.mxu0 0
  %3368 = vmatpush1.bf16.msra.mxu0 %v3224
  %3369 = vmatprep.subr.bf16.mxu0 0
  %3370 = vmatpush1.bf16.msra.mxu0 %v3225
  %3371 = vmatprep.subr.bf16.mxu0 0
  %3372 = vmatpush1.bf16.msra.mxu0 %v3238
  %3373 = vmatprep.subr.bf16.mxu0 0
  %3374 = vmatpush1.bf16.msra.mxu0 %v3239
  %3375 = vmatprep.subr.bf16.mxu0 0
  %3376 = vmatpush1.bf16.msra.mxu0 %v3244
  %3377 = vmatprep.subr.bf16.mxu0 0
  %3378 = vmatpush1.bf16.msra.mxu0 %v3245
  %3379 = vmatprep.subr.bf16.mxu0 0
  %3380 = vmatpush1.bf16.msra.mxu0 %v3258
  %3381 = vmatprep.subr.bf16.mxu0 0
  %3382 = vmatpush1.bf16.msra.mxu0 %v3259
  %3383 = vmatprep.subr.bf16.mxu0 0
  %3384 = vmatpush1.bf16.msra.mxu0 %v3272
  %3385 = vmatprep.subr.bf16.mxu0 0
  %3386 = vmatpush1.bf16.msra.mxu0 %v3273
  %3387 = vmatprep.subr.bf16.mxu0 0
  %3388 = vmatpush1.bf16.msra.mxu0 %v3286
  %3389 = vmatprep.subr.bf16.mxu0 0
  %3390 = vmatpush1.bf16.msra.mxu0 %v3287
  %3391 = vmatprep.mubr.bf16.mxu0 %v3343
  %3392 = vmatmul.mubr.bf16.gmra.mrb[0].mxu0 %v3342
  %v3393 = vpop.f32.mrb[0].mxu0
  %v3394 = vadd.f32 %v3305, %v3393
  %v3395 = vpop.f32.mrb[0].mxu0
  %v3396 = vpop.f32.mrb[0].mxu0
  %v3397 = vadd.f32 %v3310, %v3396
  %v3398 = vpop.f32.mrb[0].mxu0
  %3399 = vmatprep.mubr.bf16.mxu0 %v3346
  %3400 = vmatmul.mubr.bf16.gmra.mrb[0].mxu0 %v3345
  %v3401 = vpop.f32.mrb[0].mxu0
  %v3402 = vadd.f32 %v3315, %v3401
  %v3403 = vpop.f32.mrb[0].mxu0
  %v3404 = vpop.f32.mrb[0].mxu0
  %v3405 = vadd.f32 %v3320, %v3404
  %v3406 = vpop.f32.mrb[0].mxu0
  %3407 = vdwg.mxu0
  %3408 = vmatprep.subr.bf16.mxu0 0
  %3409 = vmatpush1.bf16.msra.mxu0 %v3300
  %3410 = vmatprep.subr.bf16.mxu0 0
  %3411 = vmatpush1.bf16.msra.mxu0 %v3301
  %3412 = vmatprep.subr.bf16.mxu0 0
  %3413 = vmatpush1.bf16.msra.mxu0 0
  %3414 = vmatprep.subr.bf16.mxu0 0
  %3415 = vmatpush1.bf16.msra.mxu0 0
  %3416 = vmatprep.subr.bf16.mxu0 0
  %3417 = vmatpush1.bf16.msra.mxu0 0
  %3418 = vmatprep.subr.bf16.mxu0 0
  %3419 = vmatpush1.bf16.msra.mxu0 0
  %3420 = vmatprep.subr.bf16.mxu0 0
  %3421 = vmatpush1.bf16.msra.mxu0 0
  %3422 = vmatprep.subr.bf16.mxu0 0
  %3423 = vmatpush1.bf16.msra.mxu0 0
  %3424 = vmatprep.subr.bf16.mxu0 0
  %3425 = vmatpush1.bf16.msra.mxu0 0
  %3426 = vmatprep.subr.bf16.mxu0 0
  %3427 = vmatpush1.bf16.msra.mxu0 0
  %3428 = vmatprep.subr.bf16.mxu0 0
  %3429 = vmatpush1.bf16.msra.mxu0 0
  %3430 = vmatprep.subr.bf16.mxu0 0
  %3431 = vmatpush1.bf16.msra.mxu0 0
  %3432 = vmatprep.subr.bf16.mxu0 0
  %3433 = vmatpush1.bf16.msra.mxu0 0
  %3434 = vmatprep.subr.bf16.mxu0 0
  %3435 = vmatpush1.bf16.msra.mxu0 0
  %3436 = vmatprep.subr.bf16.mxu0 0
  %3437 = vmatpush1.bf16.msra.mxu0 0
  %3438 = vmatprep.subr.bf16.mxu0 0
  %3439 = vmatpush1.bf16.msra.mxu0 0
  %3440 = vmatprep.mubr.bf16.mxu0 0
  %3441 = vmatmul.mubr.bf16.gmra.mrb[0].mxu0 %v3354
  %v3442 = vpop.f32.mrb[0].mxu0
  %v3443 = vadd.f32 %v3394, %v3442
  %v3444 = vpop.f32.mrb[0].mxu0
  %v3445 = vpop.f32.mrb[0].mxu0
  %v3446 = vadd.f32 %v3397, %v3445
  %v3447 = vpop.f32.mrb[0].mxu0
  %3448 = vmatprep.mubr.bf16.mxu0 0
  %3449 = vmatmul.mubr.bf16.gmra.mrb[0].mxu0 %v3357
  %v3450 = vpop.f32.mrb[0].mxu0
  %v3451 = vadd.f32 %v3402, %v3450
  %v3452 = vpop.f32.mrb[0].mxu0
  %v3453 = vpop.f32.mrb[0].mxu0
  %v3454 = vadd.f32 %v3405, %v3453
  %v3455 = vpop.f32.mrb[0].mxu0
  %3456 = vdwg.mxu0
  %v3457 = vld [vmem:[%s10] sm:$0xff]
  %v3458 = vld [vmem:[%s10 + $0x8] sm:$0xff]
  %v3459 = vld [vmem:[%s10 + $0x10] sm:$0xff]
  %v3460 = vld [vmem:[%s10 + $0x18] sm:$0xff]
  %v3461 = vld [vmem:[%s11] sm:$0xff]
  %v3462 = vld [vmem:[%s11 + $0x8] sm:$0xff]
  %v3463 = vld [vmem:[%s11 + $0x10] sm:$0xff]
  %v3464 = vld [vmem:[%s11 + $0x18] sm:$0xff]
  %v3465 = vmul.f32 %v3443, %v333
  %v3466 = vmul.f32 %v3446, %v333
  %v3467 = vmul.f32 %v3451, %v333
  %v3468 = vmul.f32 %v3454, %v333
  %3469 = vadd.xlane.f32.xlu0 %v3465
  %v3470 = vpop.xlane.xlu0 %3469
  %3471 = vadd.xlane.f32.xlu0 %v3466
  %v3472 = vpop.xlane.xlu0 %3471
  %3473 = vadd.xlane.f32.xlu0 %v3467
  %v3474 = vpop.xlane.xlu0 %3473
  %3475 = vadd.xlane.f32.xlu0 %v3468
  %v3476 = vpop.xlane.xlu0 %3475
  %v3477 = vmul.f32 %v3470, 0.03125
  %v3478 = vmul.f32 %v3472, 0.03125
  %v3479 = vmul.f32 %v3474, 0.03125
  %v3480 = vmul.f32 %v3476, 0.03125
  %v3481 = vsub.f32 %v3443, %v3477
  %v3482 = vsub.f32 %v3446, %v3478
  %v3483 = vsub.f32 %v3451, %v3479
  %v3484 = vsub.f32 %v3454, %v3480
  %v3485 = vmul.f32 %v3481, %v333
  %v3486 = vmul.f32 %v3482, %v333
  %v3487 = vmul.f32 %v3483, %v333
  %v3488 = vmul.f32 %v3484, %v333
  %v3489 = vmul.f32 %v3485, %v3485
  %v3490 = vmul.f32 %v3486, %v3486
  %v3491 = vmul.f32 %v3487, %v3487
  %v3492 = vmul.f32 %v3488, %v3488
  %3493 = vadd.xlane.f32.xlu0 %v3489
  %v3494 = vpop.xlane.xlu0 %3493
  %3495 = vadd.xlane.f32.xlu0 %v3490
  %v3496 = vpop.xlane.xlu0 %3495
  %3497 = vadd.xlane.f32.xlu0 %v3491
  %v3498 = vpop.xlane.xlu0 %3497
  %3499 = vadd.xlane.f32.xlu0 %v3492
  %v3500 = vpop.xlane.xlu0 %3499
  %v3501 = vmul.f32 %v3494, 0.03125
  %v3502 = vmul.f32 %v3496, 0.03125
  %v3503 = vmul.f32 %v3498, 0.03125
  %v3504 = vmul.f32 %v3500, 0.03125
  %v3505 = vadd.f32 %v3501, 1e-05
  %v3506 = vadd.f32 %v3502, 1e-05
  %v3507 = vadd.f32 %v3503, 1e-05
  %v3508 = vadd.f32 %v3504, 1e-05
  %v3509 = vrsqrt.pop %v3505
  %v3510 = vrsqrt.pop %v3506
  %v3511 = vrsqrt.pop %v3507
  %v3512 = vrsqrt.pop %v3508
  %v3513 = vmul.f32 %v3481, %v3509
  %v3514 = vmul.f32 %v3482, %v3510
  %v3515 = vmul.f32 %v3483, %v3511
  %v3516 = vmul.f32 %v3484, %v3512
  %3518 = vset.pattern.permute.xlu0 0
  %3519 = vperm.xlu0 %3518, %v3457
  %v3520 = vpop.permute.xlu0 %3519
  %3523 = vset.pattern.permute.xlu0 0
  %3524 = vperm.xlu0 %3523, %v3458
  %v3525 = vpop.permute.xlu0 %3524
  %3528 = vset.pattern.permute.xlu0 0
  %3529 = vperm.xlu0 %3528, %v3459
  %v3530 = vpop.permute.xlu0 %3529
  %3533 = vset.pattern.permute.xlu0 0
  %3534 = vperm.xlu0 %3533, %v3460
  %v3535 = vpop.permute.xlu0 %3534
  %v3537 = vmul.f32 %v3513, %v3520
  %v3538 = vmul.f32 %v3514, %v3525
  %v3539 = vmul.f32 %v3515, %v3530
  %v3540 = vmul.f32 %v3516, %v3535
  %3542 = vset.pattern.permute.xlu0 0
  %3543 = vperm.xlu0 %3542, %v3461
  %v3544 = vpop.permute.xlu0 %3543
  %3547 = vset.pattern.permute.xlu0 0
  %3548 = vperm.xlu0 %3547, %v3462
  %v3549 = vpop.permute.xlu0 %3548
  %3552 = vset.pattern.permute.xlu0 0
  %3553 = vperm.xlu0 %3552, %v3463
  %v3554 = vpop.permute.xlu0 %3553
  %3557 = vset.pattern.permute.xlu0 0
  %3558 = vperm.xlu0 %3557, %v3464
  %v3559 = vpop.permute.xlu0 %3558
  %v3561 = vadd.f32 %v3537, %v3544
  %v3562 = vadd.f32 %v3538, %v3549
  %v3563 = vadd.f32 %v3539, %v3554
  %v3564 = vadd.f32 %v3540, %v3559
  %vm3565 = vcmp.gt.f32.partialorder %v3561, 0.0
  %vm3566 = vcmp.gt.f32.partialorder %v3562, 0.0
  %vm3567 = vcmp.gt.f32.partialorder %v3563, 0.0
  %vm3568 = vcmp.gt.f32.partialorder %v3564, 0.0
  %v3569 = vmul.f32 %v3561, 0.2
  %v3570 = vmul.f32 %v3562, 0.2
  %v3571 = vmul.f32 %v3563, 0.2
  %v3572 = vmul.f32 %v3564, 0.2
  %v3573 = vsel %vm3565, %v3561, %v3569
  %v3574 = vsel %vm3566, %v3562, %v3570
  %v3575 = vsel %vm3567, %v3563, %v3571
  %v3576 = vsel %vm3568, %v3564, %v3572
  %v3577 = vld [vmem:[%s12] sm:$0xff]
  %v3578 = vld [vmem:[%s12 + $0x8] sm:$0xf]
  %v3579 = vld [vmem:[%s12 + $0xc] sm:$0xff]
  %v3580 = vld [vmem:[%s12 + $0x14] sm:$0xf]
  %v3581 = vld [vmem:[%s12 + $0x18] sm:$0xff]
  %v3582 = vld [vmem:[%s12 + $0x20] sm:$0xf]
  %v3583 = vld [vmem:[%s12 + $0x24] sm:$0xff]
  %v3584 = vld [vmem:[%s12 + $0x2c] sm:$0xf]
  %v3585 = vld [vmem:[%s13] sm:$0xff]
  %v3586 = vld [vmem:[%s13 + $0x8] sm:$0xff]
  %v3587 = vld [vmem:[%s13 + $0x10] sm:$0xff]
  %v3588 = vld [vmem:[%s13 + $0x18] sm:$0xff]
  %3589 = vrot.lane.b32.xlu0 %v3573, 5
  %v3590 = vpop.permute.xlu0 %3589
  %3591 = vrot.lane.b32.xlu0 %v3574, 5
  %v3592 = vpop.permute.xlu0 %3591
  %3593 = vrot.lane.b32.xlu0 %v3575, 5
  %v3594 = vpop.permute.xlu0 %3593
  %3595 = vrot.lane.b32.xlu0 %v3576, 5
  %v3596 = vpop.permute.xlu0 %3595
  %v3597 = vmul.f32 %v3590, %v93
  %v3598 = vmul.f32 %v3592, %v93
  %v3599 = vmul.f32 %v3594, %v93
  %v3600 = vmul.f32 %v3596, %v93
  %v3601 = vpack.c.bf16 %v3598, %v3597
  %v3602 = vpack.c.bf16 %v3600, %v3599
  %3603 = vrot.lane.b32.xlu0 %v3573, 4
  %v3604 = vpop.permute.xlu0 %3603
  %3605 = vrot.lane.b32.xlu0 %v3574, 4
  %v3606 = vpop.permute.xlu0 %3605
  %3607 = vrot.lane.b32.xlu0 %v3575, 4
  %v3608 = vpop.permute.xlu0 %3607
  %3609 = vrot.lane.b32.xlu0 %v3576, 4
  %v3610 = vpop.permute.xlu0 %3609
  %v3611 = vmul.f32 %v3604, %v107
  %v3612 = vmul.f32 %v3606, %v107
  %v3613 = vmul.f32 %v3608, %v107
  %v3614 = vmul.f32 %v3610, %v107
  %v3615 = vpack.c.bf16 %v3612, %v3611
  %v3616 = vpack.c.bf16 %v3614, %v3613
  %3617 = vrot.lane.b32.xlu0 %v3573, 3
  %v3618 = vpop.permute.xlu0 %3617
  %3619 = vrot.lane.b32.xlu0 %v3574, 3
  %v3620 = vpop.permute.xlu0 %3619
  %3621 = vrot.lane.b32.xlu0 %v3575, 3
  %v3622 = vpop.permute.xlu0 %3621
  %3623 = vrot.lane.b32.xlu0 %v3576, 3
  %v3624 = vpop.permute.xlu0 %3623
  %v3625 = vmul.f32 %v3618, %v2439
  %v3626 = vmul.f32 %v3620, %v2439
  %v3627 = vmul.f32 %v3622, %v2439
  %v3628 = vmul.f32 %v3624, %v2439
  %v3629 = vpack.c.bf16 %v3626, %v3625
  %v3630 = vpack.c.bf16 %v3628, %v3627
  %3631 = vrot.lane.b32.xlu0 %v3573, 1
  %v3632 = vpop.permute.xlu0 %3631
  %3633 = vrot.lane.b32.xlu0 %v3574, 1
  %v3634 = vpop.permute.xlu0 %3633
  %3635 = vrot.lane.b32.xlu0 %v3575, 1
  %v3636 = vpop.permute.xlu0 %3635
  %3637 = vrot.lane.b32.xlu0 %v3576, 1
  %v3638 = vpop.permute.xlu0 %3637
  %v3639 = vmul.f32 %v3632, %v276
  %v3640 = vmul.f32 %v3634, %v276
  %v3641 = vmul.f32 %v3636, %v276
  %v3642 = vmul.f32 %v3638, %v276
  %v3643 = vpack.c.bf16 %v3640, %v3639
  %v3644 = vpack.c.bf16 %v3642, %v3641
  %v3645 = vmul.f32 %v3573, %v333
  %v3646 = vmul.f32 %v3574, %v333
  %v3647 = vmul.f32 %v3575, %v333
  %v3648 = vmul.f32 %v3576, %v333
  %v3649 = vpack.c.bf16 %v3646, %v3645
  %v3650 = vpack.c.bf16 %v3648, %v3647
  %3651 = vrot.lane.b32.xlu0 %v3573, 127
  %v3652 = vpop.permute.xlu0 %3651
  %3653 = vrot.lane.b32.xlu0 %v3574, 127
  %v3654 = vpop.permute.xlu0 %3653
  %3655 = vrot.lane.b32.xlu0 %v3575, 127
  %v3656 = vpop.permute.xlu0 %3655
  %3657 = vrot.lane.b32.xlu0 %v3576, 127
  %v3658 = vpop.permute.xlu0 %3657
  %v3659 = vmul.f32 %v3652, %v2686
  %v3660 = vmul.f32 %v3654, %v2686
  %v3661 = vmul.f32 %v3656, %v2686
  %v3662 = vmul.f32 %v3658, %v2686
  %v3663 = vpack.c.bf16 %v3660, %v3659
  %v3664 = vpack.c.bf16 %v3662, %v3661
  %3665 = vrot.lane.b32.xlu0 %v3573, 125
  %v3666 = vpop.permute.xlu0 %3665
  %3667 = vrot.lane.b32.xlu0 %v3574, 125
  %v3668 = vpop.permute.xlu0 %3667
  %3669 = vrot.lane.b32.xlu0 %v3575, 125
  %v3670 = vpop.permute.xlu0 %3669
  %3671 = vrot.lane.b32.xlu0 %v3576, 125
  %v3672 = vpop.permute.xlu0 %3671
  %v3673 = vmul.f32 %v3666, %v2773
  %v3674 = vmul.f32 %v3668, %v2773
  %v3675 = vmul.f32 %v3670, %v2773
  %v3676 = vmul.f32 %v3672, %v2773
  %v3677 = vpack.c.bf16 %v3674, %v3673
  %v3678 = vpack.c.bf16 %v3676, %v3675
  %3679 = vrot.lane.b32.xlu0 %v3573, 124
  %v3680 = vpop.permute.xlu0 %3679
  %3681 = vrot.lane.b32.xlu0 %v3574, 124
  %v3682 = vpop.permute.xlu0 %3681
  %3683 = vrot.lane.b32.xlu0 %v3575, 124
  %v3684 = vpop.permute.xlu0 %3683
  %3685 = vrot.lane.b32.xlu0 %v3576, 124
  %v3686 = vpop.permute.xlu0 %3685
  %v3687 = vmul.f32 %v3680, %v2860
  %v3688 = vmul.f32 %v3682, %v2860
  %v3689 = vmul.f32 %v3684, %v2860
  %v3690 = vmul.f32 %v3686, %v2860
  %v3691 = vpack.c.bf16 %v3688, %v3687
  %v3692 = vpack.c.bf16 %v3690, %v3689
  %3693 = vrot.lane.b32.xlu0 %v3573, 123
  %v3694 = vpop.permute.xlu0 %3693
  %3695 = vrot.lane.b32.xlu0 %v3574, 123
  %v3696 = vpop.permute.xlu0 %3695
  %3697 = vrot.lane.b32.xlu0 %v3575, 123
  %v3698 = vpop.permute.xlu0 %3697
  %3699 = vrot.lane.b32.xlu0 %v3576, 123
  %v3700 = vpop.permute.xlu0 %3699
  %v3701 = vmul.f32 %v3694, %v2947
  %v3702 = vmul.f32 %v3696, %v2947
  %v3703 = vmul.f32 %v3698, %v2947
  %v3704 = vmul.f32 %v3700, %v2947
  %v3705 = vpack.c.bf16 %v3702, %v3701
  %v3706 = vpack.c.bf16 %v3704, %v3703
  %3708 = vset.pattern.permute.xlu0 0
  %3709 = vperm.xlu0 %3708, %v3585
  %v3710 = vpop.permute.xlu0 %3709
  %3713 = vset.pattern.permute.xlu0 0
  %3714 = vperm.xlu0 %3713, %v3586
  %v3715 = vpop.permute.xlu0 %3714
  %3718 = vset.pattern.permute.xlu0 0
  %3719 = vperm.xlu0 %3718, %v3587
  %v3720 = vpop.permute.xlu0 %3719
  %3723 = vset.pattern.permute.xlu0 0
  %3724 = vperm.xlu0 %3723, %v3588
  %v3725 = vpop.permute.xlu0 %3724
  %v3735 = vunpack.c.l.b16 %v3577
  %v3736 = vunpack.c.h.b16 %v3577
  %v3737 = vunpack.c.l.b16 %v3578
  %v3738 = vunpack.c.l.b16 %v3579
  %v3739 = vunpack.c.h.b16 %v3579
  %v3740 = vunpack.c.l.b16 %v3580
  %v3741 = vunpack.c.l.b16 %v3581
  %v3742 = vunpack.c.h.b16 %v3581
  %v3743 = vunpack.c.l.b16 %v3582
  %v3744 = vunpack.c.l.b16 %v3583
  %v3745 = vunpack.c.h.b16 %v3583
  %v3746 = vunpack.c.l.b16 %v3584
  %v3747 = vpack.c.b16 %v3738, %v3735
  %v3748 = vpack.c.b16 %v3739, %v3736
  %v3749 = vpack.c.b16 %v3740, %v3737
  %v3750 = vpack.c.b16 %v3744, %v3741
  %v3751 = vpack.c.b16 %v3745, %v3742
  %v3752 = vpack.c.b16 %v3746, %v3743
  %v3758 = vsel %vm3352, %v3749, 0
  %v3761 = vsel %vm3352, %v3752, 0
  %3763 = vmatprep.subr.bf16.mxu0 0
  %3764 = vmatpush1.bf16.msra.mxu0 %v3601
  %3765 = vmatprep.subr.bf16.mxu0 0
  %3766 = vmatpush1.bf16.msra.mxu0 %v3602
  %3767 = vmatprep.subr.bf16.mxu0 0
  %3768 = vmatpush1.bf16.msra.mxu0 %v3615
  %3769 = vmatprep.subr.bf16.mxu0 0
  %3770 = vmatpush1.bf16.msra.mxu0 %v3616
  %3771 = vmatprep.subr.bf16.mxu0 0
  %3772 = vmatpush1.bf16.msra.mxu0 %v3629
  %3773 = vmatprep.subr.bf16.mxu0 0
  %3774 = vmatpush1.bf16.msra.mxu0 %v3630
  %3775 = vmatprep.subr.bf16.mxu0 0
  %3776 = vmatpush1.bf16.msra.mxu0 %v3643
  %3777 = vmatprep.subr.bf16.mxu0 0
  %3778 = vmatpush1.bf16.msra.mxu0 %v3644
  %3779 = vmatprep.subr.bf16.mxu0 0
  %3780 = vmatpush1.bf16.msra.mxu0 %v3649
  %3781 = vmatprep.subr.bf16.mxu0 0
  %3782 = vmatpush1.bf16.msra.mxu0 %v3650
  %3783 = vmatprep.subr.bf16.mxu0 0
  %3784 = vmatpush1.bf16.msra.mxu0 %v3663
  %3785 = vmatprep.subr.bf16.mxu0 0
  %3786 = vmatpush1.bf16.msra.mxu0 %v3664
  %3787 = vmatprep.subr.bf16.mxu0 0
  %3788 = vmatpush1.bf16.msra.mxu0 %v3677
  %3789 = vmatprep.subr.bf16.mxu0 0
  %3790 = vmatpush1.bf16.msra.mxu0 %v3678
  %3791 = vmatprep.subr.bf16.mxu0 0
  %3792 = vmatpush1.bf16.msra.mxu0 %v3691
  %3793 = vmatprep.subr.bf16.mxu0 0
  %3794 = vmatpush1.bf16.msra.mxu0 %v3692
  %3795 = vmatprep.mubr.bf16.mxu0 %v3748
  %3796 = vmatmul.mubr.bf16.gmra.mrb[0].mxu0 %v3747
  %v3797 = vpop.f32.mrb[0].mxu0
  %v3798 = vadd.f32 %v3710, %v3797
  %v3799 = vpop.f32.mrb[0].mxu0
  %v3800 = vpop.f32.mrb[0].mxu0
  %v3801 = vadd.f32 %v3715, %v3800
  %v3802 = vpop.f32.mrb[0].mxu0
  %3803 = vmatprep.mubr.bf16.mxu0 %v3751
  %3804 = vmatmul.mubr.bf16.gmra.mrb[0].mxu0 %v3750
  %v3805 = vpop.f32.mrb[0].mxu0
  %v3806 = vadd.f32 %v3720, %v3805
  %v3807 = vpop.f32.mrb[0].mxu0
  %v3808 = vpop.f32.mrb[0].mxu0
  %v3809 = vadd.f32 %v3725, %v3808
  %v3810 = vpop.f32.mrb[0].mxu0
  %3811 = vdwg.mxu0
  %3812 = vmatprep.subr.bf16.mxu0 0
  %3813 = vmatpush1.bf16.msra.mxu0 %v3705
  %3814 = vmatprep.subr.bf16.mxu0 0
  %3815 = vmatpush1.bf16.msra.mxu0 %v3706
  %3816 = vmatprep.subr.bf16.mxu0 0
  %3817 = vmatpush1.bf16.msra.mxu0 0
  %3818 = vmatprep.subr.bf16.mxu0 0
  %3819 = vmatpush1.bf16.msra.mxu0 0
  %3820 = vmatprep.subr.bf16.mxu0 0
  %3821 = vmatpush1.bf16.msra.mxu0 0
  %3822 = vmatprep.subr.bf16.mxu0 0
  %3823 = vmatpush1.bf16.msra.mxu0 0
  %3824 = vmatprep.subr.bf16.mxu0 0
  %3825 = vmatpush1.bf16.msra.mxu0 0
  %3826 = vmatprep.subr.bf16.mxu0 0
  %3827 = vmatpush1.bf16.msra.mxu0 0
  %3828 = vmatprep.subr.bf16.mxu0 0
  %3829 = vmatpush1.bf16.msra.mxu0 0
  %3830 = vmatprep.subr.bf16.mxu0 0
  %3831 = vmatpush1.bf16.msra.mxu0 0
  %3832 = vmatprep.subr.bf16.mxu0 0
  %3833 = vmatpush1.bf16.msra.mxu0 0
  %3834 = vmatprep.subr.bf16.mxu0 0
  %3835 = vmatpush1.bf16.msra.mxu0 0
  %3836 = vmatprep.subr.bf16.mxu0 0
  %3837 = vmatpush1.bf16.msra.mxu0 0
  %3838 = vmatprep.subr.bf16.mxu0 0
  %3839 = vmatpush1.bf16.msra.mxu0 0
  %3840 = vmatprep.subr.bf16.mxu0 0
  %3841 = vmatpush1.bf16.msra.mxu0 0
  %3842 = vmatprep.subr.bf16.mxu0 0
  %3843 = vmatpush1.bf16.msra.mxu0 0
  %3844 = vmatprep.mubr.bf16.mxu0 0
  %3845 = vmatmul.mubr.bf16.gmra.mrb[0].mxu0 %v3758
  %v3846 = vpop.f32.mrb[0].mxu0
  %v3847 = vadd.f32 %v3798, %v3846
  %v3848 = vpop.f32.mrb[0].mxu0
  %v3849 = vpop.f32.mrb[0].mxu0
  %v3850 = vadd.f32 %v3801, %v3849
  %v3851 = vpop.f32.mrb[0].mxu0
  %3852 = vmatprep.mubr.bf16.mxu0 0
  %3853 = vmatmul.mubr.bf16.gmra.mrb[0].mxu0 %v3761
  %v3854 = vpop.f32.mrb[0].mxu0
  %v3855 = vadd.f32 %v3806, %v3854
  %v3856 = vpop.f32.mrb[0].mxu0
  %v3857 = vpop.f32.mrb[0].mxu0
  %v3858 = vadd.f32 %v3809, %v3857
  %v3859 = vpop.f32.mrb[0].mxu0
  %3860 = vdwg.mxu0
  %v3861 = vld [vmem:[%s14] sm:$0xff]
  %v3862 = vld [vmem:[%s14 + $0x8] sm:$0xff]
  %v3863 = vld [vmem:[%s14 + $0x10] sm:$0xff]
  %v3864 = vld [vmem:[%s14 + $0x18] sm:$0xff]
  %v3865 = vld [vmem:[%s15] sm:$0xff]
  %v3866 = vld [vmem:[%s15 + $0x8] sm:$0xff]
  %v3867 = vld [vmem:[%s15 + $0x10] sm:$0xff]
  %v3868 = vld [vmem:[%s15 + $0x18] sm:$0xff]
  %v3869 = vmul.f32 %v3847, %v333
  %v3870 = vmul.f32 %v3850, %v333
  %v3871 = vmul.f32 %v3855, %v333
  %v3872 = vmul.f32 %v3858, %v333
  %3873 = vadd.xlane.f32.xlu0 %v3869
  %v3874 = vpop.xlane.xlu0 %3873
  %3875 = vadd.xlane.f32.xlu0 %v3870
  %v3876 = vpop.xlane.xlu0 %3875
  %3877 = vadd.xlane.f32.xlu0 %v3871
  %v3878 = vpop.xlane.xlu0 %3877
  %3879 = vadd.xlane.f32.xlu0 %v3872
  %v3880 = vpop.xlane.xlu0 %3879
  %v3881 = vmul.f32 %v3874, 0.03125
  %v3882 = vmul.f32 %v3876, 0.03125
  %v3883 = vmul.f32 %v3878, 0.03125
  %v3884 = vmul.f32 %v3880, 0.03125
  %v3885 = vsub.f32 %v3847, %v3881
  %v3886 = vsub.f32 %v3850, %v3882
  %v3887 = vsub.f32 %v3855, %v3883
  %v3888 = vsub.f32 %v3858, %v3884
  %v3889 = vmul.f32 %v3885, %v333
  %v3890 = vmul.f32 %v3886, %v333
  %v3891 = vmul.f32 %v3887, %v333
  %v3892 = vmul.f32 %v3888, %v333
  %v3893 = vmul.f32 %v3889, %v3889
  %v3894 = vmul.f32 %v3890, %v3890
  %v3895 = vmul.f32 %v3891, %v3891
  %v3896 = vmul.f32 %v3892, %v3892
  %3897 = vadd.xlane.f32.xlu0 %v3893
  %v3898 = vpop.xlane.xlu0 %3897
  %3899 = vadd.xlane.f32.xlu0 %v3894
  %v3900 = vpop.xlane.xlu0 %3899
  %3901 = vadd.xlane.f32.xlu0 %v3895
  %v3902 = vpop.xlane.xlu0 %3901
  %3903 = vadd.xlane.f32.xlu0 %v3896
  %v3904 = vpop.xlane.xlu0 %3903
  %v3905 = vmul.f32 %v3898, 0.03125
  %v3906 = vmul.f32 %v3900, 0.03125
  %v3907 = vmul.f32 %v3902, 0.03125
  %v3908 = vmul.f32 %v3904, 0.03125
  %v3909 = vadd.f32 %v3905, 1e-05
  %v3910 = vadd.f32 %v3906, 1e-05
  %v3911 = vadd.f32 %v3907, 1e-05
  %v3912 = vadd.f32 %v3908, 1e-05
  %v3913 = vrsqrt.pop %v3909
  %v3914 = vrsqrt.pop %v3910
  %v3915 = vrsqrt.pop %v3911
  %v3916 = vrsqrt.pop %v3912
  %v3917 = vmul.f32 %v3885, %v3913
  %v3918 = vmul.f32 %v3886, %v3914
  %v3919 = vmul.f32 %v3887, %v3915
  %v3920 = vmul.f32 %v3888, %v3916
  %3922 = vset.pattern.permute.xlu0 0
  %3923 = vperm.xlu0 %3922, %v3861
  %v3924 = vpop.permute.xlu0 %3923
  %3927 = vset.pattern.permute.xlu0 0
  %3928 = vperm.xlu0 %3927, %v3862
  %v3929 = vpop.permute.xlu0 %3928
  %3932 = vset.pattern.permute.xlu0 0
  %3933 = vperm.xlu0 %3932, %v3863
  %v3934 = vpop.permute.xlu0 %3933
  %3937 = vset.pattern.permute.xlu0 0
  %3938 = vperm.xlu0 %3937, %v3864
  %v3939 = vpop.permute.xlu0 %3938
  %v3941 = vmul.f32 %v3917, %v3924
  %v3942 = vmul.f32 %v3918, %v3929
  %v3943 = vmul.f32 %v3919, %v3934
  %v3944 = vmul.f32 %v3920, %v3939
  %3946 = vset.pattern.permute.xlu0 0
  %3947 = vperm.xlu0 %3946, %v3865
  %v3948 = vpop.permute.xlu0 %3947
  %3951 = vset.pattern.permute.xlu0 0
  %3952 = vperm.xlu0 %3951, %v3866
  %v3953 = vpop.permute.xlu0 %3952
  %3956 = vset.pattern.permute.xlu0 0
  %3957 = vperm.xlu0 %3956, %v3867
  %v3958 = vpop.permute.xlu0 %3957
  %3961 = vset.pattern.permute.xlu0 0
  %3962 = vperm.xlu0 %3961, %v3868
  %v3963 = vpop.permute.xlu0 %3962
  %v3965 = vadd.f32 %v3941, %v3948
  %v3966 = vadd.f32 %v3942, %v3953
  %v3967 = vadd.f32 %v3943, %v3958
  %v3968 = vadd.f32 %v3944, %v3963
  %vm3969 = vcmp.gt.f32.partialorder %v3965, 0.0
  %vm3970 = vcmp.gt.f32.partialorder %v3966, 0.0
  %vm3971 = vcmp.gt.f32.partialorder %v3967, 0.0
  %vm3972 = vcmp.gt.f32.partialorder %v3968, 0.0
  %v3973 = vmul.f32 %v3965, 0.2
  %v3974 = vmul.f32 %v3966, 0.2
  %v3975 = vmul.f32 %v3967, 0.2
  %v3976 = vmul.f32 %v3968, 0.2
  %v3977 = vsel %vm3969, %v3965, %v3973
  %v3978 = vsel %vm3970, %v3966, %v3974
  %v3979 = vsel %vm3971, %v3967, %v3975
  %v3980 = vsel %vm3972, %v3968, %v3976
  %v3981 = vld [vmem:[%s16] sm:$0x3f]
  %v3982 = vld [vmem:[%s17] sm:$0x7]
  %3983 = vrot.lane.b32.xlu0 %v3977, 5
  %v3984 = vpop.permute.xlu0 %3983
  %3985 = vrot.lane.b32.xlu0 %v3978, 5
  %v3986 = vpop.permute.xlu0 %3985
  %3987 = vrot.lane.b32.xlu0 %v3979, 5
  %v3988 = vpop.permute.xlu0 %3987
  %3989 = vrot.lane.b32.xlu0 %v3980, 5
  %v3990 = vpop.permute.xlu0 %3989
  %v3991 = vmul.f32 %v3984, %v93
  %v3992 = vmul.f32 %v3986, %v93
  %v3993 = vmul.f32 %v3988, %v93
  %v3994 = vmul.f32 %v3990, %v93
  %v3995 = vpack.c.bf16 %v3992, %v3991
  %v3996 = vpack.c.bf16 %v3994, %v3993
  %3997 = vrot.lane.b32.xlu0 %v3977, 4
  %v3998 = vpop.permute.xlu0 %3997
  %3999 = vrot.lane.b32.xlu0 %v3978, 4
  %v4000 = vpop.permute.xlu0 %3999
  %4001 = vrot.lane.b32.xlu0 %v3979, 4
  %v4002 = vpop.permute.xlu0 %4001
  %4003 = vrot.lane.b32.xlu0 %v3980, 4
  %v4004 = vpop.permute.xlu0 %4003
  %v4005 = vmul.f32 %v3998, %v107
  %v4006 = vmul.f32 %v4000, %v107
  %v4007 = vmul.f32 %v4002, %v107
  %v4008 = vmul.f32 %v4004, %v107
  %v4009 = vpack.c.bf16 %v4006, %v4005
  %v4010 = vpack.c.bf16 %v4008, %v4007
  %4011 = vrot.lane.b32.xlu0 %v3977, 3
  %v4012 = vpop.permute.xlu0 %4011
  %4013 = vrot.lane.b32.xlu0 %v3978, 3
  %v4014 = vpop.permute.xlu0 %4013
  %4015 = vrot.lane.b32.xlu0 %v3979, 3
  %v4016 = vpop.permute.xlu0 %4015
  %4017 = vrot.lane.b32.xlu0 %v3980, 3
  %v4018 = vpop.permute.xlu0 %4017
  %v4019 = vmul.f32 %v4012, %v2439
  %v4020 = vmul.f32 %v4014, %v2439
  %v4021 = vmul.f32 %v4016, %v2439
  %v4022 = vmul.f32 %v4018, %v2439
  %v4023 = vpack.c.bf16 %v4020, %v4019
  %v4024 = vpack.c.bf16 %v4022, %v4021
  %4025 = vrot.lane.b32.xlu0 %v3977, 1
  %v4026 = vpop.permute.xlu0 %4025
  %4027 = vrot.lane.b32.xlu0 %v3978, 1
  %v4028 = vpop.permute.xlu0 %4027
  %4029 = vrot.lane.b32.xlu0 %v3979, 1
  %v4030 = vpop.permute.xlu0 %4029
  %4031 = vrot.lane.b32.xlu0 %v3980, 1
  %v4032 = vpop.permute.xlu0 %4031
  %v4033 = vmul.f32 %v4026, %v276
  %v4034 = vmul.f32 %v4028, %v276
  %v4035 = vmul.f32 %v4030, %v276
  %v4036 = vmul.f32 %v4032, %v276
  %v4037 = vpack.c.bf16 %v4034, %v4033
  %v4038 = vpack.c.bf16 %v4036, %v4035
  %v4039 = vmul.f32 %v3977, %v333
  %v4040 = vmul.f32 %v3978, %v333
  %v4041 = vmul.f32 %v3979, %v333
  %v4042 = vmul.f32 %v3980, %v333
  %v4043 = vpack.c.bf16 %v4040, %v4039
  %v4044 = vpack.c.bf16 %v4042, %v4041
  %4045 = vrot.lane.b32.xlu0 %v3977, 127
  %v4046 = vpop.permute.xlu0 %4045
  %4047 = vrot.lane.b32.xlu0 %v3978, 127
  %v4048 = vpop.permute.xlu0 %4047
  %4049 = vrot.lane.b32.xlu0 %v3979, 127
  %v4050 = vpop.permute.xlu0 %4049
  %4051 = vrot.lane.b32.xlu0 %v3980, 127
  %v4052 = vpop.permute.xlu0 %4051
  %v4053 = vmul.f32 %v4046, %v2686
  %v4054 = vmul.f32 %v4048, %v2686
  %v4055 = vmul.f32 %v4050, %v2686
  %v4056 = vmul.f32 %v4052, %v2686
  %v4057 = vpack.c.bf16 %v4054, %v4053
  %v4058 = vpack.c.bf16 %v4056, %v4055
  %4059 = vrot.lane.b32.xlu0 %v3977, 125
  %v4060 = vpop.permute.xlu0 %4059
  %4061 = vrot.lane.b32.xlu0 %v3978, 125
  %v4062 = vpop.permute.xlu0 %4061
  %4063 = vrot.lane.b32.xlu0 %v3979, 125
  %v4064 = vpop.permute.xlu0 %4063
  %4065 = vrot.lane.b32.xlu0 %v3980, 125
  %v4066 = vpop.permute.xlu0 %4065
  %v4067 = vmul.f32 %v4060, %v2773
  %v4068 = vmul.f32 %v4062, %v2773
  %v4069 = vmul.f32 %v4064, %v2773
  %v4070 = vmul.f32 %v4066, %v2773
  %v4071 = vpack.c.bf16 %v4068, %v4067
  %v4072 = vpack.c.bf16 %v4070, %v4069
  %4073 = vrot.lane.b32.xlu0 %v3977, 124
  %v4074 = vpop.permute.xlu0 %4073
  %4075 = vrot.lane.b32.xlu0 %v3978, 124
  %v4076 = vpop.permute.xlu0 %4075
  %4077 = vrot.lane.b32.xlu0 %v3979, 124
  %v4078 = vpop.permute.xlu0 %4077
  %4079 = vrot.lane.b32.xlu0 %v3980, 124
  %v4080 = vpop.permute.xlu0 %4079
  %v4081 = vmul.f32 %v4074, %v2860
  %v4082 = vmul.f32 %v4076, %v2860
  %v4083 = vmul.f32 %v4078, %v2860
  %v4084 = vmul.f32 %v4080, %v2860
  %v4085 = vpack.c.bf16 %v4082, %v4081
  %v4086 = vpack.c.bf16 %v4084, %v4083
  %4087 = vrot.lane.b32.xlu0 %v3977, 123
  %v4088 = vpop.permute.xlu0 %4087
  %4089 = vrot.lane.b32.xlu0 %v3978, 123
  %v4090 = vpop.permute.xlu0 %4089
  %4091 = vrot.lane.b32.xlu0 %v3979, 123
  %v4092 = vpop.permute.xlu0 %4091
  %4093 = vrot.lane.b32.xlu0 %v3980, 123
  %v4094 = vpop.permute.xlu0 %4093
  %v4095 = vmul.f32 %v4088, %v2947
  %v4096 = vmul.f32 %v4090, %v2947
  %v4097 = vmul.f32 %v4092, %v2947
  %v4098 = vmul.f32 %v4094, %v2947
  %v4099 = vpack.c.bf16 %v4096, %v4095
  %v4100 = vpack.c.bf16 %v4098, %v4097
  %4102 = vset.pattern.permute.xlu0 0
  %4103 = vperm.xlu0 %4102, %v3982
  %v4104 = vpop.permute.xlu0 %4103
  %v4107 = vcombine.high %v3981, %v3981
  %v4109 = vunpack.c.l.s4 1983009808
  %v4110 = vunpack.c.0.s8 %v4109
  %v4111 = vlaneseq
  %v4112 = vshrl.u32 %v4111, 7
  %v4113 = vsub.s32 %v4110, %v4112
  %v4114 = vrot.slane %v3981, %v4113
  %v4116 = vunpack.c.l.s4 1983009808
  %v4117 = vunpack.c.0.s8 %v4116
  %v4118 = vlaneseq
  %v4119 = vshrl.u32 %v4118, 7
  %v4120 = vsub.s32 %v4117, %v4119
  %v4121 = vrot.slane %v4107, %v4120
  %v4122 = vcombine.high %v4114, %v4114
  %v4126 = vsel %vm3352, %v4121, 0
  %4128 = vmatprep.subr.bf16.mxu0 0
  %4129 = vmatpush1.bf16.msra.mxu0 %v3995
  %4130 = vmatprep.subr.bf16.mxu0 0
  %4131 = vmatpush1.bf16.msra.mxu0 %v3996
  %4132 = vmatprep.subr.bf16.mxu0 0
  %4133 = vmatpush1.bf16.msra.mxu0 %v4009
  %4134 = vmatprep.subr.bf16.mxu0 0
  %4135 = vmatpush1.bf16.msra.mxu0 %v4010
  %4136 = vmatprep.subr.bf16.mxu0 0
  %4137 = vmatpush1.bf16.msra.mxu0 %v4023
  %4138 = vmatprep.subr.bf16.mxu0 0
  %4139 = vmatpush1.bf16.msra.mxu0 %v4024
  %4140 = vmatprep.subr.bf16.mxu0 0
  %4141 = vmatpush1.bf16.msra.mxu0 %v4037
  %4142 = vmatprep.subr.bf16.mxu0 0
  %4143 = vmatpush1.bf16.msra.mxu0 %v4038
  %4144 = vmatprep.subr.bf16.mxu0 0
  %4145 = vmatpush1.bf16.msra.mxu0 %v4043
  %4146 = vmatprep.subr.bf16.mxu0 0
  %4147 = vmatpush1.bf16.msra.mxu0 %v4044
  %4148 = vmatprep.subr.bf16.mxu0 0
  %4149 = vmatpush1.bf16.msra.mxu0 %v4057
  %4150 = vmatprep.subr.bf16.mxu0 0
  %4151 = vmatpush1.bf16.msra.mxu0 %v4058
  %4152 = vmatprep.subr.bf16.mxu0 0
  %4153 = vmatpush1.bf16.msra.mxu0 %v4071
  %4154 = vmatprep.subr.bf16.mxu0 0
  %4155 = vmatpush1.bf16.msra.mxu0 %v4072
  %4156 = vmatprep.subr.bf16.mxu0 0
  %4157 = vmatpush1.bf16.msra.mxu0 %v4085
  %4158 = vmatprep.subr.bf16.mxu0 0
  %4159 = vmatpush1.bf16.msra.mxu0 %v4086
  %4160 = vmatprep.mubr.bf16.mxu0 %v4122
  %4161 = vmatmul.mubr.bf16.gmra.mrb[0].mxu0 %v4114
  %v4162 = vpop.f32.mrb[0].mxu0
  %v4163 = vadd.f32 %v4104, %v4162
  %v4164 = vpop.f32.mrb[0].mxu0
  %v4165 = vpop.f32.mrb[0].mxu0
  %v4166 = vpop.f32.mrb[0].mxu0
  %4167 = vdwg.mxu0
  %4168 = vmatprep.subr.bf16.mxu0 0
  %4169 = vmatpush1.bf16.msra.mxu0 %v4099
  %4170 = vmatprep.subr.bf16.mxu0 0
  %4171 = vmatpush1.bf16.msra.mxu0 %v4100
  %4172 = vmatprep.subr.bf16.mxu0 0
  %4173 = vmatpush1.bf16.msra.mxu0 0
  %4174 = vmatprep.subr.bf16.mxu0 0
  %4175 = vmatpush1.bf16.msra.mxu0 0
  %4176 = vmatprep.subr.bf16.mxu0 0
  %4177 = vmatpush1.bf16.msra.mxu0 0
  %4178 = vmatprep.subr.bf16.mxu0 0
  %4179 = vmatpush1.bf16.msra.mxu0 0
  %4180 = vmatprep.subr.bf16.mxu0 0
  %4181 = vmatpush1.bf16.msra.mxu0 0
  %4182 = vmatprep.subr.bf16.mxu0 0
  %4183 = vmatpush1.bf16.msra.mxu0 0
  %4184 = vmatprep.subr.bf16.mxu0 0
  %4185 = vmatpush1.bf16.msra.mxu0 0
  %4186 = vmatprep.subr.bf16.mxu0 0
  %4187 = vmatpush1.bf16.msra.mxu0 0
  %4188 = vmatprep.subr.bf16.mxu0 0
  %4189 = vmatpush1.bf16.msra.mxu0 0
  %4190 = vmatprep.subr.bf16.mxu0 0
  %4191 = vmatpush1.bf16.msra.mxu0 0
  %4192 = vmatprep.subr.bf16.mxu0 0
  %4193 = vmatpush1.bf16.msra.mxu0 0
  %4194 = vmatprep.subr.bf16.mxu0 0
  %4195 = vmatpush1.bf16.msra.mxu0 0
  %4196 = vmatprep.subr.bf16.mxu0 0
  %4197 = vmatpush1.bf16.msra.mxu0 0
  %4198 = vmatprep.subr.bf16.mxu0 0
  %4199 = vmatpush1.bf16.msra.mxu0 0
  %4200 = vmatprep.mubr.bf16.mxu0 0
  %4201 = vmatmul.mubr.bf16.gmra.mrb[0].mxu0 %v4126
  %v4202 = vpop.f32.mrb[0].mxu0
  %v4203 = vadd.f32 %v4163, %v4202
  %v4204 = vpop.f32.mrb[0].mxu0
  %v4205 = vpop.f32.mrb[0].mxu0
  %v4206 = vpop.f32.mrb[0].mxu0
  %4207 = vdwg.mxu0
  %v4208 = vtanh.pop %v4203
  %4209 = vst [vmem:[%s18] sm:$0x7] %v4208
  // Predicated region
  $region74: #{down_generator_forward.1} parent=0 // pred_check
    _
  $region75: #{down_generator_forward.1} parent=0 // pred_check_branch
    %4211 = sbr.rel (0) target = $region77
  $region76: #{down_generator_forward.1} parent=0 // pred_region
    _
  $region77: #{down_generator_forward.1} parent=0 // pred_fallthru
    _
  // Predicated region
  $region78: #{down_generator_forward.1} parent=0 // pred_check
    _
  $region79: #{down_generator_forward.1} parent=0 // pred_check_branch
    %4213 = sbr.rel (0) target = $region81
  $region80: #{down_generator_forward.1} parent=0 // pred_region
    _
  $region81: #{down_generator_forward.1} parent=0 // pred_fallthru
    _

</llo_original>
